<compile_context>
chip_gen: v7x
topology: tpu7x:2x2x1
jax: 0.10.0
libtpu: 0.0.40
codegen_flags: <defaults>
</compile_context>

<pallas_src>
import jax
import jax.numpy as jnp
import numpy as np
from jax.experimental import pallas as pl
from jax.experimental.pallas import tpu as pltpu


def _lrelu(t):
    # LeakyReLU(negative_slope=0.2)
    return jnp.where(t >= 0, t, 0.2 * t)


def mil_kernel(x_ref, m_ref,
               w1, b1, w2, b2, w3, b3,
               vw, vb, wwr, wb,
               c1w, c1b, c2w, c2b, c3w, c3b,
               z_ref, logit_ref):
    # x_ref: (Bb*K, F)  -- Bb bags' instances, flattened row-major
    # m_ref: (Bb, K)    -- per-bag instance mask
    Bb, K = m_ref.shape
    M = w3.shape[1]

    def mm(a, w_ref, b_ref):
        # Matmul with operands in the weights' compute dtype (f32 or bf16),
        # f32 accumulation, f32 bias add.
        return jnp.dot(a.astype(w_ref.dtype), w_ref[...],
                       preferred_element_type=jnp.float32) + b_ref[...]

    # --- embedding MLP: Linear(F,100) -> LReLU -> Linear(100,50) -> LReLU -> Linear(50,M)
    x = x_ref[...]                                   # (Bb*K, F)
    h = _lrelu(mm(x, w1, b1))                        # (Bb*K, 100) f32
    h = _lrelu(mm(h, w2, b2))                        # (Bb*K, 50)  f32
    h = mm(h, w3, b3)                                # (Bb*K, M)   f32

    # --- attention scoring: a_k = w(tanh(V(h_k)))
    t = jnp.tanh(mm(h, vw, vb))                      # (Bb*K, L) f32
    # VPU multiply + lane reduce instead of a (.,L)x(L,1) MXU matmul.
    t3 = t.reshape(Bb, K, t.shape[-1])               # (Bb, K, L)
    s = jnp.sum(t3 * wwr[...], axis=-1) + wb[...]    # (Bb, K)

    # --- masked softmax over K (lane axis of the (Bb, K) slab)
    m = m_ref[...]                                   # (Bb, K)
    s = jnp.where(m == 0, jnp.float32(-1e30), s)
    s_max = jnp.max(s, axis=-1, keepdims=True)       # (Bb, 1)
    e = jnp.exp(s - s_max)                           # (Bb, K)
    inv = pl.reciprocal(jnp.sum(e, axis=-1, keepdims=True), approx=True)
    a = e * inv                                      # (Bb, K)

    # --- attention-weighted pooling
    h3 = h.reshape(Bb, K, M)                         # (Bb, K, M)
    z = jnp.sum(a[:, :, None] * h3, axis=1)          # (Bb, M)
    z_ref[...] = z

    # --- classifier: Linear(M,30) -> LReLU -> Linear(30,10) -> LReLU -> Linear(10,2)
    c = _lrelu(mm(z, c1w, c1b))
    c = _lrelu(mm(c, c2w, c2b))
    logit_ref[...] = mm(c, c3w, c3b)                 # (Bb, 2)


def attention_mil_forward(x, x_mask, params, *, block_b=32,
                          compute_dtype=jnp.float32):
    """x: (B, K, F) float32, x_mask: (B, K). Returns (z (B,M), logit (B,2))."""
    B, K, F = x.shape
    M = params["w3"].shape[1]
    L = params["vw"].shape[1]

    Bb = block_b
    Bpad = ((B + Bb - 1) // Bb) * Bb
    if Bpad != B:
        # Padded bags have mask == 0 everywhere; they degenerate to a uniform
        # softmax over padding (finite, no NaN) and are sliced off below.
        x = jnp.pad(x, ((0, Bpad - B), (0, 0), (0, 0)))
        x_mask = jnp.pad(x_mask, ((0, Bpad - B), (0, 0)))

    x2d = x.reshape(Bpad * K, F).astype(compute_dtype)
    mask2d = x_mask.astype(jnp.float32)

    # Cast only the large matmul weights to the compute dtype; biases and the
    # attention row-vector stay f32.
    p = dict(params)
    p["wwr"] = params["ww"].reshape(1, L)
    for n in ("w1", "w2", "w3", "vw", "c1w", "c2w", "c3w"):
        p[n] = p[n].astype(compute_dtype)

    order = ["w1", "b1", "w2", "b2", "w3", "b3",
             "vw", "vb", "wwr", "wb",
             "c1w", "c1b", "c2w", "c2b", "c3w", "c3b"]
    plist = [p[n] for n in order]

    in_specs = [
        pl.BlockSpec((Bb * K, F), lambda b: (b, 0)),     # x rows for this bag block
        pl.BlockSpec((Bb, K), lambda b: (b, 0)),         # mask rows
    ] + [pl.BlockSpec(w.shape, lambda b: (0, 0)) for w in plist]  # weights: constant blocks

    out_specs = [
        pl.BlockSpec((Bb, M), lambda b: (b, 0)),
        pl.BlockSpec((Bb, 2), lambda b: (b, 0)),
    ]
    out_shape = [
        jax.ShapeDtypeStruct((Bpad, M), jnp.float32),
        jax.ShapeDtypeStruct((Bpad, 2), jnp.float32),
    ]

    z, logit = pl.pallas_call(
        mil_kernel,
        grid=(Bpad // Bb,),
        in_specs=in_specs,
        out_specs=out_specs,
        out_shape=out_shape,
        compiler_params=pltpu.CompilerParams(
            dimension_semantics=("parallel",)),   # v7x: shard bag blocks over both TCs
    )(x2d, mask2d, *plist)

    return z[:B], logit[:B]


def reference_forward(x, x_mask, p):
    """Pure-JAX reference mirroring the PyTorch forward (eval mode, f32)."""
    h = _lrelu(x @ p["w1"] + p["b1"])
    h = _lrelu(h @ p["w2"] + p["b2"])
    h = h @ p["w3"] + p["b3"]                                          # (B, K, M)
    s = (jnp.tanh(h @ p["vw"] + p["vb"]) @ p["ww"] + p["wb"])[..., 0]  # (B, K)
    s = jnp.where(x_mask == 0, jnp.float32(-1e30), s)
    a = jax.nn.softmax(s, axis=-1)[..., None]                          # (B, K, 1)
    z = jnp.sum(a * h, axis=1)                                         # (B, M)
    c = _lrelu(z @ p["c1w"] + p["c1b"])
    c = _lrelu(c @ p["c2w"] + p["c2b"])
    logit = c @ p["c3w"] + p["c3b"]
    return z, logit


def init_params(key, input_dim, L, M):
    dims = [
        ("w1", (input_dim, 100)), ("b1", (1, 100)),
        ("w2", (100, 50)),        ("b2", (1, 50)),
        ("w3", (50, M)),          ("b3", (1, M)),
        ("vw", (M, L)),           ("vb", (1, L)),
        ("ww", (L, 1)),           ("wb", (1, 1)),
        ("c1w", (M, 30)),         ("c1b", (1, 30)),
        ("c2w", (30, 10)),        ("c2b", (1, 10)),
        ("c3w", (10, 2)),         ("c3b", (1, 2)),
    ]
    keys = jax.random.split(key, len(dims))
    params = {}
    for (name, shape), k in zip(dims, keys):
        scale = 0.1 if name.endswith("w") or name[0] == "w" else 0.01
        params[name] = (scale * jax.random.normal(k, shape)).astype(jnp.float32)
    return params


if __name__ == "__main__":
    # B, K, input_dim = batch, max_bag_length, window size; L, M = attn/embed dims.
    B, K, input_dim = 50, 8, 32
    L, M = 8, 16
    Bb = 32           # bags per grid step (Bb*K = 256 MXU rows); B is padded to a multiple.

    root = jax.random.PRNGKey(0)
    k_x, k_p = jax.random.split(root)

    x = jax.random.normal(k_x, (B, K, input_dim), dtype=jnp.float32)
    # mask: most bags fully valid, a couple with padded-out tails
    x_mask = jnp.ones((B, K), dtype=jnp.float32)
    x_mask = x_mask.at[1, 5:].set(0.0)
    x_mask = x_mask.at[7, 3:].set(0.0)

    params = init_params(k_p, input_dim, L, M)

    z_ref, logit_ref = reference_forward(x, x_mask, params)

    # f32 matmul-operand path (all chips)
    z, logit = attention_mil_forward(x, x_mask, params, block_b=Bb,
                                     compute_dtype=jnp.float32)
    jax.block_until_ready((z, logit))
    assert z.shape == (B, M) and logit.shape == (B, 2)
    np.testing.assert_allclose(np.asarray(z), np.asarray(z_ref), rtol=2e-3, atol=2e-3)
    np.testing.assert_allclose(np.asarray(logit), np.asarray(logit_ref), rtol=2e-3, atol=2e-3)

    # bf16 matmul-operand path (v6e/v7x MXU; f32 accumulation) — looser tolerance
    z16, logit16 = attention_mil_forward(x, x_mask, params, block_b=Bb,
                                         compute_dtype=jnp.bfloat16)
    jax.block_until_ready((z16, logit16))
    np.testing.assert_allclose(np.asarray(z16), np.asarray(z_ref), rtol=5e-2, atol=5e-2)
    np.testing.assert_allclose(np.asarray(logit16), np.asarray(logit_ref), rtol=5e-2, atol=5e-2)

    print("KERNEL_OK")
</pallas_src>

<mosaic_0001>
module attributes {stable_mosaic.version = 11 : i64} {
  func.func @mil_kernel(%arg0: i32, %arg1: memref<256x32xf32, #tpu.memory_space<vmem>>, %arg2: memref<32x8xf32, #tpu.memory_space<vmem>>, %arg3: memref<32x100xf32, #tpu.memory_space<vmem>>, %arg4: memref<1x100xf32, #tpu.memory_space<vmem>>, %arg5: memref<100x50xf32, #tpu.memory_space<vmem>>, %arg6: memref<1x50xf32, #tpu.memory_space<vmem>>, %arg7: memref<50x16xf32, #tpu.memory_space<vmem>>, %arg8: memref<1x16xf32, #tpu.memory_space<vmem>>, %arg9: memref<16x8xf32, #tpu.memory_space<vmem>>, %arg10: memref<1x8xf32, #tpu.memory_space<vmem>>, %arg11: memref<1x8xf32, #tpu.memory_space<vmem>>, %arg12: memref<1x1xf32, #tpu.memory_space<vmem>>, %arg13: memref<16x30xf32, #tpu.memory_space<vmem>>, %arg14: memref<1x30xf32, #tpu.memory_space<vmem>>, %arg15: memref<30x10xf32, #tpu.memory_space<vmem>>, %arg16: memref<1x10xf32, #tpu.memory_space<vmem>>, %arg17: memref<10x2xf32, #tpu.memory_space<vmem>>, %arg18: memref<1x2xf32, #tpu.memory_space<vmem>>, %arg19: memref<32x16xf32, #tpu.memory_space<vmem>>, %arg20: memref<32x2xf32, #tpu.memory_space<vmem>>) attributes {dimension_semantics = [#tpu.dimension_semantics<parallel>], iteration_bounds = array<i64: 2>, scalar_prefetch = 0 : i64, scratch_operands = 0 : i64, tpu.core_type = #tpu.core_type<tc>, window_params = [{transform_indices = @transform_0, window_bounds = array<i64: 256, 32>}, {transform_indices = @transform_1, window_bounds = array<i64: 32, 8>}, {pipeline_mode = #tpu.pipeline_mode<synchronous>, transform_indices = @transform_2, window_bounds = array<i64: 32, 100>}, {pipeline_mode = #tpu.pipeline_mode<synchronous>, transform_indices = @transform_3, window_bounds = array<i64: 1, 100>}, {pipeline_mode = #tpu.pipeline_mode<synchronous>, transform_indices = @transform_4, window_bounds = array<i64: 100, 50>}, {pipeline_mode = #tpu.pipeline_mode<synchronous>, transform_indices = @transform_5, window_bounds = array<i64: 1, 50>}, {pipeline_mode = #tpu.pipeline_mode<synchronous>, transform_indices = @transform_6, window_bounds = array<i64: 50, 16>}, {pipeline_mode = #tpu.pipeline_mode<synchronous>, transform_indices = @transform_7, window_bounds = array<i64: 1, 16>}, {pipeline_mode = #tpu.pipeline_mode<synchronous>, transform_indices = @transform_8, window_bounds = array<i64: 16, 8>}, {pipeline_mode = #tpu.pipeline_mode<synchronous>, transform_indices = @transform_9, window_bounds = array<i64: 1, 8>}, {pipeline_mode = #tpu.pipeline_mode<synchronous>, transform_indices = @transform_10, window_bounds = array<i64: 1, 8>}, {pipeline_mode = #tpu.pipeline_mode<synchronous>, transform_indices = @transform_11, window_bounds = array<i64: 1, 1>}, {pipeline_mode = #tpu.pipeline_mode<synchronous>, transform_indices = @transform_12, window_bounds = array<i64: 16, 30>}, {pipeline_mode = #tpu.pipeline_mode<synchronous>, transform_indices = @transform_13, window_bounds = array<i64: 1, 30>}, {pipeline_mode = #tpu.pipeline_mode<synchronous>, transform_indices = @transform_14, window_bounds = array<i64: 30, 10>}, {pipeline_mode = #tpu.pipeline_mode<synchronous>, transform_indices = @transform_15, window_bounds = array<i64: 1, 10>}, {pipeline_mode = #tpu.pipeline_mode<synchronous>, transform_indices = @transform_16, window_bounds = array<i64: 10, 2>}, {pipeline_mode = #tpu.pipeline_mode<synchronous>, transform_indices = @transform_17, window_bounds = array<i64: 1, 2>}, {transform_indices = @transform_18, window_bounds = array<i64: 32, 16>}, {transform_indices = @transform_19, window_bounds = array<i64: 32, 2>}]} {
    %c0 = arith.constant 0 : index
    %c0_0 = arith.constant 0 : index
    %0 = vector.load %arg1[%c0, %c0_0] : memref<256x32xf32, #tpu.memory_space<vmem>>, vector<256x32xf32>
    %c0_1 = arith.constant 0 : index
    %c0_2 = arith.constant 0 : index
    %1 = vector.load %arg3[%c0_1, %c0_2] : memref<32x100xf32, #tpu.memory_space<vmem>>, vector<32x100xf32>
    %cst = arith.constant dense<0.000000e+00> : vector<256x100xf32>
    %2 = tpu.matmul %0, %1, %cst {dimension_numbers = #tpu.dot_dimension_numbers<[1], [0], [0], [1], [0, 0, 1, 1], [], []>} : vector<256x32xf32>, vector<32x100xf32>, vector<256x100xf32> -> vector<256x100xf32>
    %c0_3 = arith.constant 0 : index
    %c0_4 = arith.constant 0 : index
    %3 = vector.load %arg4[%c0_3, %c0_4] : memref<1x100xf32, #tpu.memory_space<vmem>>, vector<1x100xf32>
    %4 = vector.broadcast %3 : vector<1x100xf32> to vector<256x100xf32>
    %5 = arith.addf %2, %4 : vector<256x100xf32>
    %cst_5 = arith.constant 0.000000e+00 : f32
    %6 = vector.broadcast %cst_5 : f32 to vector<256x100xf32>
    %7 = arith.cmpf oge, %5, %6 : vector<256x100xf32>
    %cst_6 = arith.constant 2.000000e-01 : f32
    %8 = vector.broadcast %cst_6 : f32 to vector<256x100xf32>
    %9 = arith.mulf %8, %5 : vector<256x100xf32>
    %10 = arith.select %7, %5, %9 : vector<256x100xi1>, vector<256x100xf32>
    %c0_7 = arith.constant 0 : index
    %c0_8 = arith.constant 0 : index
    %11 = vector.load %arg5[%c0_7, %c0_8] : memref<100x50xf32, #tpu.memory_space<vmem>>, vector<100x50xf32>
    %cst_9 = arith.constant dense<0.000000e+00> : vector<256x50xf32>
    %12 = tpu.matmul %10, %11, %cst_9 {dimension_numbers = #tpu.dot_dimension_numbers<[1], [0], [0], [1], [0, 0, 1, 1], [], []>} : vector<256x100xf32>, vector<100x50xf32>, vector<256x50xf32> -> vector<256x50xf32>
    %c0_10 = arith.constant 0 : index
    %c0_11 = arith.constant 0 : index
    %13 = vector.load %arg6[%c0_10, %c0_11] : memref<1x50xf32, #tpu.memory_space<vmem>>, vector<1x50xf32>
    %14 = vector.broadcast %13 : vector<1x50xf32> to vector<256x50xf32>
    %15 = arith.addf %12, %14 : vector<256x50xf32>
    %cst_12 = arith.constant 0.000000e+00 : f32
    %16 = vector.broadcast %cst_12 : f32 to vector<256x50xf32>
    %17 = arith.cmpf oge, %15, %16 : vector<256x50xf32>
    %cst_13 = arith.constant 2.000000e-01 : f32
    %18 = vector.broadcast %cst_13 : f32 to vector<256x50xf32>
    %19 = arith.mulf %18, %15 : vector<256x50xf32>
    %20 = arith.select %17, %15, %19 : vector<256x50xi1>, vector<256x50xf32>
    %c0_14 = arith.constant 0 : index
    %c0_15 = arith.constant 0 : index
    %21 = vector.load %arg7[%c0_14, %c0_15] : memref<50x16xf32, #tpu.memory_space<vmem>>, vector<50x16xf32>
    %cst_16 = arith.constant dense<0.000000e+00> : vector<256x16xf32>
    %22 = tpu.matmul %20, %21, %cst_16 {dimension_numbers = #tpu.dot_dimension_numbers<[1], [0], [0], [1], [0, 0, 1, 1], [], []>} : vector<256x50xf32>, vector<50x16xf32>, vector<256x16xf32> -> vector<256x16xf32>
    %c0_17 = arith.constant 0 : index
    %c0_18 = arith.constant 0 : index
    %23 = vector.load %arg8[%c0_17, %c0_18] : memref<1x16xf32, #tpu.memory_space<vmem>>, vector<1x16xf32>
    %24 = vector.broadcast %23 : vector<1x16xf32> to vector<256x16xf32>
    %25 = arith.addf %22, %24 : vector<256x16xf32>
    %c0_19 = arith.constant 0 : index
    %c0_20 = arith.constant 0 : index
    %26 = vector.load %arg9[%c0_19, %c0_20] : memref<16x8xf32, #tpu.memory_space<vmem>>, vector<16x8xf32>
    %cst_21 = arith.constant dense<0.000000e+00> : vector<256x8xf32>
    %27 = tpu.matmul %25, %26, %cst_21 {dimension_numbers = #tpu.dot_dimension_numbers<[1], [0], [0], [1], [0, 0, 1, 1], [], []>} : vector<256x16xf32>, vector<16x8xf32>, vector<256x8xf32> -> vector<256x8xf32>
    %c0_22 = arith.constant 0 : index
    %c0_23 = arith.constant 0 : index
    %28 = vector.load %arg10[%c0_22, %c0_23] : memref<1x8xf32, #tpu.memory_space<vmem>>, vector<1x8xf32>
    %29 = vector.broadcast %28 : vector<1x8xf32> to vector<256x8xf32>
    %30 = arith.addf %27, %29 : vector<256x8xf32>
    %31 = math.tanh %30 : vector<256x8xf32>
    %32 = vector.shape_cast %31 : vector<256x8xf32> to vector<32x8x8xf32>
    %c0_24 = arith.constant 0 : index
    %c0_25 = arith.constant 0 : index
    %33 = vector.load %arg11[%c0_24, %c0_25] : memref<1x8xf32, #tpu.memory_space<vmem>>, vector<1x8xf32>
    %34 = vector.shape_cast %33 : vector<1x8xf32> to vector<1x1x8xf32>
    %35 = vector.broadcast %34 : vector<1x1x8xf32> to vector<32x8x8xf32>
    %36 = arith.mulf %32, %35 : vector<32x8x8xf32>
    %cst_26 = arith.constant dense<0.000000e+00> : vector<32x8xf32>
    %37 = vector.multi_reduction <add>, %36, %cst_26 [2] : vector<32x8x8xf32> to vector<32x8xf32>
    %c0_27 = arith.constant 0 : index
    %c0_28 = arith.constant 0 : index
    %38 = vector.load %arg12[%c0_27, %c0_28] : memref<1x1xf32, #tpu.memory_space<vmem>>, vector<1x1xf32>
    %39 = vector.broadcast %38 : vector<1x1xf32> to vector<32x8xf32>
    %40 = arith.addf %37, %39 : vector<32x8xf32>
    %c0_29 = arith.constant 0 : index
    %c0_30 = arith.constant 0 : index
    %41 = vector.load %arg2[%c0_29, %c0_30] : memref<32x8xf32, #tpu.memory_space<vmem>>, vector<32x8xf32>
    %cst_31 = arith.constant 0.000000e+00 : f32
    %42 = vector.broadcast %cst_31 : f32 to vector<32x8xf32>
    %43 = arith.cmpf oeq, %41, %42 : vector<32x8xf32>
    %cst_32 = arith.constant -1.000000e+30 : f32
    %44 = vector.broadcast %cst_32 : f32 to vector<32x8xf32>
    %45 = arith.select %43, %44, %40 : vector<32x8xi1>, vector<32x8xf32>
    %cst_33 = arith.constant dense<0xFF800000> : vector<32xf32>
    %46 = vector.multi_reduction <maximumf>, %45, %cst_33 [1] : vector<32x8xf32> to vector<32xf32>
    %47 = vector.shape_cast %46 : vector<32xf32> to vector<32x1xf32>
    %48 = vector.broadcast %47 : vector<32x1xf32> to vector<32x8xf32>
    %49 = arith.subf %45, %48 : vector<32x8xf32>
    %50 = math.exp %49 : vector<32x8xf32>
    %cst_34 = arith.constant dense<0.000000e+00> : vector<32xf32>
    %51 = vector.multi_reduction <add>, %50, %cst_34 [1] : vector<32x8xf32> to vector<32xf32>
    %52 = vector.shape_cast %51 : vector<32xf32> to vector<32x1xf32>
    %53 = tpu.reciprocal %52 {approx = true} : vector<32x1xf32> -> vector<32x1xf32>
    %54 = vector.broadcast %53 : vector<32x1xf32> to vector<32x8xf32>
    %55 = arith.mulf %50, %54 : vector<32x8xf32>
    %56 = vector.shape_cast %25 : vector<256x16xf32> to vector<32x8x16xf32>
    %57 = vector.shape_cast %55 : vector<32x8xf32> to vector<32x8x1xf32>
    %58 = vector.broadcast %57 : vector<32x8x1xf32> to vector<32x8x16xf32>
    %59 = arith.mulf %58, %56 : vector<32x8x16xf32>
    %cst_35 = arith.constant dense<0.000000e+00> : vector<32x16xf32>
    %60 = vector.multi_reduction <add>, %59, %cst_35 [1] : vector<32x8x16xf32> to vector<32x16xf32>
    %c0_36 = arith.constant 0 : index
    %c0_37 = arith.constant 0 : index
    %61 = vector.load %arg19[%c0_36, %c0_37] : memref<32x16xf32, #tpu.memory_space<vmem>>, vector<32x16xf32>
    tpu.vector_store %arg19[%c0_36, %c0_37], %60 {strides = array<i32>} : memref<32x16xf32, #tpu.memory_space<vmem>>, vector<32x16xf32>,
    %c0_38 = arith.constant 0 : index
    %c0_39 = arith.constant 0 : index
    %62 = vector.load %arg13[%c0_38, %c0_39] : memref<16x30xf32, #tpu.memory_space<vmem>>, vector<16x30xf32>
    %cst_40 = arith.constant dense<0.000000e+00> : vector<32x30xf32>
    %63 = tpu.matmul %60, %62, %cst_40 {dimension_numbers = #tpu.dot_dimension_numbers<[1], [0], [0], [1], [0, 0, 1, 1], [], []>} : vector<32x16xf32>, vector<16x30xf32>, vector<32x30xf32> -> vector<32x30xf32>
    %c0_41 = arith.constant 0 : index
    %c0_42 = arith.constant 0 : index
    %64 = vector.load %arg14[%c0_41, %c0_42] : memref<1x30xf32, #tpu.memory_space<vmem>>, vector<1x30xf32>
    %65 = vector.broadcast %64 : vector<1x30xf32> to vector<32x30xf32>
    %66 = arith.addf %63, %65 : vector<32x30xf32>
    %cst_43 = arith.constant 0.000000e+00 : f32
    %67 = vector.broadcast %cst_43 : f32 to vector<32x30xf32>
    %68 = arith.cmpf oge, %66, %67 : vector<32x30xf32>
    %cst_44 = arith.constant 2.000000e-01 : f32
    %69 = vector.broadcast %cst_44 : f32 to vector<32x30xf32>
    %70 = arith.mulf %69, %66 : vector<32x30xf32>
    %71 = arith.select %68, %66, %70 : vector<32x30xi1>, vector<32x30xf32>
    %c0_45 = arith.constant 0 : index
    %c0_46 = arith.constant 0 : index
    %72 = vector.load %arg15[%c0_45, %c0_46] : memref<30x10xf32, #tpu.memory_space<vmem>>, vector<30x10xf32>
    %cst_47 = arith.constant dense<0.000000e+00> : vector<32x10xf32>
    %73 = tpu.matmul %71, %72, %cst_47 {dimension_numbers = #tpu.dot_dimension_numbers<[1], [0], [0], [1], [0, 0, 1, 1], [], []>} : vector<32x30xf32>, vector<30x10xf32>, vector<32x10xf32> -> vector<32x10xf32>
    %c0_48 = arith.constant 0 : index
    %c0_49 = arith.constant 0 : index
    %74 = vector.load %arg16[%c0_48, %c0_49] : memref<1x10xf32, #tpu.memory_space<vmem>>, vector<1x10xf32>
    %75 = vector.broadcast %74 : vector<1x10xf32> to vector<32x10xf32>
    %76 = arith.addf %73, %75 : vector<32x10xf32>
    %cst_50 = arith.constant 0.000000e+00 : f32
    %77 = vector.broadcast %cst_50 : f32 to vector<32x10xf32>
    %78 = arith.cmpf oge, %76, %77 : vector<32x10xf32>
    %cst_51 = arith.constant 2.000000e-01 : f32
    %79 = vector.broadcast %cst_51 : f32 to vector<32x10xf32>
    %80 = arith.mulf %79, %76 : vector<32x10xf32>
    %81 = arith.select %78, %76, %80 : vector<32x10xi1>, vector<32x10xf32>
    %c0_52 = arith.constant 0 : index
    %c0_53 = arith.constant 0 : index
    %82 = vector.load %arg17[%c0_52, %c0_53] : memref<10x2xf32, #tpu.memory_space<vmem>>, vector<10x2xf32>
    %cst_54 = arith.constant dense<0.000000e+00> : vector<32x2xf32>
    %83 = tpu.matmul %81, %82, %cst_54 {dimension_numbers = #tpu.dot_dimension_numbers<[1], [0], [0], [1], [0, 0, 1, 1], [], []>} : vector<32x10xf32>, vector<10x2xf32>, vector<32x2xf32> -> vector<32x2xf32>
    %c0_55 = arith.constant 0 : index
    %c0_56 = arith.constant 0 : index
    %84 = vector.load %arg18[%c0_55, %c0_56] : memref<1x2xf32, #tpu.memory_space<vmem>>, vector<1x2xf32>
    %85 = vector.broadcast %84 : vector<1x2xf32> to vector<32x2xf32>
    %86 = arith.addf %83, %85 : vector<32x2xf32>
    %c0_57 = arith.constant 0 : index
    %c0_58 = arith.constant 0 : index
    %87 = vector.load %arg20[%c0_57, %c0_58] : memref<32x2xf32, #tpu.memory_space<vmem>>, vector<32x2xf32>
    tpu.vector_store %arg20[%c0_57, %c0_58], %86 {strides = array<i32>} : memref<32x2xf32, #tpu.memory_space<vmem>>, vector<32x2xf32>,
    return
  }
  func.func @transform_0(%arg0: i32) -> (i32, i32) {
    %c0_i32 = arith.constant 0 : i32
    %c0_i32_0 = arith.constant 0 : i32
    return %arg0, %c0_i32 : i32, i32
  }
  func.func @transform_1(%arg0: i32) -> (i32, i32) {
    %c0_i32 = arith.constant 0 : i32
    %c0_i32_0 = arith.constant 0 : i32
    return %arg0, %c0_i32 : i32, i32
  }
  func.func @transform_2(%arg0: i32) -> (i32, i32) {
    %c0_i32 = arith.constant 0 : i32
    %c0_i32_0 = arith.constant 0 : i32
    %c0_i32_1 = arith.constant 0 : i32
    return %c0_i32, %c0_i32_0 : i32, i32
  }
  func.func @transform_3(%arg0: i32) -> (i32, i32) {
    %c0_i32 = arith.constant 0 : i32
    %c0_i32_0 = arith.constant 0 : i32
    %c0_i32_1 = arith.constant 0 : i32
    return %c0_i32, %c0_i32_0 : i32, i32
  }
  func.func @transform_4(%arg0: i32) -> (i32, i32) {
    %c0_i32 = arith.constant 0 : i32
    %c0_i32_0 = arith.constant 0 : i32
    %c0_i32_1 = arith.constant 0 : i32
    return %c0_i32, %c0_i32_0 : i32, i32
  }
  func.func @transform_5(%arg0: i32) -> (i32, i32) {
    %c0_i32 = arith.constant 0 : i32
    %c0_i32_0 = arith.constant 0 : i32
    %c0_i32_1 = arith.constant 0 : i32
    return %c0_i32, %c0_i32_0 : i32, i32
  }
  func.func @transform_6(%arg0: i32) -> (i32, i32) {
    %c0_i32 = arith.constant 0 : i32
    %c0_i32_0 = arith.constant 0 : i32
    %c0_i32_1 = arith.constant 0 : i32
    return %c0_i32, %c0_i32_0 : i32, i32
  }
  func.func @transform_7(%arg0: i32) -> (i32, i32) {
    %c0_i32 = arith.constant 0 : i32
    %c0_i32_0 = arith.constant 0 : i32
    %c0_i32_1 = arith.constant 0 : i32
    return %c0_i32, %c0_i32_0 : i32, i32
  }
  func.func @transform_8(%arg0: i32) -> (i32, i32) {
    %c0_i32 = arith.constant 0 : i32
    %c0_i32_0 = arith.constant 0 : i32
    %c0_i32_1 = arith.constant 0 : i32
    return %c0_i32, %c0_i32_0 : i32, i32
  }
  func.func @transform_9(%arg0: i32) -> (i32, i32) {
    %c0_i32 = arith.constant 0 : i32
    %c0_i32_0 = arith.constant 0 : i32
    %c0_i32_1 = arith.constant 0 : i32
    return %c0_i32, %c0_i32_0 : i32, i32
  }
  func.func @transform_10(%arg0: i32) -> (i32, i32) {
    %c0_i32 = arith.constant 0 : i32
    %c0_i32_0 = arith.constant 0 : i32
    %c0_i32_1 = arith.constant 0 : i32
    return %c0_i32, %c0_i32_0 : i32, i32
  }
  func.func @transform_11(%arg0: i32) -> (i32, i32) {
    %c0_i32 = arith.constant 0 : i32
    %c0_i32_0 = arith.constant 0 : i32
    %c0_i32_1 = arith.constant 0 : i32
    return %c0_i32, %c0_i32_0 : i32, i32
  }
  func.func @transform_12(%arg0: i32) -> (i32, i32) {
    %c0_i32 = arith.constant 0 : i32
    %c0_i32_0 = arith.constant 0 : i32
    %c0_i32_1 = arith.constant 0 : i32
    return %c0_i32, %c0_i32_0 : i32, i32
  }
  func.func @transform_13(%arg0: i32) -> (i32, i32) {
    %c0_i32 = arith.constant 0 : i32
    %c0_i32_0 = arith.constant 0 : i32
    %c0_i32_1 = arith.constant 0 : i32
    return %c0_i32, %c0_i32_0 : i32, i32
  }
  func.func @transform_14(%arg0: i32) -> (i32, i32) {
    %c0_i32 = arith.constant 0 : i32
    %c0_i32_0 = arith.constant 0 : i32
    %c0_i32_1 = arith.constant 0 : i32
    return %c0_i32, %c0_i32_0 : i32, i32
  }
  func.func @transform_15(%arg0: i32) -> (i32, i32) {
    %c0_i32 = arith.constant 0 : i32
    %c0_i32_0 = arith.constant 0 : i32
    %c0_i32_1 = arith.constant 0 : i32
    return %c0_i32, %c0_i32_0 : i32, i32
  }
  func.func @transform_16(%arg0: i32) -> (i32, i32) {
    %c0_i32 = arith.constant 0 : i32
    %c0_i32_0 = arith.constant 0 : i32
    %c0_i32_1 = arith.constant 0 : i32
    return %c0_i32, %c0_i32_0 : i32, i32
  }
  func.func @transform_17(%arg0: i32) -> (i32, i32) {
    %c0_i32 = arith.constant 0 : i32
    %c0_i32_0 = arith.constant 0 : i32
    %c0_i32_1 = arith.constant 0 : i32
    return %c0_i32, %c0_i32_0 : i32, i32
  }
  func.func @transform_18(%arg0: i32) -> (i32, i32) {
    %c0_i32 = arith.constant 0 : i32
    %c0_i32_0 = arith.constant 0 : i32
    return %arg0, %c0_i32 : i32, i32
  }
  func.func @transform_19(%arg0: i32) -> (i32, i32) {
    %c0_i32 = arith.constant 0 : i32
    %c0_i32_0 = arith.constant 0 : i32
    return %arg0, %c0_i32 : i32, i32
  }
}

</mosaic_0001>

<llo_original>
// kernel: tpu_custom_call.1
$region0: #{tpu_custom_call.1}
  #allocation0 [shape = 'u32[]', space=smem, size = 0x4, offset = 0x4, fixed_abs, tag = 'smem constant byte address 0x4 - core index']
  #allocation1 [shape = 'u32[144,128]{1,0:T(1,128)}', space=vmem, size = 0x12000, scoped, tag = 'internal scratch']
  #allocation2 [shape = 'f32[1,1]{1,0:T(1,128)S(1)}', space=vmem, size = 0x200, scoped, tag = 'scoped memory for tpu_custom_call.1']
  %s0 = inlined_call_operand.vmem [shape: f32[512,32], index: 0, kind: input, shape index: {}]
  %s1 = inlined_call_operand.vmem [shape: f32[64,8], index: 1, kind: input, shape index: {}]
  %s2 = inlined_call_operand.vmem [shape: f32[32,100], index: 2, kind: input, shape index: {}]
  %s3 = inlined_call_operand.vmem [shape: f32[1,100], index: 3, kind: input, shape index: {}]
  %s4 = inlined_call_operand.vmem [shape: f32[100,50], index: 4, kind: input, shape index: {}]
  %s5 = inlined_call_operand.vmem [shape: f32[1,50], index: 5, kind: input, shape index: {}]
  %s6 = inlined_call_operand.vmem [shape: f32[50,16], index: 6, kind: input, shape index: {}]
  %s7 = inlined_call_operand.vmem [shape: f32[1,16], index: 7, kind: input, shape index: {}]
  %s8 = inlined_call_operand.vmem [shape: f32[16,8], index: 8, kind: input, shape index: {}]
  %s9 = inlined_call_operand.vmem [shape: f32[1,8], index: 9, kind: input, shape index: {}]
  %s10 = inlined_call_operand.vmem [shape: f32[1,8], index: 10, kind: input, shape index: {}]
  %s11 = inlined_call_operand.<no memory space> [shape: f32[1,1], index: 11, kind: input, shape index: {}]
  %s12 = inlined_call_operand.vmem [shape: f32[16,30], index: 12, kind: input, shape index: {}]
  %s13 = inlined_call_operand.vmem [shape: f32[1,30], index: 13, kind: input, shape index: {}]
  %s14 = inlined_call_operand.vmem [shape: f32[30,10], index: 14, kind: input, shape index: {}]
  %s15 = inlined_call_operand.vmem [shape: f32[1,10], index: 15, kind: input, shape index: {}]
  %s16 = inlined_call_operand.vmem [shape: f32[10,2], index: 16, kind: input, shape index: {}]
  %s17 = inlined_call_operand.vmem [shape: f32[1,2], index: 17, kind: input, shape index: {}]
  %s18 = inlined_call_operand.vmem [shape: f32[64,16], index: 18, kind: output, shape index: {0}]
  %s19 = inlined_call_operand.vmem [shape: f32[64,2], index: 19, kind: output, shape index: {1}]
  %20 = xla_tuple %s18, %s19
  %s21 = sld [smem:[#allocation0]]
  $region113: #{tpu_custom_call.1} parent=0
    _
  %s23 = ssub.s32 1, %s21
  %s24 = scalar_select 0, %s23, %s21
  %v25 = vstv %s11
  %26 = vst [vmem:[#allocation2] sm:$0x1] %v25
  loop: start=0, step=1, limit=4
  $region2: #{tpu_custom_call.1} parent=0 // loop_pre_header
    _
  $region3: #{tpu_custom_call.1} parent=0 // loop_header
    %s28 = sphi 0, %s32
    %p29 = scmp.ge.s32.totalorder %s28, 4
    %s38 = sphi 0, %s40
    %s41 = sphi 0, %s38
    %s42 = sphi 0, %s41
    %s58 = sphi 0, %s42
    %s64 = sphi 0, %s66
    %s67 = sphi 0, %s64
    %s68 = sphi 0, %s67
    %s84 = sphi 0, %s68
    %s88 = sphi 0, %s88
    %s90 = sphi 0, %s88
    %s91 = sphi 0, %s90
    %s105 = sphi 0, %s91
    %s109 = sphi 0, %s109
    %s111 = sphi 0, %s109
    %s112 = sphi 0, %s111
    %s126 = sphi 0, %s112
    %s130 = sphi 0, %s130
    %s132 = sphi 0, %s130
    %s133 = sphi 0, %s132
    %s147 = sphi 0, %s133
    %s151 = sphi 0, %s151
    %s153 = sphi 0, %s151
    %s154 = sphi 0, %s153
    %s168 = sphi 0, %s154
    %s172 = sphi 0, %s172
    %s174 = sphi 0, %s172
    %s175 = sphi 0, %s174
    %s189 = sphi 0, %s175
    %s193 = sphi 0, %s193
    %s195 = sphi 0, %s193
    %s196 = sphi 0, %s195
    %s210 = sphi 0, %s196
    %s214 = sphi 0, %s214
    %s216 = sphi 0, %s214
    %s217 = sphi 0, %s216
    %s231 = sphi 0, %s217
    %s235 = sphi 0, %s235
    %s237 = sphi 0, %s235
    %s238 = sphi 0, %s237
    %s252 = sphi 0, %s238
    %s256 = sphi 0, %s256
    %s258 = sphi 0, %s256
    %s259 = sphi 0, %s258
    %s273 = sphi 0, %s259
    %s277 = sphi 0, %s277
    %s279 = sphi 0, %s277
    %s280 = sphi 0, %s279
    %s294 = sphi 0, %s280
    %s298 = sphi 0, %s298
    %s300 = sphi 0, %s298
    %s301 = sphi 0, %s300
    %s315 = sphi 0, %s301
    %s319 = sphi 0, %s319
    %s321 = sphi 0, %s319
    %s322 = sphi 0, %s321
    %s336 = sphi 0, %s322
    %s340 = sphi 0, %s340
    %s342 = sphi 0, %s340
    %s343 = sphi 0, %s342
    %s357 = sphi 0, %s343
    %s361 = sphi 0, %s361
    %s363 = sphi 0, %s361
    %s364 = sphi 0, %s363
    %s378 = sphi 0, %s364
    %s382 = sphi 0, %s382
    %s384 = sphi 0, %s382
    %s385 = sphi 0, %s384
    %s399 = sphi 0, %s385
    %s403 = sphi 0, %s403
    %s405 = sphi 0, %s403
    %s406 = sphi 0, %s405
    %s420 = sphi 0, %s406
    %s426 = sphi 0, %s428
    %s429 = sphi 0, %s426
    %s430 = sphi 0, %s429
    %s446 = sphi 0, %s430
    %s452 = sphi 0, %s454
    %s455 = sphi 0, %s452
    %s456 = sphi 0, %s455
    %s472 = sphi 0, %s456
  $region4: #{tpu_custom_call.1} parent=0 // loop_header_branch
    %31 = sbr.rel (%p29) target = $region8
  $region5: #{tpu_custom_call.1} parent=0 // loop_body
    %s33 = ssub.s32 %s28, 1
    %s34 = ssub.s32 %s28, 2
    %s35 = sadd.s32 %s28, 1
    %s36 = ssub.s32 %s28, %s35
    %p37 = scmp.eq.s32.totalorder %s36, 0
    %s39 = sadd.s32 %s38, 1
    %s40 = scalar_select %p37, %s38, %s39
    %p43 = pneg %p37
    %p44 = scmp.eq.s32.totalorder %s28, 1
    %p45 = por %p43, %p44
    %p46 = scmp.ne.s32.totalorder %s38, %s41
    %p47 = scmp.eq.s32.totalorder %s28, 0
    %p48 = por %p46, %p47
    %p49 = scmp.ne.s32.totalorder %s38, %s41
    %p50 = scmp.eq.s32.totalorder %s33, 1
    %p51 = por %p49, %p50
    %p52 = scmp.ne.s32.totalorder %s41, %s42
    %p53 = scmp.eq.s32.totalorder %s33, 0
    %p54 = por %p52, %p53
    %p55 = scmp.ne.s32.totalorder %s41, %s42
    %p56 = scmp.eq.s32.totalorder %s34, 1
    %p57 = por %p55, %p56
    %p59 = scmp.ne.s32.totalorder %s42, %s58
    %p60 = scmp.eq.s32.totalorder %s34, 0
    %p61 = por %p59, %p60
    %s62 = ssub.s32 %s28, %s35
    %p63 = scmp.eq.s32.totalorder %s62, 0
    %s65 = sadd.s32 %s64, 1
    %s66 = scalar_select %p63, %s64, %s65
    %p69 = pneg %p63
    %p70 = scmp.eq.s32.totalorder %s28, 1
    %p71 = por %p69, %p70
    %p72 = scmp.ne.s32.totalorder %s64, %s67
    %p73 = scmp.eq.s32.totalorder %s28, 0
    %p74 = por %p72, %p73
    %p75 = scmp.ne.s32.totalorder %s64, %s67
    %p76 = scmp.eq.s32.totalorder %s33, 1
    %p77 = por %p75, %p76
    %p78 = scmp.ne.s32.totalorder %s67, %s68
    %p79 = scmp.eq.s32.totalorder %s33, 0
    %p80 = por %p78, %p79
    %p81 = scmp.ne.s32.totalorder %s67, %s68
    %p82 = scmp.eq.s32.totalorder %s34, 1
    %p83 = por %p81, %p82
    %p85 = scmp.ne.s32.totalorder %s68, %s84
    %p86 = scmp.eq.s32.totalorder %s34, 0
    %p87 = por %p85, %p86
    %s89 = sadd.s32 %s88, 1
    %p92 = scmp.eq.s32.totalorder %s28, 1
    %p93 = scmp.ne.s32.totalorder %s88, %s90
    %p94 = scmp.eq.s32.totalorder %s28, 0
    %p95 = por %p93, %p94
    %p96 = scmp.ne.s32.totalorder %s88, %s90
    %p97 = scmp.eq.s32.totalorder %s33, 1
    %p98 = por %p96, %p97
    %p99 = scmp.ne.s32.totalorder %s90, %s91
    %p100 = scmp.eq.s32.totalorder %s33, 0
    %p101 = por %p99, %p100
    %p102 = scmp.ne.s32.totalorder %s90, %s91
    %p103 = scmp.eq.s32.totalorder %s34, 1
    %p104 = por %p102, %p103
    %p106 = scmp.ne.s32.totalorder %s91, %s105
    %p107 = scmp.eq.s32.totalorder %s34, 0
    %p108 = por %p106, %p107
    %s110 = sadd.s32 %s109, 1
    %p113 = scmp.eq.s32.totalorder %s28, 1
    %p114 = scmp.ne.s32.totalorder %s109, %s111
    %p115 = scmp.eq.s32.totalorder %s28, 0
    %p116 = por %p114, %p115
    %p117 = scmp.ne.s32.totalorder %s109, %s111
    %p118 = scmp.eq.s32.totalorder %s33, 1
    %p119 = por %p117, %p118
    %p120 = scmp.ne.s32.totalorder %s111, %s112
    %p121 = scmp.eq.s32.totalorder %s33, 0
    %p122 = por %p120, %p121
    %p123 = scmp.ne.s32.totalorder %s111, %s112
    %p124 = scmp.eq.s32.totalorder %s34, 1
    %p125 = por %p123, %p124
    %p127 = scmp.ne.s32.totalorder %s112, %s126
    %p128 = scmp.eq.s32.totalorder %s34, 0
    %p129 = por %p127, %p128
    %s131 = sadd.s32 %s130, 1
    %p134 = scmp.eq.s32.totalorder %s28, 1
    %p135 = scmp.ne.s32.totalorder %s130, %s132
    %p136 = scmp.eq.s32.totalorder %s28, 0
    %p137 = por %p135, %p136
    %p138 = scmp.ne.s32.totalorder %s130, %s132
    %p139 = scmp.eq.s32.totalorder %s33, 1
    %p140 = por %p138, %p139
    %p141 = scmp.ne.s32.totalorder %s132, %s133
    %p142 = scmp.eq.s32.totalorder %s33, 0
    %p143 = por %p141, %p142
    %p144 = scmp.ne.s32.totalorder %s132, %s133
    %p145 = scmp.eq.s32.totalorder %s34, 1
    %p146 = por %p144, %p145
    %p148 = scmp.ne.s32.totalorder %s133, %s147
    %p149 = scmp.eq.s32.totalorder %s34, 0
    %p150 = por %p148, %p149
    %s152 = sadd.s32 %s151, 1
    %p155 = scmp.eq.s32.totalorder %s28, 1
    %p156 = scmp.ne.s32.totalorder %s151, %s153
    %p157 = scmp.eq.s32.totalorder %s28, 0
    %p158 = por %p156, %p157
    %p159 = scmp.ne.s32.totalorder %s151, %s153
    %p160 = scmp.eq.s32.totalorder %s33, 1
    %p161 = por %p159, %p160
    %p162 = scmp.ne.s32.totalorder %s153, %s154
    %p163 = scmp.eq.s32.totalorder %s33, 0
    %p164 = por %p162, %p163
    %p165 = scmp.ne.s32.totalorder %s153, %s154
    %p166 = scmp.eq.s32.totalorder %s34, 1
    %p167 = por %p165, %p166
    %p169 = scmp.ne.s32.totalorder %s154, %s168
    %p170 = scmp.eq.s32.totalorder %s34, 0
    %p171 = por %p169, %p170
    %s173 = sadd.s32 %s172, 1
    %p176 = scmp.eq.s32.totalorder %s28, 1
    %p177 = scmp.ne.s32.totalorder %s172, %s174
    %p178 = scmp.eq.s32.totalorder %s28, 0
    %p179 = por %p177, %p178
    %p180 = scmp.ne.s32.totalorder %s172, %s174
    %p181 = scmp.eq.s32.totalorder %s33, 1
    %p182 = por %p180, %p181
    %p183 = scmp.ne.s32.totalorder %s174, %s175
    %p184 = scmp.eq.s32.totalorder %s33, 0
    %p185 = por %p183, %p184
    %p186 = scmp.ne.s32.totalorder %s174, %s175
    %p187 = scmp.eq.s32.totalorder %s34, 1
    %p188 = por %p186, %p187
    %p190 = scmp.ne.s32.totalorder %s175, %s189
    %p191 = scmp.eq.s32.totalorder %s34, 0
    %p192 = por %p190, %p191
    %s194 = sadd.s32 %s193, 1
    %p197 = scmp.eq.s32.totalorder %s28, 1
    %p198 = scmp.ne.s32.totalorder %s193, %s195
    %p199 = scmp.eq.s32.totalorder %s28, 0
    %p200 = por %p198, %p199
    %p201 = scmp.ne.s32.totalorder %s193, %s195
    %p202 = scmp.eq.s32.totalorder %s33, 1
    %p203 = por %p201, %p202
    %p204 = scmp.ne.s32.totalorder %s195, %s196
    %p205 = scmp.eq.s32.totalorder %s33, 0
    %p206 = por %p204, %p205
    %p207 = scmp.ne.s32.totalorder %s195, %s196
    %p208 = scmp.eq.s32.totalorder %s34, 1
    %p209 = por %p207, %p208
    %p211 = scmp.ne.s32.totalorder %s196, %s210
    %p212 = scmp.eq.s32.totalorder %s34, 0
    %p213 = por %p211, %p212
    %s215 = sadd.s32 %s214, 1
    %p218 = scmp.eq.s32.totalorder %s28, 1
    %p219 = scmp.ne.s32.totalorder %s214, %s216
    %p220 = scmp.eq.s32.totalorder %s28, 0
    %p221 = por %p219, %p220
    %p222 = scmp.ne.s32.totalorder %s214, %s216
    %p223 = scmp.eq.s32.totalorder %s33, 1
    %p224 = por %p222, %p223
    %p225 = scmp.ne.s32.totalorder %s216, %s217
    %p226 = scmp.eq.s32.totalorder %s33, 0
    %p227 = por %p225, %p226
    %p228 = scmp.ne.s32.totalorder %s216, %s217
    %p229 = scmp.eq.s32.totalorder %s34, 1
    %p230 = por %p228, %p229
    %p232 = scmp.ne.s32.totalorder %s217, %s231
    %p233 = scmp.eq.s32.totalorder %s34, 0
    %p234 = por %p232, %p233
    %s236 = sadd.s32 %s235, 1
    %p239 = scmp.eq.s32.totalorder %s28, 1
    %p240 = scmp.ne.s32.totalorder %s235, %s237
    %p241 = scmp.eq.s32.totalorder %s28, 0
    %p242 = por %p240, %p241
    %p243 = scmp.ne.s32.totalorder %s235, %s237
    %p244 = scmp.eq.s32.totalorder %s33, 1
    %p245 = por %p243, %p244
    %p246 = scmp.ne.s32.totalorder %s237, %s238
    %p247 = scmp.eq.s32.totalorder %s33, 0
    %p248 = por %p246, %p247
    %p249 = scmp.ne.s32.totalorder %s237, %s238
    %p250 = scmp.eq.s32.totalorder %s34, 1
    %p251 = por %p249, %p250
    %p253 = scmp.ne.s32.totalorder %s238, %s252
    %p254 = scmp.eq.s32.totalorder %s34, 0
    %p255 = por %p253, %p254
    %s257 = sadd.s32 %s256, 1
    %p260 = scmp.eq.s32.totalorder %s28, 1
    %p261 = scmp.ne.s32.totalorder %s256, %s258
    %p262 = scmp.eq.s32.totalorder %s28, 0
    %p263 = por %p261, %p262
    %p264 = scmp.ne.s32.totalorder %s256, %s258
    %p265 = scmp.eq.s32.totalorder %s33, 1
    %p266 = por %p264, %p265
    %p267 = scmp.ne.s32.totalorder %s258, %s259
    %p268 = scmp.eq.s32.totalorder %s33, 0
    %p269 = por %p267, %p268
    %p270 = scmp.ne.s32.totalorder %s258, %s259
    %p271 = scmp.eq.s32.totalorder %s34, 1
    %p272 = por %p270, %p271
    %p274 = scmp.ne.s32.totalorder %s259, %s273
    %p275 = scmp.eq.s32.totalorder %s34, 0
    %p276 = por %p274, %p275
    %s278 = sadd.s32 %s277, 1
    %p281 = scmp.eq.s32.totalorder %s28, 1
    %p282 = scmp.ne.s32.totalorder %s277, %s279
    %p283 = scmp.eq.s32.totalorder %s28, 0
    %p284 = por %p282, %p283
    %p285 = scmp.ne.s32.totalorder %s277, %s279
    %p286 = scmp.eq.s32.totalorder %s33, 1
    %p287 = por %p285, %p286
    %p288 = scmp.ne.s32.totalorder %s279, %s280
    %p289 = scmp.eq.s32.totalorder %s33, 0
    %p290 = por %p288, %p289
    %p291 = scmp.ne.s32.totalorder %s279, %s280
    %p292 = scmp.eq.s32.totalorder %s34, 1
    %p293 = por %p291, %p292
    %p295 = scmp.ne.s32.totalorder %s280, %s294
    %p296 = scmp.eq.s32.totalorder %s34, 0
    %p297 = por %p295, %p296
    %s299 = sadd.s32 %s298, 1
    %p302 = scmp.eq.s32.totalorder %s28, 1
    %p303 = scmp.ne.s32.totalorder %s298, %s300
    %p304 = scmp.eq.s32.totalorder %s28, 0
    %p305 = por %p303, %p304
    %p306 = scmp.ne.s32.totalorder %s298, %s300
    %p307 = scmp.eq.s32.totalorder %s33, 1
    %p308 = por %p306, %p307
    %p309 = scmp.ne.s32.totalorder %s300, %s301
    %p310 = scmp.eq.s32.totalorder %s33, 0
    %p311 = por %p309, %p310
    %p312 = scmp.ne.s32.totalorder %s300, %s301
    %p313 = scmp.eq.s32.totalorder %s34, 1
    %p314 = por %p312, %p313
    %p316 = scmp.ne.s32.totalorder %s301, %s315
    %p317 = scmp.eq.s32.totalorder %s34, 0
    %p318 = por %p316, %p317
    %s320 = sadd.s32 %s319, 1
    %p323 = scmp.eq.s32.totalorder %s28, 1
    %p324 = scmp.ne.s32.totalorder %s319, %s321
    %p325 = scmp.eq.s32.totalorder %s28, 0
    %p326 = por %p324, %p325
    %p327 = scmp.ne.s32.totalorder %s319, %s321
    %p328 = scmp.eq.s32.totalorder %s33, 1
    %p329 = por %p327, %p328
    %p330 = scmp.ne.s32.totalorder %s321, %s322
    %p331 = scmp.eq.s32.totalorder %s33, 0
    %p332 = por %p330, %p331
    %p333 = scmp.ne.s32.totalorder %s321, %s322
    %p334 = scmp.eq.s32.totalorder %s34, 1
    %p335 = por %p333, %p334
    %p337 = scmp.ne.s32.totalorder %s322, %s336
    %p338 = scmp.eq.s32.totalorder %s34, 0
    %p339 = por %p337, %p338
    %s341 = sadd.s32 %s340, 1
    %p344 = scmp.eq.s32.totalorder %s28, 1
    %p345 = scmp.ne.s32.totalorder %s340, %s342
    %p346 = scmp.eq.s32.totalorder %s28, 0
    %p347 = por %p345, %p346
    %p348 = scmp.ne.s32.totalorder %s340, %s342
    %p349 = scmp.eq.s32.totalorder %s33, 1
    %p350 = por %p348, %p349
    %p351 = scmp.ne.s32.totalorder %s342, %s343
    %p352 = scmp.eq.s32.totalorder %s33, 0
    %p353 = por %p351, %p352
    %p354 = scmp.ne.s32.totalorder %s342, %s343
    %p355 = scmp.eq.s32.totalorder %s34, 1
    %p356 = por %p354, %p355
    %p358 = scmp.ne.s32.totalorder %s343, %s357
    %p359 = scmp.eq.s32.totalorder %s34, 0
    %p360 = por %p358, %p359
    %s362 = sadd.s32 %s361, 1
    %p365 = scmp.eq.s32.totalorder %s28, 1
    %p366 = scmp.ne.s32.totalorder %s361, %s363
    %p367 = scmp.eq.s32.totalorder %s28, 0
    %p368 = por %p366, %p367
    %p369 = scmp.ne.s32.totalorder %s361, %s363
    %p370 = scmp.eq.s32.totalorder %s33, 1
    %p371 = por %p369, %p370
    %p372 = scmp.ne.s32.totalorder %s363, %s364
    %p373 = scmp.eq.s32.totalorder %s33, 0
    %p374 = por %p372, %p373
    %p375 = scmp.ne.s32.totalorder %s363, %s364
    %p376 = scmp.eq.s32.totalorder %s34, 1
    %p377 = por %p375, %p376
    %p379 = scmp.ne.s32.totalorder %s364, %s378
    %p380 = scmp.eq.s32.totalorder %s34, 0
    %p381 = por %p379, %p380
    %s383 = sadd.s32 %s382, 1
    %p386 = scmp.eq.s32.totalorder %s28, 1
    %p387 = scmp.ne.s32.totalorder %s382, %s384
    %p388 = scmp.eq.s32.totalorder %s28, 0
    %p389 = por %p387, %p388
    %p390 = scmp.ne.s32.totalorder %s382, %s384
    %p391 = scmp.eq.s32.totalorder %s33, 1
    %p392 = por %p390, %p391
    %p393 = scmp.ne.s32.totalorder %s384, %s385
    %p394 = scmp.eq.s32.totalorder %s33, 0
    %p395 = por %p393, %p394
    %p396 = scmp.ne.s32.totalorder %s384, %s385
    %p397 = scmp.eq.s32.totalorder %s34, 1
    %p398 = por %p396, %p397
    %p400 = scmp.ne.s32.totalorder %s385, %s399
    %p401 = scmp.eq.s32.totalorder %s34, 0
    %p402 = por %p400, %p401
    %s404 = sadd.s32 %s403, 1
    %p407 = scmp.eq.s32.totalorder %s28, 1
    %p408 = scmp.ne.s32.totalorder %s403, %s405
    %p409 = scmp.eq.s32.totalorder %s28, 0
    %p410 = por %p408, %p409
    %p411 = scmp.ne.s32.totalorder %s403, %s405
    %p412 = scmp.eq.s32.totalorder %s33, 1
    %p413 = por %p411, %p412
    %p414 = scmp.ne.s32.totalorder %s405, %s406
    %p415 = scmp.eq.s32.totalorder %s33, 0
    %p416 = por %p414, %p415
    %p417 = scmp.ne.s32.totalorder %s405, %s406
    %p418 = scmp.eq.s32.totalorder %s34, 1
    %p419 = por %p417, %p418
    %p421 = scmp.ne.s32.totalorder %s406, %s420
    %p422 = scmp.eq.s32.totalorder %s34, 0
    %p423 = por %p421, %p422
    %s424 = ssub.s32 %s28, %s35
    %p425 = scmp.eq.s32.totalorder %s424, 0
    %s427 = sadd.s32 %s426, 1
    %s428 = scalar_select %p425, %s426, %s427
    %p431 = pneg %p425
    %p432 = scmp.eq.s32.totalorder %s28, 1
    %p433 = por %p431, %p432
    %p434 = scmp.ne.s32.totalorder %s426, %s429
    %p435 = scmp.eq.s32.totalorder %s28, 0
    %p436 = por %p434, %p435
    %p437 = scmp.ne.s32.totalorder %s426, %s429
    %p438 = scmp.eq.s32.totalorder %s33, 1
    %p439 = por %p437, %p438
    %p440 = scmp.ne.s32.totalorder %s429, %s430
    %p441 = scmp.eq.s32.totalorder %s33, 0
    %p442 = por %p440, %p441
    %p443 = scmp.ne.s32.totalorder %s429, %s430
    %p444 = scmp.eq.s32.totalorder %s34, 1
    %p445 = por %p443, %p444
    %p447 = scmp.ne.s32.totalorder %s430, %s446
    %p448 = scmp.eq.s32.totalorder %s34, 0
    %p449 = por %p447, %p448
    %s450 = ssub.s32 %s28, %s35
    %p451 = scmp.eq.s32.totalorder %s450, 0
    %s453 = sadd.s32 %s452, 1
    %s454 = scalar_select %p451, %s452, %s453
    %p457 = pneg %p451
    %p458 = scmp.eq.s32.totalorder %s28, 1
    %p459 = por %p457, %p458
    %p460 = scmp.ne.s32.totalorder %s452, %s455
    %p461 = scmp.eq.s32.totalorder %s28, 0
    %p462 = por %p460, %p461
    %p463 = scmp.ne.s32.totalorder %s452, %s455
    %p464 = scmp.eq.s32.totalorder %s33, 1
    %p465 = por %p463, %p464
    %p466 = scmp.ne.s32.totalorder %s455, %s456
    %p467 = scmp.eq.s32.totalorder %s33, 0
    %p468 = por %p466, %p467
    %p469 = scmp.ne.s32.totalorder %s455, %s456
    %p470 = scmp.eq.s32.totalorder %s34, 1
    %p471 = por %p469, %p470
    %p473 = scmp.ne.s32.totalorder %s456, %s472
    %p474 = scmp.eq.s32.totalorder %s34, 0
    %p475 = por %p473, %p474
    %p476 = scmp.le.s32.totalorder 1, %s28
    %p477 = scmp.lt.s32.totalorder %s28, 3
    %p478 = pnand %p476, %p477
    %p479 = pneg %p478
    // Predicated region
    $region9: #{tpu_custom_call.1} parent=5 // pred_check
      _
    $region10: #{tpu_custom_call.1} parent=5 // pred_check_branch
      %481 = sbr.rel (%p478) target = $region12
    $region11: #{tpu_custom_call.1} parent=5 // pred_region
      %s482 = ssub.s32 %s28, 1
      // Predicated region
      $region13: #{tpu_custom_call.1} parent=11 // pred_check
        %p483 = pneg %p101
      $region14: #{tpu_custom_call.1} parent=11 // pred_check_branch
        %485 = sbr.rel (%p483) target = $region16
      $region15: #{tpu_custom_call.1} parent=11 // pred_region
        _
      $region16: #{tpu_custom_call.1} parent=11 // pred_fallthru
        _
      // Predicated region
      $region17: #{tpu_custom_call.1} parent=11 // pred_check
        %p486 = pneg %p122
      $region18: #{tpu_custom_call.1} parent=11 // pred_check_branch
        %488 = sbr.rel (%p486) target = $region20
      $region19: #{tpu_custom_call.1} parent=11 // pred_region
        _
      $region20: #{tpu_custom_call.1} parent=11 // pred_fallthru
        _
      // Predicated region
      $region21: #{tpu_custom_call.1} parent=11 // pred_check
        %p489 = pneg %p143
      $region22: #{tpu_custom_call.1} parent=11 // pred_check_branch
        %491 = sbr.rel (%p489) target = $region24
      $region23: #{tpu_custom_call.1} parent=11 // pred_region
        _
      $region24: #{tpu_custom_call.1} parent=11 // pred_fallthru
        _
      // Predicated region
      $region25: #{tpu_custom_call.1} parent=11 // pred_check
        %p492 = pneg %p164
      $region26: #{tpu_custom_call.1} parent=11 // pred_check_branch
        %494 = sbr.rel (%p492) target = $region28
      $region27: #{tpu_custom_call.1} parent=11 // pred_region
        _
      $region28: #{tpu_custom_call.1} parent=11 // pred_fallthru
        _
      // Predicated region
      $region29: #{tpu_custom_call.1} parent=11 // pred_check
        %p495 = pneg %p185
      $region30: #{tpu_custom_call.1} parent=11 // pred_check_branch
        %497 = sbr.rel (%p495) target = $region32
      $region31: #{tpu_custom_call.1} parent=11 // pred_region
        _
      $region32: #{tpu_custom_call.1} parent=11 // pred_fallthru
        _
      // Predicated region
      $region33: #{tpu_custom_call.1} parent=11 // pred_check
        %p498 = pneg %p206
      $region34: #{tpu_custom_call.1} parent=11 // pred_check_branch
        %500 = sbr.rel (%p498) target = $region36
      $region35: #{tpu_custom_call.1} parent=11 // pred_region
        _
      $region36: #{tpu_custom_call.1} parent=11 // pred_fallthru
        _
      // Predicated region
      $region37: #{tpu_custom_call.1} parent=11 // pred_check
        %p501 = pneg %p227
      $region38: #{tpu_custom_call.1} parent=11 // pred_check_branch
        %503 = sbr.rel (%p501) target = $region40
      $region39: #{tpu_custom_call.1} parent=11 // pred_region
        _
      $region40: #{tpu_custom_call.1} parent=11 // pred_fallthru
        _
      // Predicated region
      $region41: #{tpu_custom_call.1} parent=11 // pred_check
        %p504 = pneg %p248
      $region42: #{tpu_custom_call.1} parent=11 // pred_check_branch
        %506 = sbr.rel (%p504) target = $region44
      $region43: #{tpu_custom_call.1} parent=11 // pred_region
        _
      $region44: #{tpu_custom_call.1} parent=11 // pred_fallthru
        _
      // Predicated region
      $region45: #{tpu_custom_call.1} parent=11 // pred_check
        %p507 = pneg %p269
      $region46: #{tpu_custom_call.1} parent=11 // pred_check_branch
        %509 = sbr.rel (%p507) target = $region48
      $region47: #{tpu_custom_call.1} parent=11 // pred_region
        _
      $region48: #{tpu_custom_call.1} parent=11 // pred_fallthru
        _
      // Predicated region
      $region49: #{tpu_custom_call.1} parent=11 // pred_check
        %p510 = pneg %p290
      $region50: #{tpu_custom_call.1} parent=11 // pred_check_branch
        %512 = sbr.rel (%p510) target = $region52
      $region51: #{tpu_custom_call.1} parent=11 // pred_region
        _
      $region52: #{tpu_custom_call.1} parent=11 // pred_fallthru
        _
      // Predicated region
      $region53: #{tpu_custom_call.1} parent=11 // pred_check
        %p513 = pneg %p311
      $region54: #{tpu_custom_call.1} parent=11 // pred_check_branch
        %515 = sbr.rel (%p513) target = $region56
      $region55: #{tpu_custom_call.1} parent=11 // pred_region
        _
      $region56: #{tpu_custom_call.1} parent=11 // pred_fallthru
        _
      // Predicated region
      $region57: #{tpu_custom_call.1} parent=11 // pred_check
        %p516 = pneg %p332
      $region58: #{tpu_custom_call.1} parent=11 // pred_check_branch
        %518 = sbr.rel (%p516) target = $region60
      $region59: #{tpu_custom_call.1} parent=11 // pred_region
        _
      $region60: #{tpu_custom_call.1} parent=11 // pred_fallthru
        _
      // Predicated region
      $region61: #{tpu_custom_call.1} parent=11 // pred_check
        %p519 = pneg %p353
      $region62: #{tpu_custom_call.1} parent=11 // pred_check_branch
        %521 = sbr.rel (%p519) target = $region64
      $region63: #{tpu_custom_call.1} parent=11 // pred_region
        _
      $region64: #{tpu_custom_call.1} parent=11 // pred_fallthru
        _
      // Predicated region
      $region65: #{tpu_custom_call.1} parent=11 // pred_check
        %p522 = pneg %p374
      $region66: #{tpu_custom_call.1} parent=11 // pred_check_branch
        %524 = sbr.rel (%p522) target = $region68
      $region67: #{tpu_custom_call.1} parent=11 // pred_region
        _
      $region68: #{tpu_custom_call.1} parent=11 // pred_fallthru
        _
      // Predicated region
      $region69: #{tpu_custom_call.1} parent=11 // pred_check
        %p525 = pneg %p395
      $region70: #{tpu_custom_call.1} parent=11 // pred_check_branch
        %527 = sbr.rel (%p525) target = $region72
      $region71: #{tpu_custom_call.1} parent=11 // pred_region
        _
      $region72: #{tpu_custom_call.1} parent=11 // pred_fallthru
        _
      // Predicated region
      $region73: #{tpu_custom_call.1} parent=11 // pred_check
        %p528 = pneg %p416
      $region74: #{tpu_custom_call.1} parent=11 // pred_check_branch
        %530 = sbr.rel (%p528) target = $region76
      $region75: #{tpu_custom_call.1} parent=11 // pred_region
        _
      $region76: #{tpu_custom_call.1} parent=11 // pred_fallthru
        _
    $region12: #{tpu_custom_call.1} parent=5 // pred_fallthru
      _
    %p531 = scmp.lt.s32.totalorder %s28, 2
    // Predicated region
    $region77: #{tpu_custom_call.1} parent=5 // pred_check
      %p532 = pneg %p531
    $region78: #{tpu_custom_call.1} parent=5 // pred_check_branch
      %534 = sbr.rel (%p532) target = $region80
    $region79: #{tpu_custom_call.1} parent=5 // pred_region
      // Predicated region
      $region81: #{tpu_custom_call.1} parent=79 // pred_check
        %p535 = pneg %p48
      $region82: #{tpu_custom_call.1} parent=79 // pred_check_branch
        %537 = sbr.rel (%p535) target = $region84
      $region83: #{tpu_custom_call.1} parent=79 // pred_region
        %s538 = smul.u32 32, %s28
        %p539 = scmp.lt.s32.totalorder %s538, 63
        %s540 = scalar_select %p539, %s538, 63
        %s541 = smul.addr %s540, 8
        %s542 = scalar_lea.vmem %s0, %s541
        %s543 = smul.u32 32, %s28
      $region84: #{tpu_custom_call.1} parent=79 // pred_fallthru
        _
      // Predicated region
      $region85: #{tpu_custom_call.1} parent=79 // pred_check
        %p544 = pneg %p74
      $region86: #{tpu_custom_call.1} parent=79 // pred_check_branch
        %546 = sbr.rel (%p544) target = $region88
      $region87: #{tpu_custom_call.1} parent=79 // pred_region
        %s547 = smul.u32 4, %s28
        %p548 = scmp.lt.s32.totalorder %s547, 7
        %s549 = scalar_select %p548, %s547, 7
        %s550 = smul.addr %s549, 8
        %s551 = scalar_lea.vmem %s1, %s550
        %s552 = smul.u32 4, %s28
      $region88: #{tpu_custom_call.1} parent=79 // pred_fallthru
        _
    $region80: #{tpu_custom_call.1} parent=5 // pred_fallthru
      _
    %p553 = scmp.le.s32.totalorder 1, %s28
    %p554 = scmp.lt.s32.totalorder %s28, 3
    %p555 = pnand %p553, %p554
    %p556 = pneg %p555
    // Predicated region
    $region89: #{tpu_custom_call.1} parent=5 // pred_check
      _
    $region90: #{tpu_custom_call.1} parent=5 // pred_check_branch
      %558 = sbr.rel (%p555) target = $region92
    $region91: #{tpu_custom_call.1} parent=5 // pred_region
      %s559 = ssub.s32 %s28, 1
      %s560 = smul.u32 32, %s33
      %p561 = scmp.lt.s32.totalorder %s560, 63
      %s562 = scalar_select %p561, %s560, 63
      %s563 = smul.addr %s562, 8
      %s564 = scalar_lea.vmem %s0, %s563
      %p565 = pneg %p54
      %p566 = pneg %p51
      %s567 = smul.u32 4, %s33
      %p568 = scmp.lt.s32.totalorder %s567, 7
      %s569 = scalar_select %p568, %s567, 7
      %s570 = smul.addr %s569, 8
      %s571 = scalar_lea.vmem %s1, %s570
      %p572 = pneg %p80
      %p573 = pneg %p77
      %p574 = pneg %p101
      %p575 = pneg %p98
      %p576 = pneg %p122
      %p577 = pneg %p119
      %p578 = pneg %p143
      %p579 = pneg %p140
      %p580 = pneg %p164
      %p581 = pneg %p161
      %p582 = pneg %p185
      %p583 = pneg %p182
      %p584 = pneg %p206
      %p585 = pneg %p203
      %p586 = pneg %p227
      %p587 = pneg %p224
      %p588 = pneg %p248
      %p589 = pneg %p245
      %p590 = pneg %p269
      %p591 = pneg %p266
      %p592 = pneg %p290
      %p593 = pneg %p287
      %p594 = pneg %p311
      %p595 = pneg %p308
      %p596 = pneg %p332
      %p597 = pneg %p329
      %p598 = pneg %p353
      %p599 = pneg %p350
      %p600 = pneg %p374
      %p601 = pneg %p371
      %p602 = pneg %p395
      %p603 = pneg %p392
      %p604 = pneg %p416
      %p605 = pneg %p413
      %p606 = pneg %p442
      %p607 = pneg %p439
      %s608 = smul.u32 4, %s33
      %p609 = scmp.lt.s32.totalorder %s608, 7
      %s610 = scalar_select %p609, %s608, 7
      %s611 = smul.addr %s610, 8
      %s612 = scalar_lea.vmem %s18, %s611
      %p613 = pneg %p468
      %p614 = pneg %p465
      %s615 = smul.u32 4, %s33
      %p616 = scmp.lt.s32.totalorder %s615, 7
      %s617 = scalar_select %p616, %s615, 7
      %s618 = smul.addr %s617, 8
      %s619 = scalar_lea.vmem %s19, %s618
      %s620 = smul.u32 32, %s33
      %p621 = scmp.lt.s32.totalorder %s620, 63
      %s622 = scalar_select %p621, %s620, 63
      %s623 = smul.addr %s622, 8
      %s624 = scalar_lea.vmem %s0, %s623
      %s625 = smul.u32 32, %s33
      %s626 = smul.u32 4, %s33
      %p627 = scmp.lt.s32.totalorder %s626, 7
      %s628 = scalar_select %p627, %s626, 7
      %s629 = smul.addr %s628, 8
      %s630 = scalar_lea.vmem %s1, %s629
      %s631 = smul.u32 4, %s33
      %s632 = smul.u32 4, %s33
      %p633 = scmp.lt.s32.totalorder %s632, 7
      %s634 = scalar_select %p633, %s632, 7
      %s635 = smul.addr %s634, 8
      %s636 = scalar_lea.vmem %s18, %s635
      %s637 = smul.u32 4, %s33
      %s638 = smul.u32 4, %s33
      %p639 = scmp.lt.s32.totalorder %s638, 7
      %s640 = scalar_select %p639, %s638, 7
      %s641 = smul.addr %s640, 8
      %s642 = scalar_lea.vmem %s19, %s641
      %s643 = smul.u32 4, %s33
      %v644 = vld [vmem:[%s624] sm:$0xff]
      %v645 = vld [vmem:[%s624 + $0x8] sm:$0xff]
      %v646 = vld [vmem:[%s624 + $0x10] sm:$0xff]
      %v647 = vld [vmem:[%s624 + $0x18] sm:$0xff]
      %v648 = vld [vmem:[%s624 + $0x20] sm:$0xff]
      %v649 = vld [vmem:[%s624 + $0x28] sm:$0xff]
      %v650 = vld [vmem:[%s624 + $0x30] sm:$0xff]
      %v651 = vld [vmem:[%s624 + $0x38] sm:$0xff]
      %v652 = vld [vmem:[%s624 + $0x40] sm:$0xff]
      %v653 = vld [vmem:[%s624 + $0x48] sm:$0xff]
      %v654 = vld [vmem:[%s624 + $0x50] sm:$0xff]
      %v655 = vld [vmem:[%s624 + $0x58] sm:$0xff]
      %v656 = vld [vmem:[%s624 + $0x60] sm:$0xff]
      %v657 = vld [vmem:[%s624 + $0x68] sm:$0xff]
      %v658 = vld [vmem:[%s624 + $0x70] sm:$0xff]
      %v659 = vld [vmem:[%s624 + $0x78] sm:$0xff]
      %v660 = vld [vmem:[%s624 + $0x80] sm:$0xff]
      %v661 = vld [vmem:[%s624 + $0x88] sm:$0xff]
      %v662 = vld [vmem:[%s624 + $0x90] sm:$0xff]
      %v663 = vld [vmem:[%s624 + $0x98] sm:$0xff]
      %v664 = vld [vmem:[%s624 + $0xa0] sm:$0xff]
      %v665 = vld [vmem:[%s624 + $0xa8] sm:$0xff]
      %v666 = vld [vmem:[%s624 + $0xb0] sm:$0xff]
      %v667 = vld [vmem:[%s624 + $0xb8] sm:$0xff]
      %v668 = vld [vmem:[%s624 + $0xc0] sm:$0xff]
      %v669 = vld [vmem:[%s624 + $0xc8] sm:$0xff]
      %v670 = vld [vmem:[%s624 + $0xd0] sm:$0xff]
      %v671 = vld [vmem:[%s624 + $0xd8] sm:$0xff]
      %v672 = vld [vmem:[%s624 + $0xe0] sm:$0xff]
      %v673 = vld [vmem:[%s624 + $0xe8] sm:$0xff]
      %v674 = vld [vmem:[%s624 + $0xf0] sm:$0xff]
      %v675 = vld [vmem:[%s624 + $0xf8] sm:$0xff]
      %v676 = vld [vmem:[%s2] sm:$0xff]
      %v677 = vld [vmem:[%s2 + $0x8] sm:$0xff]
      %v678 = vld [vmem:[%s2 + $0x10] sm:$0xff]
      %v679 = vld [vmem:[%s2 + $0x18] sm:$0xff]
      %v680 = vld [vmem:[%s3] sm:$0x1]
      %v682 = vlaneseq
      %v683 = vshrl.u32 %v682, 7
      %v684 = vsub.s32 0, %v683
      %v685 = vrot.slane %v680, %v684
      %vm687 = vcmask 261120
      %v689 = vsel %vm687, %v644, 0
      %v692 = vsel %vm687, %v645, 0
      %v695 = vsel %vm687, %v646, 0
      %v698 = vsel %vm687, %v647, 0
      %v701 = vsel %vm687, %v648, 0
      %v704 = vsel %vm687, %v649, 0
      %v707 = vsel %vm687, %v650, 0
      %v710 = vsel %vm687, %v651, 0
      %v713 = vsel %vm687, %v652, 0
      %v716 = vsel %vm687, %v653, 0
      %v719 = vsel %vm687, %v654, 0
      %v722 = vsel %vm687, %v655, 0
      %v725 = vsel %vm687, %v656, 0
      %v728 = vsel %vm687, %v657, 0
      %v731 = vsel %vm687, %v658, 0
      %v734 = vsel %vm687, %v659, 0
      %v737 = vsel %vm687, %v660, 0
      %v740 = vsel %vm687, %v661, 0
      %v743 = vsel %vm687, %v662, 0
      %v746 = vsel %vm687, %v663, 0
      %v749 = vsel %vm687, %v664, 0
      %v752 = vsel %vm687, %v665, 0
      %v755 = vsel %vm687, %v666, 0
      %v758 = vsel %vm687, %v667, 0
      %v761 = vsel %vm687, %v668, 0
      %v764 = vsel %vm687, %v669, 0
      %v767 = vsel %vm687, %v670, 0
      %v770 = vsel %vm687, %v671, 0
      %v773 = vsel %vm687, %v672, 0
      %v776 = vsel %vm687, %v673, 0
      %v779 = vsel %vm687, %v674, 0
      %v782 = vsel %vm687, %v675, 0
      %784 = vmatprep.subr.mxu0 0.0
      %785 = vmatpush1.msra.mxu0 %v676
      %786 = vmatprep.subr.mxu0 0.0
      %787 = vmatpush1.msra.mxu0 %v677
      %788 = vmatprep.subr.mxu0 0.0
      %789 = vmatpush1.msra.mxu0 %v678
      %790 = vmatprep.subr.mxu0 0.0
      %791 = vmatpush1.msra.mxu0 %v679
      %792 = vmatprep.subr.mxu0 0.0
      %793 = vmatpush1.msra.mxu0 0.0
      %794 = vmatprep.subr.mxu0 0.0
      %795 = vmatpush1.msra.mxu0 0.0
      %796 = vmatprep.subr.mxu0 0.0
      %797 = vmatpush1.msra.mxu0 0.0
      %798 = vmatprep.subr.mxu0 0.0
      %799 = vmatpush1.msra.mxu0 0.0
      %800 = vmatprep.subr.mxu0 0.0
      %801 = vmatpush1.msra.mxu0 0.0
      %802 = vmatprep.subr.mxu0 0.0
      %803 = vmatpush1.msra.mxu0 0.0
      %804 = vmatprep.subr.mxu0 0.0
      %805 = vmatpush1.msra.mxu0 0.0
      %806 = vmatprep.subr.mxu0 0.0
      %807 = vmatpush1.msra.mxu0 0.0
      %808 = vmatprep.subr.mxu0 0.0
      %809 = vmatpush1.msra.mxu0 0.0
      %810 = vmatprep.subr.mxu0 0.0
      %811 = vmatpush1.msra.mxu0 0.0
      %812 = vmatprep.subr.mxu0 0.0
      %813 = vmatpush1.msra.mxu0 0.0
      %814 = vmatprep.subr.mxu0 0.0
      %815 = vmatpush1.msra.mxu0 0.0
      %816 = vmatprep.subr.mxu0 0.0
      %817 = vmatpush1.msra.mxu0 0.0
      %818 = vmatprep.subr.mxu0 0.0
      %819 = vmatpush1.msra.mxu0 0.0
      %820 = vmatprep.subr.mxu0 0.0
      %821 = vmatpush1.msra.mxu0 0.0
      %822 = vmatprep.subr.mxu0 0.0
      %823 = vmatpush1.msra.mxu0 0.0
      %824 = vmatprep.subr.mxu0 0.0
      %825 = vmatpush1.msra.mxu0 0.0
      %826 = vmatprep.subr.mxu0 0.0
      %827 = vmatpush1.msra.mxu0 0.0
      %828 = vmatprep.subr.mxu0 0.0
      %829 = vmatpush1.msra.mxu0 0.0
      %830 = vmatprep.subr.mxu0 0.0
      %831 = vmatpush1.msra.mxu0 0.0
      %832 = vmatprep.subr.mxu0 0.0
      %833 = vmatpush1.msra.mxu0 0.0
      %834 = vmatprep.subr.mxu0 0.0
      %835 = vmatpush1.msra.mxu0 0.0
      %836 = vmatprep.subr.mxu0 0.0
      %837 = vmatpush1.msra.mxu0 0.0
      %838 = vmatprep.subr.mxu0 0.0
      %839 = vmatpush1.msra.mxu0 0.0
      %840 = vmatprep.subr.mxu0 0.0
      %841 = vmatpush1.msra.mxu0 0.0
      %842 = vmatprep.subr.mxu0 0.0
      %843 = vmatpush1.msra.mxu0 0.0
      %844 = vmatprep.subr.mxu0 0.0
      %845 = vmatpush1.msra.mxu0 0.0
      %846 = vmatprep.subr.mxu0 0.0
      %847 = vmatpush1.msra.mxu0 0.0
      %848 = vmatprep.mubr.f32.mxu0 0.0
      %849 = vmatmul.mubr.f32.gmra.mrb[0].mxu0 %v689
      %v850 = vpop.f32.mrb[0].mxu0
      %v851 = vadd.f32 %v685, %v850
      %v852 = vpop.f32.mrb[0].mxu0
      %853 = vmatprep.mubr.f32.mxu0 0.0
      %854 = vmatmul.mubr.f32.gmra.mrb[0].mxu0 %v692
      %v855 = vpop.f32.mrb[0].mxu0
      %v856 = vadd.f32 %v685, %v855
      %v857 = vpop.f32.mrb[0].mxu0
      %858 = vmatprep.mubr.f32.mxu0 0.0
      %859 = vmatmul.mubr.f32.gmra.mrb[0].mxu0 %v695
      %v860 = vpop.f32.mrb[0].mxu0
      %v861 = vadd.f32 %v685, %v860
      %v862 = vpop.f32.mrb[0].mxu0
      %863 = vmatprep.mubr.f32.mxu0 0.0
      %864 = vmatmul.mubr.f32.gmra.mrb[0].mxu0 %v698
      %v865 = vpop.f32.mrb[0].mxu0
      %v866 = vadd.f32 %v685, %v865
      %v867 = vpop.f32.mrb[0].mxu0
      %868 = vmatprep.mubr.f32.mxu0 0.0
      %869 = vmatmul.mubr.f32.gmra.mrb[0].mxu0 %v701
      %v870 = vpop.f32.mrb[0].mxu0
      %v871 = vadd.f32 %v685, %v870
      %v872 = vpop.f32.mrb[0].mxu0
      %873 = vmatprep.mubr.f32.mxu0 0.0
      %874 = vmatmul.mubr.f32.gmra.mrb[0].mxu0 %v704
      %v875 = vpop.f32.mrb[0].mxu0
      %v876 = vadd.f32 %v685, %v875
      %v877 = vpop.f32.mrb[0].mxu0
      %878 = vmatprep.mubr.f32.mxu0 0.0
      %879 = vmatmul.mubr.f32.gmra.mrb[0].mxu0 %v707
      %v880 = vpop.f32.mrb[0].mxu0
      %v881 = vadd.f32 %v685, %v880
      %v882 = vpop.f32.mrb[0].mxu0
      %883 = vmatprep.mubr.f32.mxu0 0.0
      %884 = vmatmul.mubr.f32.gmra.mrb[0].mxu0 %v710
      %v885 = vpop.f32.mrb[0].mxu0
      %v886 = vadd.f32 %v685, %v885
      %v887 = vpop.f32.mrb[0].mxu0
      %888 = vmatprep.mubr.f32.mxu0 0.0
      %889 = vmatmul.mubr.f32.gmra.mrb[0].mxu0 %v713
      %v890 = vpop.f32.mrb[0].mxu0
      %v891 = vadd.f32 %v685, %v890
      %v892 = vpop.f32.mrb[0].mxu0
      %893 = vmatprep.mubr.f32.mxu0 0.0
      %894 = vmatmul.mubr.f32.gmra.mrb[0].mxu0 %v716
      %v895 = vpop.f32.mrb[0].mxu0
      %v896 = vadd.f32 %v685, %v895
      %v897 = vpop.f32.mrb[0].mxu0
      %898 = vmatprep.mubr.f32.mxu0 0.0
      %899 = vmatmul.mubr.f32.gmra.mrb[0].mxu0 %v719
      %v900 = vpop.f32.mrb[0].mxu0
      %v901 = vadd.f32 %v685, %v900
      %v902 = vpop.f32.mrb[0].mxu0
      %903 = vmatprep.mubr.f32.mxu0 0.0
      %904 = vmatmul.mubr.f32.gmra.mrb[0].mxu0 %v722
      %v905 = vpop.f32.mrb[0].mxu0
      %v906 = vadd.f32 %v685, %v905
      %v907 = vpop.f32.mrb[0].mxu0
      %908 = vmatprep.mubr.f32.mxu0 0.0
      %909 = vmatmul.mubr.f32.gmra.mrb[0].mxu0 %v725
      %v910 = vpop.f32.mrb[0].mxu0
      %v911 = vadd.f32 %v685, %v910
      %v912 = vpop.f32.mrb[0].mxu0
      %913 = vmatprep.mubr.f32.mxu0 0.0
      %914 = vmatmul.mubr.f32.gmra.mrb[0].mxu0 %v728
      %v915 = vpop.f32.mrb[0].mxu0
      %v916 = vadd.f32 %v685, %v915
      %v917 = vpop.f32.mrb[0].mxu0
      %918 = vmatprep.mubr.f32.mxu0 0.0
      %919 = vmatmul.mubr.f32.gmra.mrb[0].mxu0 %v731
      %v920 = vpop.f32.mrb[0].mxu0
      %v921 = vadd.f32 %v685, %v920
      %v922 = vpop.f32.mrb[0].mxu0
      %923 = vmatprep.mubr.f32.mxu0 0.0
      %924 = vmatmul.mubr.f32.gmra.mrb[0].mxu0 %v734
      %v925 = vpop.f32.mrb[0].mxu0
      %v926 = vadd.f32 %v685, %v925
      %v927 = vpop.f32.mrb[0].mxu0
      %928 = vmatprep.mubr.f32.mxu0 0.0
      %929 = vmatmul.mubr.f32.gmra.mrb[0].mxu0 %v737
      %v930 = vpop.f32.mrb[0].mxu0
      %v931 = vadd.f32 %v685, %v930
      %v932 = vpop.f32.mrb[0].mxu0
      %933 = vmatprep.mubr.f32.mxu0 0.0
      %934 = vmatmul.mubr.f32.gmra.mrb[0].mxu0 %v740
      %v935 = vpop.f32.mrb[0].mxu0
      %v936 = vadd.f32 %v685, %v935
      %v937 = vpop.f32.mrb[0].mxu0
      %938 = vmatprep.mubr.f32.mxu0 0.0
      %939 = vmatmul.mubr.f32.gmra.mrb[0].mxu0 %v743
      %v940 = vpop.f32.mrb[0].mxu0
      %v941 = vadd.f32 %v685, %v940
      %v942 = vpop.f32.mrb[0].mxu0
      %943 = vmatprep.mubr.f32.mxu0 0.0
      %944 = vmatmul.mubr.f32.gmra.mrb[0].mxu0 %v746
      %v945 = vpop.f32.mrb[0].mxu0
      %v946 = vadd.f32 %v685, %v945
      %v947 = vpop.f32.mrb[0].mxu0
      %948 = vmatprep.mubr.f32.mxu0 0.0
      %949 = vmatmul.mubr.f32.gmra.mrb[0].mxu0 %v749
      %v950 = vpop.f32.mrb[0].mxu0
      %v951 = vadd.f32 %v685, %v950
      %v952 = vpop.f32.mrb[0].mxu0
      %953 = vmatprep.mubr.f32.mxu0 0.0
      %954 = vmatmul.mubr.f32.gmra.mrb[0].mxu0 %v752
      %v955 = vpop.f32.mrb[0].mxu0
      %v956 = vadd.f32 %v685, %v955
      %v957 = vpop.f32.mrb[0].mxu0
      %958 = vmatprep.mubr.f32.mxu0 0.0
      %959 = vmatmul.mubr.f32.gmra.mrb[0].mxu0 %v755
      %v960 = vpop.f32.mrb[0].mxu0
      %v961 = vadd.f32 %v685, %v960
      %v962 = vpop.f32.mrb[0].mxu0
      %963 = vmatprep.mubr.f32.mxu0 0.0
      %964 = vmatmul.mubr.f32.gmra.mrb[0].mxu0 %v758
      %v965 = vpop.f32.mrb[0].mxu0
      %v966 = vadd.f32 %v685, %v965
      %v967 = vpop.f32.mrb[0].mxu0
      %968 = vmatprep.mubr.f32.mxu0 0.0
      %969 = vmatmul.mubr.f32.gmra.mrb[0].mxu0 %v761
      %v970 = vpop.f32.mrb[0].mxu0
      %v971 = vadd.f32 %v685, %v970
      %v972 = vpop.f32.mrb[0].mxu0
      %973 = vmatprep.mubr.f32.mxu0 0.0
      %974 = vmatmul.mubr.f32.gmra.mrb[0].mxu0 %v764
      %v975 = vpop.f32.mrb[0].mxu0
      %v976 = vadd.f32 %v685, %v975
      %v977 = vpop.f32.mrb[0].mxu0
      %978 = vmatprep.mubr.f32.mxu0 0.0
      %979 = vmatmul.mubr.f32.gmra.mrb[0].mxu0 %v767
      %v980 = vpop.f32.mrb[0].mxu0
      %v981 = vadd.f32 %v685, %v980
      %v982 = vpop.f32.mrb[0].mxu0
      %983 = vmatprep.mubr.f32.mxu0 0.0
      %984 = vmatmul.mubr.f32.gmra.mrb[0].mxu0 %v770
      %v985 = vpop.f32.mrb[0].mxu0
      %v986 = vadd.f32 %v685, %v985
      %v987 = vpop.f32.mrb[0].mxu0
      %988 = vmatprep.mubr.f32.mxu0 0.0
      %989 = vmatmul.mubr.f32.gmra.mrb[0].mxu0 %v773
      %v990 = vpop.f32.mrb[0].mxu0
      %v991 = vadd.f32 %v685, %v990
      %v992 = vpop.f32.mrb[0].mxu0
      %993 = vmatprep.mubr.f32.mxu0 0.0
      %994 = vmatmul.mubr.f32.gmra.mrb[0].mxu0 %v776
      %v995 = vpop.f32.mrb[0].mxu0
      %v996 = vadd.f32 %v685, %v995
      %v997 = vpop.f32.mrb[0].mxu0
      %998 = vmatprep.mubr.f32.mxu0 0.0
      %999 = vmatmul.mubr.f32.gmra.mrb[0].mxu0 %v779
      %v1000 = vpop.f32.mrb[0].mxu0
      %v1001 = vadd.f32 %v685, %v1000
      %v1002 = vpop.f32.mrb[0].mxu0
      %1003 = vmatprep.mubr.f32.mxu0 0.0
      %1004 = vmatmul.mubr.f32.gmra.mrb[0].mxu0 %v782
      %v1005 = vpop.f32.mrb[0].mxu0
      %v1006 = vadd.f32 %v685, %v1005
      %v1007 = vpop.f32.mrb[0].mxu0
      %1008 = vdwg.mxu0
      %vm1009 = vcmp.ge.f32.partialorder %v851, 0.0
      %vm1010 = vcmp.ge.f32.partialorder %v856, 0.0
      %vm1011 = vcmp.ge.f32.partialorder %v861, 0.0
      %vm1012 = vcmp.ge.f32.partialorder %v866, 0.0
      %vm1013 = vcmp.ge.f32.partialorder %v871, 0.0
      %vm1014 = vcmp.ge.f32.partialorder %v876, 0.0
      %vm1015 = vcmp.ge.f32.partialorder %v881, 0.0
      %vm1016 = vcmp.ge.f32.partialorder %v886, 0.0
      %vm1017 = vcmp.ge.f32.partialorder %v891, 0.0
      %vm1018 = vcmp.ge.f32.partialorder %v896, 0.0
      %vm1019 = vcmp.ge.f32.partialorder %v901, 0.0
      %vm1020 = vcmp.ge.f32.partialorder %v906, 0.0
      %vm1021 = vcmp.ge.f32.partialorder %v911, 0.0
      %vm1022 = vcmp.ge.f32.partialorder %v916, 0.0
      %vm1023 = vcmp.ge.f32.partialorder %v921, 0.0
      %vm1024 = vcmp.ge.f32.partialorder %v926, 0.0
      %vm1025 = vcmp.ge.f32.partialorder %v931, 0.0
      %vm1026 = vcmp.ge.f32.partialorder %v936, 0.0
      %vm1027 = vcmp.ge.f32.partialorder %v941, 0.0
      %vm1028 = vcmp.ge.f32.partialorder %v946, 0.0
      %vm1029 = vcmp.ge.f32.partialorder %v951, 0.0
      %vm1030 = vcmp.ge.f32.partialorder %v956, 0.0
      %vm1031 = vcmp.ge.f32.partialorder %v961, 0.0
      %vm1032 = vcmp.ge.f32.partialorder %v966, 0.0
      %vm1033 = vcmp.ge.f32.partialorder %v971, 0.0
      %vm1034 = vcmp.ge.f32.partialorder %v976, 0.0
      %vm1035 = vcmp.ge.f32.partialorder %v981, 0.0
      %vm1036 = vcmp.ge.f32.partialorder %v986, 0.0
      %vm1037 = vcmp.ge.f32.partialorder %v991, 0.0
      %vm1038 = vcmp.ge.f32.partialorder %v996, 0.0
      %vm1039 = vcmp.ge.f32.partialorder %v1001, 0.0
      %vm1040 = vcmp.ge.f32.partialorder %v1006, 0.0
      %v1041 = vmul.f32 %v851, 0.2
      %v1042 = vmul.f32 %v856, 0.2
      %v1043 = vmul.f32 %v861, 0.2
      %v1044 = vmul.f32 %v866, 0.2
      %v1045 = vmul.f32 %v871, 0.2
      %v1046 = vmul.f32 %v876, 0.2
      %v1047 = vmul.f32 %v881, 0.2
      %v1048 = vmul.f32 %v886, 0.2
      %v1049 = vmul.f32 %v891, 0.2
      %v1050 = vmul.f32 %v896, 0.2
      %v1051 = vmul.f32 %v901, 0.2
      %v1052 = vmul.f32 %v906, 0.2
      %v1053 = vmul.f32 %v911, 0.2
      %v1054 = vmul.f32 %v916, 0.2
      %v1055 = vmul.f32 %v921, 0.2
      %v1056 = vmul.f32 %v926, 0.2
      %v1057 = vmul.f32 %v931, 0.2
      %v1058 = vmul.f32 %v936, 0.2
      %v1059 = vmul.f32 %v941, 0.2
      %v1060 = vmul.f32 %v946, 0.2
      %v1061 = vmul.f32 %v951, 0.2
      %v1062 = vmul.f32 %v956, 0.2
      %v1063 = vmul.f32 %v961, 0.2
      %v1064 = vmul.f32 %v966, 0.2
      %v1065 = vmul.f32 %v971, 0.2
      %v1066 = vmul.f32 %v976, 0.2
      %v1067 = vmul.f32 %v981, 0.2
      %v1068 = vmul.f32 %v986, 0.2
      %v1069 = vmul.f32 %v991, 0.2
      %v1070 = vmul.f32 %v996, 0.2
      %v1071 = vmul.f32 %v1001, 0.2
      %v1072 = vmul.f32 %v1006, 0.2
      %v1073 = vsel %vm1009, %v851, %v1041
      %v1074 = vsel %vm1010, %v856, %v1042
      %v1075 = vsel %vm1011, %v861, %v1043
      %v1076 = vsel %vm1012, %v866, %v1044
      %v1077 = vsel %vm1013, %v871, %v1045
      %v1078 = vsel %vm1014, %v876, %v1046
      %v1079 = vsel %vm1015, %v881, %v1047
      %v1080 = vsel %vm1016, %v886, %v1048
      %v1081 = vsel %vm1017, %v891, %v1049
      %v1082 = vsel %vm1018, %v896, %v1050
      %v1083 = vsel %vm1019, %v901, %v1051
      %v1084 = vsel %vm1020, %v906, %v1052
      %v1085 = vsel %vm1021, %v911, %v1053
      %v1086 = vsel %vm1022, %v916, %v1054
      %v1087 = vsel %vm1023, %v921, %v1055
      %v1088 = vsel %vm1024, %v926, %v1056
      %v1089 = vsel %vm1025, %v931, %v1057
      %v1090 = vsel %vm1026, %v936, %v1058
      %v1091 = vsel %vm1027, %v941, %v1059
      %v1092 = vsel %vm1028, %v946, %v1060
      %v1093 = vsel %vm1029, %v951, %v1061
      %v1094 = vsel %vm1030, %v956, %v1062
      %v1095 = vsel %vm1031, %v961, %v1063
      %v1096 = vsel %vm1032, %v966, %v1064
      %v1097 = vsel %vm1033, %v971, %v1065
      %v1098 = vsel %vm1034, %v976, %v1066
      %v1099 = vsel %vm1035, %v981, %v1067
      %v1100 = vsel %vm1036, %v986, %v1068
      %v1101 = vsel %vm1037, %v991, %v1069
      %v1102 = vsel %vm1038, %v996, %v1070
      %v1103 = vsel %vm1039, %v1001, %v1071
      %v1104 = vsel %vm1040, %v1006, %v1072
      %v1105 = vld [vmem:[%s4] sm:$0xff]
      %v1106 = vld [vmem:[%s4 + $0x8] sm:$0xff]
      %v1107 = vld [vmem:[%s4 + $0x10] sm:$0xff]
      %v1108 = vld [vmem:[%s4 + $0x18] sm:$0xff]
      %v1109 = vld [vmem:[%s4 + $0x20] sm:$0xff]
      %v1110 = vld [vmem:[%s4 + $0x28] sm:$0xff]
      %v1111 = vld [vmem:[%s4 + $0x30] sm:$0xff]
      %v1112 = vld [vmem:[%s4 + $0x38] sm:$0xff]
      %v1113 = vld [vmem:[%s4 + $0x40] sm:$0xff]
      %v1114 = vld [vmem:[%s4 + $0x48] sm:$0xff]
      %v1115 = vld [vmem:[%s4 + $0x50] sm:$0xff]
      %v1116 = vld [vmem:[%s4 + $0x58] sm:$0xff]
      %v1117 = vld [vmem:[%s4 + $0x60] sm:$0xf]
      %v1118 = vld [vmem:[%s5] sm:$0x1]
      %v1120 = vlaneseq
      %v1121 = vshrl.u32 %v1120, 7
      %v1122 = vsub.s32 0, %v1121
      %v1123 = vrot.slane %v1118, %v1122
      %vm1125 = vcmask 818176
      %v1127 = vsel %vm1125, %v1073, 0
      %v1130 = vsel %vm1125, %v1074, 0
      %v1133 = vsel %vm1125, %v1075, 0
      %v1136 = vsel %vm1125, %v1076, 0
      %v1139 = vsel %vm1125, %v1077, 0
      %v1142 = vsel %vm1125, %v1078, 0
      %v1145 = vsel %vm1125, %v1079, 0
      %v1148 = vsel %vm1125, %v1080, 0
      %v1151 = vsel %vm1125, %v1081, 0
      %v1154 = vsel %vm1125, %v1082, 0
      %v1157 = vsel %vm1125, %v1083, 0
      %v1160 = vsel %vm1125, %v1084, 0
      %v1163 = vsel %vm1125, %v1085, 0
      %v1166 = vsel %vm1125, %v1086, 0
      %v1169 = vsel %vm1125, %v1087, 0
      %v1172 = vsel %vm1125, %v1088, 0
      %v1175 = vsel %vm1125, %v1089, 0
      %v1178 = vsel %vm1125, %v1090, 0
      %v1181 = vsel %vm1125, %v1091, 0
      %v1184 = vsel %vm1125, %v1092, 0
      %v1187 = vsel %vm1125, %v1093, 0
      %v1190 = vsel %vm1125, %v1094, 0
      %v1193 = vsel %vm1125, %v1095, 0
      %v1196 = vsel %vm1125, %v1096, 0
      %v1199 = vsel %vm1125, %v1097, 0
      %v1202 = vsel %vm1125, %v1098, 0
      %v1205 = vsel %vm1125, %v1099, 0
      %v1208 = vsel %vm1125, %v1100, 0
      %v1211 = vsel %vm1125, %v1101, 0
      %v1214 = vsel %vm1125, %v1102, 0
      %v1217 = vsel %vm1125, %v1103, 0
      %v1220 = vsel %vm1125, %v1104, 0
      %vm1222 = vcmask 1043456
      %v1224 = vsel %vm1222, %v1117, 0
      %1226 = vmatprep.subr.mxu0 0.0
      %1227 = vmatpush1.msra.mxu0 %v1105
      %1228 = vmatprep.subr.mxu0 0.0
      %1229 = vmatpush1.msra.mxu0 %v1106
      %1230 = vmatprep.subr.mxu0 0.0
      %1231 = vmatpush1.msra.mxu0 %v1107
      %1232 = vmatprep.subr.mxu0 0.0
      %1233 = vmatpush1.msra.mxu0 %v1108
      %1234 = vmatprep.subr.mxu0 0.0
      %1235 = vmatpush1.msra.mxu0 %v1109
      %1236 = vmatprep.subr.mxu0 0.0
      %1237 = vmatpush1.msra.mxu0 %v1110
      %1238 = vmatprep.subr.mxu0 0.0
      %1239 = vmatpush1.msra.mxu0 %v1111
      %1240 = vmatprep.subr.mxu0 0.0
      %1241 = vmatpush1.msra.mxu0 %v1112
      %1242 = vmatprep.subr.mxu0 0.0
      %1243 = vmatpush1.msra.mxu0 %v1113
      %1244 = vmatprep.subr.mxu0 0.0
      %1245 = vmatpush1.msra.mxu0 %v1114
      %1246 = vmatprep.subr.mxu0 0.0
      %1247 = vmatpush1.msra.mxu0 %v1115
      %1248 = vmatprep.subr.mxu0 0.0
      %1249 = vmatpush1.msra.mxu0 %v1116
      %1250 = vmatprep.subr.mxu0 0.0
      %1251 = vmatpush1.msra.mxu0 %v1224
      %1252 = vmatprep.subr.mxu0 0.0
      %1253 = vmatpush1.msra.mxu0 0.0
      %1254 = vmatprep.subr.mxu0 0.0
      %1255 = vmatpush1.msra.mxu0 0.0
      %1256 = vmatprep.subr.mxu0 0.0
      %1257 = vmatpush1.msra.mxu0 0.0
      %1258 = vmatprep.subr.mxu0 0.0
      %1259 = vmatpush1.msra.mxu0 0.0
      %1260 = vmatprep.subr.mxu0 0.0
      %1261 = vmatpush1.msra.mxu0 0.0
      %1262 = vmatprep.subr.mxu0 0.0
      %1263 = vmatpush1.msra.mxu0 0.0
      %1264 = vmatprep.subr.mxu0 0.0
      %1265 = vmatpush1.msra.mxu0 0.0
      %1266 = vmatprep.subr.mxu0 0.0
      %1267 = vmatpush1.msra.mxu0 0.0
      %1268 = vmatprep.subr.mxu0 0.0
      %1269 = vmatpush1.msra.mxu0 0.0
      %1270 = vmatprep.subr.mxu0 0.0
      %1271 = vmatpush1.msra.mxu0 0.0
      %1272 = vmatprep.subr.mxu0 0.0
      %1273 = vmatpush1.msra.mxu0 0.0
      %1274 = vmatprep.subr.mxu0 0.0
      %1275 = vmatpush1.msra.mxu0 0.0
      %1276 = vmatprep.subr.mxu0 0.0
      %1277 = vmatpush1.msra.mxu0 0.0
      %1278 = vmatprep.subr.mxu0 0.0
      %1279 = vmatpush1.msra.mxu0 0.0
      %1280 = vmatprep.subr.mxu0 0.0
      %1281 = vmatpush1.msra.mxu0 0.0
      %1282 = vmatprep.subr.mxu0 0.0
      %1283 = vmatpush1.msra.mxu0 0.0
      %1284 = vmatprep.subr.mxu0 0.0
      %1285 = vmatpush1.msra.mxu0 0.0
      %1286 = vmatprep.subr.mxu0 0.0
      %1287 = vmatpush1.msra.mxu0 0.0
      %1288 = vmatprep.subr.mxu0 0.0
      %1289 = vmatpush1.msra.mxu0 0.0
      %1290 = vmatprep.mubr.f32.mxu0 0.0
      %1291 = vmatmul.mubr.f32.gmra.mrb[0].mxu0 %v1127
      %v1292 = vpop.f32.mrb[0].mxu0
      %v1293 = vadd.f32 %v1123, %v1292
      %v1294 = vpop.f32.mrb[0].mxu0
      %1295 = vmatprep.mubr.f32.mxu0 0.0
      %1296 = vmatmul.mubr.f32.gmra.mrb[0].mxu0 %v1130
      %v1297 = vpop.f32.mrb[0].mxu0
      %v1298 = vadd.f32 %v1123, %v1297
      %v1299 = vpop.f32.mrb[0].mxu0
      %1300 = vmatprep.mubr.f32.mxu0 0.0
      %1301 = vmatmul.mubr.f32.gmra.mrb[0].mxu0 %v1133
      %v1302 = vpop.f32.mrb[0].mxu0
      %v1303 = vadd.f32 %v1123, %v1302
      %v1304 = vpop.f32.mrb[0].mxu0
      %1305 = vmatprep.mubr.f32.mxu0 0.0
      %1306 = vmatmul.mubr.f32.gmra.mrb[0].mxu0 %v1136
      %v1307 = vpop.f32.mrb[0].mxu0
      %v1308 = vadd.f32 %v1123, %v1307
      %v1309 = vpop.f32.mrb[0].mxu0
      %1310 = vmatprep.mubr.f32.mxu0 0.0
      %1311 = vmatmul.mubr.f32.gmra.mrb[0].mxu0 %v1139
      %v1312 = vpop.f32.mrb[0].mxu0
      %v1313 = vadd.f32 %v1123, %v1312
      %v1314 = vpop.f32.mrb[0].mxu0
      %1315 = vmatprep.mubr.f32.mxu0 0.0
      %1316 = vmatmul.mubr.f32.gmra.mrb[0].mxu0 %v1142
      %v1317 = vpop.f32.mrb[0].mxu0
      %v1318 = vadd.f32 %v1123, %v1317
      %v1319 = vpop.f32.mrb[0].mxu0
      %1320 = vmatprep.mubr.f32.mxu0 0.0
      %1321 = vmatmul.mubr.f32.gmra.mrb[0].mxu0 %v1145
      %v1322 = vpop.f32.mrb[0].mxu0
      %v1323 = vadd.f32 %v1123, %v1322
      %v1324 = vpop.f32.mrb[0].mxu0
      %1325 = vmatprep.mubr.f32.mxu0 0.0
      %1326 = vmatmul.mubr.f32.gmra.mrb[0].mxu0 %v1148
      %v1327 = vpop.f32.mrb[0].mxu0
      %v1328 = vadd.f32 %v1123, %v1327
      %v1329 = vpop.f32.mrb[0].mxu0
      %1330 = vmatprep.mubr.f32.mxu0 0.0
      %1331 = vmatmul.mubr.f32.gmra.mrb[0].mxu0 %v1151
      %v1332 = vpop.f32.mrb[0].mxu0
      %v1333 = vadd.f32 %v1123, %v1332
      %v1334 = vpop.f32.mrb[0].mxu0
      %1335 = vmatprep.mubr.f32.mxu0 0.0
      %1336 = vmatmul.mubr.f32.gmra.mrb[0].mxu0 %v1154
      %v1337 = vpop.f32.mrb[0].mxu0
      %v1338 = vadd.f32 %v1123, %v1337
      %v1339 = vpop.f32.mrb[0].mxu0
      %1340 = vmatprep.mubr.f32.mxu0 0.0
      %1341 = vmatmul.mubr.f32.gmra.mrb[0].mxu0 %v1157
      %v1342 = vpop.f32.mrb[0].mxu0
      %v1343 = vadd.f32 %v1123, %v1342
      %v1344 = vpop.f32.mrb[0].mxu0
      %1345 = vmatprep.mubr.f32.mxu0 0.0
      %1346 = vmatmul.mubr.f32.gmra.mrb[0].mxu0 %v1160
      %v1347 = vpop.f32.mrb[0].mxu0
      %v1348 = vadd.f32 %v1123, %v1347
      %v1349 = vpop.f32.mrb[0].mxu0
      %1350 = vmatprep.mubr.f32.mxu0 0.0
      %1351 = vmatmul.mubr.f32.gmra.mrb[0].mxu0 %v1163
      %v1352 = vpop.f32.mrb[0].mxu0
      %v1353 = vadd.f32 %v1123, %v1352
      %v1354 = vpop.f32.mrb[0].mxu0
      %1355 = vmatprep.mubr.f32.mxu0 0.0
      %1356 = vmatmul.mubr.f32.gmra.mrb[0].mxu0 %v1166
      %v1357 = vpop.f32.mrb[0].mxu0
      %v1358 = vadd.f32 %v1123, %v1357
      %v1359 = vpop.f32.mrb[0].mxu0
      %1360 = vmatprep.mubr.f32.mxu0 0.0
      %1361 = vmatmul.mubr.f32.gmra.mrb[0].mxu0 %v1169
      %v1362 = vpop.f32.mrb[0].mxu0
      %v1363 = vadd.f32 %v1123, %v1362
      %v1364 = vpop.f32.mrb[0].mxu0
      %1365 = vmatprep.mubr.f32.mxu0 0.0
      %1366 = vmatmul.mubr.f32.gmra.mrb[0].mxu0 %v1172
      %v1367 = vpop.f32.mrb[0].mxu0
      %v1368 = vadd.f32 %v1123, %v1367
      %v1369 = vpop.f32.mrb[0].mxu0
      %1370 = vmatprep.mubr.f32.mxu0 0.0
      %1371 = vmatmul.mubr.f32.gmra.mrb[0].mxu0 %v1175
      %v1372 = vpop.f32.mrb[0].mxu0
      %v1373 = vadd.f32 %v1123, %v1372
      %v1374 = vpop.f32.mrb[0].mxu0
      %1375 = vmatprep.mubr.f32.mxu0 0.0
      %1376 = vmatmul.mubr.f32.gmra.mrb[0].mxu0 %v1178
      %v1377 = vpop.f32.mrb[0].mxu0
      %v1378 = vadd.f32 %v1123, %v1377
      %v1379 = vpop.f32.mrb[0].mxu0
      %1380 = vmatprep.mubr.f32.mxu0 0.0
      %1381 = vmatmul.mubr.f32.gmra.mrb[0].mxu0 %v1181
      %v1382 = vpop.f32.mrb[0].mxu0
      %v1383 = vadd.f32 %v1123, %v1382
      %v1384 = vpop.f32.mrb[0].mxu0
      %1385 = vmatprep.mubr.f32.mxu0 0.0
      %1386 = vmatmul.mubr.f32.gmra.mrb[0].mxu0 %v1184
      %v1387 = vpop.f32.mrb[0].mxu0
      %v1388 = vadd.f32 %v1123, %v1387
      %v1389 = vpop.f32.mrb[0].mxu0
      %1390 = vmatprep.mubr.f32.mxu0 0.0
      %1391 = vmatmul.mubr.f32.gmra.mrb[0].mxu0 %v1187
      %v1392 = vpop.f32.mrb[0].mxu0
      %v1393 = vadd.f32 %v1123, %v1392
      %v1394 = vpop.f32.mrb[0].mxu0
      %1395 = vmatprep.mubr.f32.mxu0 0.0
      %1396 = vmatmul.mubr.f32.gmra.mrb[0].mxu0 %v1190
      %v1397 = vpop.f32.mrb[0].mxu0
      %v1398 = vadd.f32 %v1123, %v1397
      %v1399 = vpop.f32.mrb[0].mxu0
      %1400 = vmatprep.mubr.f32.mxu0 0.0
      %1401 = vmatmul.mubr.f32.gmra.mrb[0].mxu0 %v1193
      %v1402 = vpop.f32.mrb[0].mxu0
      %v1403 = vadd.f32 %v1123, %v1402
      %v1404 = vpop.f32.mrb[0].mxu0
      %1405 = vmatprep.mubr.f32.mxu0 0.0
      %1406 = vmatmul.mubr.f32.gmra.mrb[0].mxu0 %v1196
      %v1407 = vpop.f32.mrb[0].mxu0
      %v1408 = vadd.f32 %v1123, %v1407
      %v1409 = vpop.f32.mrb[0].mxu0
      %1410 = vmatprep.mubr.f32.mxu0 0.0
      %1411 = vmatmul.mubr.f32.gmra.mrb[0].mxu0 %v1199
      %v1412 = vpop.f32.mrb[0].mxu0
      %v1413 = vadd.f32 %v1123, %v1412
      %v1414 = vpop.f32.mrb[0].mxu0
      %1415 = vmatprep.mubr.f32.mxu0 0.0
      %1416 = vmatmul.mubr.f32.gmra.mrb[0].mxu0 %v1202
      %v1417 = vpop.f32.mrb[0].mxu0
      %v1418 = vadd.f32 %v1123, %v1417
      %v1419 = vpop.f32.mrb[0].mxu0
      %1420 = vmatprep.mubr.f32.mxu0 0.0
      %1421 = vmatmul.mubr.f32.gmra.mrb[0].mxu0 %v1205
      %v1422 = vpop.f32.mrb[0].mxu0
      %v1423 = vadd.f32 %v1123, %v1422
      %v1424 = vpop.f32.mrb[0].mxu0
      %1425 = vmatprep.mubr.f32.mxu0 0.0
      %1426 = vmatmul.mubr.f32.gmra.mrb[0].mxu0 %v1208
      %v1427 = vpop.f32.mrb[0].mxu0
      %v1428 = vadd.f32 %v1123, %v1427
      %v1429 = vpop.f32.mrb[0].mxu0
      %1430 = vmatprep.mubr.f32.mxu0 0.0
      %1431 = vmatmul.mubr.f32.gmra.mrb[0].mxu0 %v1211
      %v1432 = vpop.f32.mrb[0].mxu0
      %v1433 = vadd.f32 %v1123, %v1432
      %v1434 = vpop.f32.mrb[0].mxu0
      %1435 = vmatprep.mubr.f32.mxu0 0.0
      %1436 = vmatmul.mubr.f32.gmra.mrb[0].mxu0 %v1214
      %v1437 = vpop.f32.mrb[0].mxu0
      %v1438 = vadd.f32 %v1123, %v1437
      %v1439 = vpop.f32.mrb[0].mxu0
      %1440 = vmatprep.mubr.f32.mxu0 0.0
      %1441 = vmatmul.mubr.f32.gmra.mrb[0].mxu0 %v1217
      %v1442 = vpop.f32.mrb[0].mxu0
      %v1443 = vadd.f32 %v1123, %v1442
      %v1444 = vpop.f32.mrb[0].mxu0
      %1445 = vmatprep.mubr.f32.mxu0 0.0
      %1446 = vmatmul.mubr.f32.gmra.mrb[0].mxu0 %v1220
      %v1447 = vpop.f32.mrb[0].mxu0
      %v1448 = vadd.f32 %v1123, %v1447
      %v1449 = vpop.f32.mrb[0].mxu0
      %1450 = vdwg.mxu0
      %vm1451 = vcmp.ge.f32.partialorder %v1293, 0.0
      %vm1452 = vcmp.ge.f32.partialorder %v1298, 0.0
      %vm1453 = vcmp.ge.f32.partialorder %v1303, 0.0
      %vm1454 = vcmp.ge.f32.partialorder %v1308, 0.0
      %vm1455 = vcmp.ge.f32.partialorder %v1313, 0.0
      %vm1456 = vcmp.ge.f32.partialorder %v1318, 0.0
      %vm1457 = vcmp.ge.f32.partialorder %v1323, 0.0
      %vm1458 = vcmp.ge.f32.partialorder %v1328, 0.0
      %vm1459 = vcmp.ge.f32.partialorder %v1333, 0.0
      %vm1460 = vcmp.ge.f32.partialorder %v1338, 0.0
      %vm1461 = vcmp.ge.f32.partialorder %v1343, 0.0
      %vm1462 = vcmp.ge.f32.partialorder %v1348, 0.0
      %vm1463 = vcmp.ge.f32.partialorder %v1353, 0.0
      %vm1464 = vcmp.ge.f32.partialorder %v1358, 0.0
      %vm1465 = vcmp.ge.f32.partialorder %v1363, 0.0
      %vm1466 = vcmp.ge.f32.partialorder %v1368, 0.0
      %vm1467 = vcmp.ge.f32.partialorder %v1373, 0.0
      %vm1468 = vcmp.ge.f32.partialorder %v1378, 0.0
      %vm1469 = vcmp.ge.f32.partialorder %v1383, 0.0
      %vm1470 = vcmp.ge.f32.partialorder %v1388, 0.0
      %vm1471 = vcmp.ge.f32.partialorder %v1393, 0.0
      %vm1472 = vcmp.ge.f32.partialorder %v1398, 0.0
      %vm1473 = vcmp.ge.f32.partialorder %v1403, 0.0
      %vm1474 = vcmp.ge.f32.partialorder %v1408, 0.0
      %vm1475 = vcmp.ge.f32.partialorder %v1413, 0.0
      %vm1476 = vcmp.ge.f32.partialorder %v1418, 0.0
      %vm1477 = vcmp.ge.f32.partialorder %v1423, 0.0
      %vm1478 = vcmp.ge.f32.partialorder %v1428, 0.0
      %vm1479 = vcmp.ge.f32.partialorder %v1433, 0.0
      %vm1480 = vcmp.ge.f32.partialorder %v1438, 0.0
      %vm1481 = vcmp.ge.f32.partialorder %v1443, 0.0
      %vm1482 = vcmp.ge.f32.partialorder %v1448, 0.0
      %v1483 = vmul.f32 %v1293, 0.2
      %v1484 = vmul.f32 %v1298, 0.2
      %v1485 = vmul.f32 %v1303, 0.2
      %v1486 = vmul.f32 %v1308, 0.2
      %v1487 = vmul.f32 %v1313, 0.2
      %v1488 = vmul.f32 %v1318, 0.2
      %v1489 = vmul.f32 %v1323, 0.2
      %v1490 = vmul.f32 %v1328, 0.2
      %v1491 = vmul.f32 %v1333, 0.2
      %v1492 = vmul.f32 %v1338, 0.2
      %v1493 = vmul.f32 %v1343, 0.2
      %v1494 = vmul.f32 %v1348, 0.2
      %v1495 = vmul.f32 %v1353, 0.2
      %v1496 = vmul.f32 %v1358, 0.2
      %v1497 = vmul.f32 %v1363, 0.2
      %v1498 = vmul.f32 %v1368, 0.2
      %v1499 = vmul.f32 %v1373, 0.2
      %v1500 = vmul.f32 %v1378, 0.2
      %v1501 = vmul.f32 %v1383, 0.2
      %v1502 = vmul.f32 %v1388, 0.2
      %v1503 = vmul.f32 %v1393, 0.2
      %v1504 = vmul.f32 %v1398, 0.2
      %v1505 = vmul.f32 %v1403, 0.2
      %v1506 = vmul.f32 %v1408, 0.2
      %v1507 = vmul.f32 %v1413, 0.2
      %v1508 = vmul.f32 %v1418, 0.2
      %v1509 = vmul.f32 %v1423, 0.2
      %v1510 = vmul.f32 %v1428, 0.2
      %v1511 = vmul.f32 %v1433, 0.2
      %v1512 = vmul.f32 %v1438, 0.2
      %v1513 = vmul.f32 %v1443, 0.2
      %v1514 = vmul.f32 %v1448, 0.2
      %v1515 = vsel %vm1451, %v1293, %v1483
      %v1516 = vsel %vm1452, %v1298, %v1484
      %v1517 = vsel %vm1453, %v1303, %v1485
      %v1518 = vsel %vm1454, %v1308, %v1486
      %v1519 = vsel %vm1455, %v1313, %v1487
      %v1520 = vsel %vm1456, %v1318, %v1488
      %v1521 = vsel %vm1457, %v1323, %v1489
      %v1522 = vsel %vm1458, %v1328, %v1490
      %v1523 = vsel %vm1459, %v1333, %v1491
      %v1524 = vsel %vm1460, %v1338, %v1492
      %v1525 = vsel %vm1461, %v1343, %v1493
      %v1526 = vsel %vm1462, %v1348, %v1494
      %v1527 = vsel %vm1463, %v1353, %v1495
      %v1528 = vsel %vm1464, %v1358, %v1496
      %v1529 = vsel %vm1465, %v1363, %v1497
      %v1530 = vsel %vm1466, %v1368, %v1498
      %v1531 = vsel %vm1467, %v1373, %v1499
      %v1532 = vsel %vm1468, %v1378, %v1500
      %v1533 = vsel %vm1469, %v1383, %v1501
      %v1534 = vsel %vm1470, %v1388, %v1502
      %v1535 = vsel %vm1471, %v1393, %v1503
      %v1536 = vsel %vm1472, %v1398, %v1504
      %v1537 = vsel %vm1473, %v1403, %v1505
      %v1538 = vsel %vm1474, %v1408, %v1506
      %v1539 = vsel %vm1475, %v1413, %v1507
      %v1540 = vsel %vm1476, %v1418, %v1508
      %v1541 = vsel %vm1477, %v1423, %v1509
      %v1542 = vsel %vm1478, %v1428, %v1510
      %v1543 = vsel %vm1479, %v1433, %v1511
      %v1544 = vsel %vm1480, %v1438, %v1512
      %v1545 = vsel %vm1481, %v1443, %v1513
      %v1546 = vsel %vm1482, %v1448, %v1514
      %v1547 = vld [vmem:[%s6] sm:$0xff]
      %v1548 = vld [vmem:[%s6 + $0x8] sm:$0xff]
      %v1549 = vld [vmem:[%s6 + $0x10] sm:$0xff]
      %v1550 = vld [vmem:[%s6 + $0x18] sm:$0xff]
      %v1551 = vld [vmem:[%s6 + $0x20] sm:$0xff]
      %v1552 = vld [vmem:[%s6 + $0x28] sm:$0xff]
      %v1553 = vld [vmem:[%s6 + $0x30] sm:$0x3]
      %v1554 = vld [vmem:[%s7] sm:$0x1]
      %v1556 = vlaneseq
      %v1557 = vshrl.u32 %v1556, 7
      %v1558 = vsub.s32 0, %v1557
      %v1559 = vrot.slane %v1554, %v1558
      %vm1561 = vcmask 408576
      %v1563 = vsel %vm1561, %v1515, 0
      %v1566 = vsel %vm1561, %v1516, 0
      %v1569 = vsel %vm1561, %v1517, 0
      %v1572 = vsel %vm1561, %v1518, 0
      %v1575 = vsel %vm1561, %v1519, 0
      %v1578 = vsel %vm1561, %v1520, 0
      %v1581 = vsel %vm1561, %v1521, 0
      %v1584 = vsel %vm1561, %v1522, 0
      %v1587 = vsel %vm1561, %v1523, 0
      %v1590 = vsel %vm1561, %v1524, 0
      %v1593 = vsel %vm1561, %v1525, 0
      %v1596 = vsel %vm1561, %v1526, 0
      %v1599 = vsel %vm1561, %v1527, 0
      %v1602 = vsel %vm1561, %v1528, 0
      %v1605 = vsel %vm1561, %v1529, 0
      %v1608 = vsel %vm1561, %v1530, 0
      %v1611 = vsel %vm1561, %v1531, 0
      %v1614 = vsel %vm1561, %v1532, 0
      %v1617 = vsel %vm1561, %v1533, 0
      %v1620 = vsel %vm1561, %v1534, 0
      %v1623 = vsel %vm1561, %v1535, 0
      %v1626 = vsel %vm1561, %v1536, 0
      %v1629 = vsel %vm1561, %v1537, 0
      %v1632 = vsel %vm1561, %v1538, 0
      %v1635 = vsel %vm1561, %v1539, 0
      %v1638 = vsel %vm1561, %v1540, 0
      %v1641 = vsel %vm1561, %v1541, 0
      %v1644 = vsel %vm1561, %v1542, 0
      %v1647 = vsel %vm1561, %v1543, 0
      %v1650 = vsel %vm1561, %v1544, 0
      %v1653 = vsel %vm1561, %v1545, 0
      %v1656 = vsel %vm1561, %v1546, 0
      %vm1658 = vcmask 1041408
      %v1660 = vsel %vm1658, %v1553, 0
      %1662 = vmatprep.subr.mxu0 0.0
      %1663 = vmatpush1.msra.mxu0 %v1547
      %1664 = vmatprep.subr.mxu0 0.0
      %1665 = vmatpush1.msra.mxu0 %v1548
      %1666 = vmatprep.subr.mxu0 0.0
      %1667 = vmatpush1.msra.mxu0 %v1549
      %1668 = vmatprep.subr.mxu0 0.0
      %1669 = vmatpush1.msra.mxu0 %v1550
      %1670 = vmatprep.subr.mxu0 0.0
      %1671 = vmatpush1.msra.mxu0 %v1551
      %1672 = vmatprep.subr.mxu0 0.0
      %1673 = vmatpush1.msra.mxu0 %v1552
      %1674 = vmatprep.subr.mxu0 0.0
      %1675 = vmatpush1.msra.mxu0 %v1660
      %1676 = vmatprep.subr.mxu0 0.0
      %1677 = vmatpush1.msra.mxu0 0.0
      %1678 = vmatprep.subr.mxu0 0.0
      %1679 = vmatpush1.msra.mxu0 0.0
      %1680 = vmatprep.subr.mxu0 0.0
      %1681 = vmatpush1.msra.mxu0 0.0
      %1682 = vmatprep.subr.mxu0 0.0
      %1683 = vmatpush1.msra.mxu0 0.0
      %1684 = vmatprep.subr.mxu0 0.0
      %1685 = vmatpush1.msra.mxu0 0.0
      %1686 = vmatprep.subr.mxu0 0.0
      %1687 = vmatpush1.msra.mxu0 0.0
      %1688 = vmatprep.subr.mxu0 0.0
      %1689 = vmatpush1.msra.mxu0 0.0
      %1690 = vmatprep.subr.mxu0 0.0
      %1691 = vmatpush1.msra.mxu0 0.0
      %1692 = vmatprep.subr.mxu0 0.0
      %1693 = vmatpush1.msra.mxu0 0.0
      %1694 = vmatprep.subr.mxu0 0.0
      %1695 = vmatpush1.msra.mxu0 0.0
      %1696 = vmatprep.subr.mxu0 0.0
      %1697 = vmatpush1.msra.mxu0 0.0
      %1698 = vmatprep.subr.mxu0 0.0
      %1699 = vmatpush1.msra.mxu0 0.0
      %1700 = vmatprep.subr.mxu0 0.0
      %1701 = vmatpush1.msra.mxu0 0.0
      %1702 = vmatprep.subr.mxu0 0.0
      %1703 = vmatpush1.msra.mxu0 0.0
      %1704 = vmatprep.subr.mxu0 0.0
      %1705 = vmatpush1.msra.mxu0 0.0
      %1706 = vmatprep.subr.mxu0 0.0
      %1707 = vmatpush1.msra.mxu0 0.0
      %1708 = vmatprep.subr.mxu0 0.0
      %1709 = vmatpush1.msra.mxu0 0.0
      %1710 = vmatprep.subr.mxu0 0.0
      %1711 = vmatpush1.msra.mxu0 0.0
      %1712 = vmatprep.subr.mxu0 0.0
      %1713 = vmatpush1.msra.mxu0 0.0
      %1714 = vmatprep.subr.mxu0 0.0
      %1715 = vmatpush1.msra.mxu0 0.0
      %1716 = vmatprep.subr.mxu0 0.0
      %1717 = vmatpush1.msra.mxu0 0.0
      %1718 = vmatprep.subr.mxu0 0.0
      %1719 = vmatpush1.msra.mxu0 0.0
      %1720 = vmatprep.subr.mxu0 0.0
      %1721 = vmatpush1.msra.mxu0 0.0
      %1722 = vmatprep.subr.mxu0 0.0
      %1723 = vmatpush1.msra.mxu0 0.0
      %1724 = vmatprep.subr.mxu0 0.0
      %1725 = vmatpush1.msra.mxu0 0.0
      %1726 = vmatprep.mubr.f32.mxu0 0.0
      %1727 = vmatmul.mubr.f32.gmra.mrb[0].mxu0 %v1563
      %v1728 = vpop.f32.mrb[0].mxu0
      %v1729 = vadd.f32 %v1559, %v1728
      %v1730 = vpop.f32.mrb[0].mxu0
      %1731 = vmatprep.mubr.f32.mxu0 0.0
      %1732 = vmatmul.mubr.f32.gmra.mrb[0].mxu0 %v1566
      %v1733 = vpop.f32.mrb[0].mxu0
      %v1734 = vadd.f32 %v1559, %v1733
      %v1735 = vpop.f32.mrb[0].mxu0
      %1736 = vmatprep.mubr.f32.mxu0 0.0
      %1737 = vmatmul.mubr.f32.gmra.mrb[0].mxu0 %v1569
      %v1738 = vpop.f32.mrb[0].mxu0
      %v1739 = vadd.f32 %v1559, %v1738
      %v1740 = vpop.f32.mrb[0].mxu0
      %1741 = vmatprep.mubr.f32.mxu0 0.0
      %1742 = vmatmul.mubr.f32.gmra.mrb[0].mxu0 %v1572
      %v1743 = vpop.f32.mrb[0].mxu0
      %v1744 = vadd.f32 %v1559, %v1743
      %v1745 = vpop.f32.mrb[0].mxu0
      %1746 = vmatprep.mubr.f32.mxu0 0.0
      %1747 = vmatmul.mubr.f32.gmra.mrb[0].mxu0 %v1575
      %v1748 = vpop.f32.mrb[0].mxu0
      %v1749 = vadd.f32 %v1559, %v1748
      %v1750 = vpop.f32.mrb[0].mxu0
      %1751 = vmatprep.mubr.f32.mxu0 0.0
      %1752 = vmatmul.mubr.f32.gmra.mrb[0].mxu0 %v1578
      %v1753 = vpop.f32.mrb[0].mxu0
      %v1754 = vadd.f32 %v1559, %v1753
      %v1755 = vpop.f32.mrb[0].mxu0
      %1756 = vmatprep.mubr.f32.mxu0 0.0
      %1757 = vmatmul.mubr.f32.gmra.mrb[0].mxu0 %v1581
      %v1758 = vpop.f32.mrb[0].mxu0
      %v1759 = vadd.f32 %v1559, %v1758
      %v1760 = vpop.f32.mrb[0].mxu0
      %1761 = vmatprep.mubr.f32.mxu0 0.0
      %1762 = vmatmul.mubr.f32.gmra.mrb[0].mxu0 %v1584
      %v1763 = vpop.f32.mrb[0].mxu0
      %v1764 = vadd.f32 %v1559, %v1763
      %v1765 = vpop.f32.mrb[0].mxu0
      %1766 = vmatprep.mubr.f32.mxu0 0.0
      %1767 = vmatmul.mubr.f32.gmra.mrb[0].mxu0 %v1587
      %v1768 = vpop.f32.mrb[0].mxu0
      %v1769 = vadd.f32 %v1559, %v1768
      %v1770 = vpop.f32.mrb[0].mxu0
      %1771 = vmatprep.mubr.f32.mxu0 0.0
      %1772 = vmatmul.mubr.f32.gmra.mrb[0].mxu0 %v1590
      %v1773 = vpop.f32.mrb[0].mxu0
      %v1774 = vadd.f32 %v1559, %v1773
      %v1775 = vpop.f32.mrb[0].mxu0
      %1776 = vmatprep.mubr.f32.mxu0 0.0
      %1777 = vmatmul.mubr.f32.gmra.mrb[0].mxu0 %v1593
      %v1778 = vpop.f32.mrb[0].mxu0
      %v1779 = vadd.f32 %v1559, %v1778
      %v1780 = vpop.f32.mrb[0].mxu0
      %1781 = vmatprep.mubr.f32.mxu0 0.0
      %1782 = vmatmul.mubr.f32.gmra.mrb[0].mxu0 %v1596
      %v1783 = vpop.f32.mrb[0].mxu0
      %v1784 = vadd.f32 %v1559, %v1783
      %v1785 = vpop.f32.mrb[0].mxu0
      %1786 = vmatprep.mubr.f32.mxu0 0.0
      %1787 = vmatmul.mubr.f32.gmra.mrb[0].mxu0 %v1599
      %v1788 = vpop.f32.mrb[0].mxu0
      %v1789 = vadd.f32 %v1559, %v1788
      %v1790 = vpop.f32.mrb[0].mxu0
      %1791 = vmatprep.mubr.f32.mxu0 0.0
      %1792 = vmatmul.mubr.f32.gmra.mrb[0].mxu0 %v1602
      %v1793 = vpop.f32.mrb[0].mxu0
      %v1794 = vadd.f32 %v1559, %v1793
      %v1795 = vpop.f32.mrb[0].mxu0
      %1796 = vmatprep.mubr.f32.mxu0 0.0
      %1797 = vmatmul.mubr.f32.gmra.mrb[0].mxu0 %v1605
      %v1798 = vpop.f32.mrb[0].mxu0
      %v1799 = vadd.f32 %v1559, %v1798
      %v1800 = vpop.f32.mrb[0].mxu0
      %1801 = vmatprep.mubr.f32.mxu0 0.0
      %1802 = vmatmul.mubr.f32.gmra.mrb[0].mxu0 %v1608
      %v1803 = vpop.f32.mrb[0].mxu0
      %v1804 = vadd.f32 %v1559, %v1803
      %v1805 = vpop.f32.mrb[0].mxu0
      %1806 = vmatprep.mubr.f32.mxu0 0.0
      %1807 = vmatmul.mubr.f32.gmra.mrb[0].mxu0 %v1611
      %v1808 = vpop.f32.mrb[0].mxu0
      %v1809 = vadd.f32 %v1559, %v1808
      %v1810 = vpop.f32.mrb[0].mxu0
      %1811 = vmatprep.mubr.f32.mxu0 0.0
      %1812 = vmatmul.mubr.f32.gmra.mrb[0].mxu0 %v1614
      %v1813 = vpop.f32.mrb[0].mxu0
      %v1814 = vadd.f32 %v1559, %v1813
      %v1815 = vpop.f32.mrb[0].mxu0
      %1816 = vmatprep.mubr.f32.mxu0 0.0
      %1817 = vmatmul.mubr.f32.gmra.mrb[0].mxu0 %v1617
      %v1818 = vpop.f32.mrb[0].mxu0
      %v1819 = vadd.f32 %v1559, %v1818
      %v1820 = vpop.f32.mrb[0].mxu0
      %1821 = vmatprep.mubr.f32.mxu0 0.0
      %1822 = vmatmul.mubr.f32.gmra.mrb[0].mxu0 %v1620
      %v1823 = vpop.f32.mrb[0].mxu0
      %v1824 = vadd.f32 %v1559, %v1823
      %v1825 = vpop.f32.mrb[0].mxu0
      %1826 = vmatprep.mubr.f32.mxu0 0.0
      %1827 = vmatmul.mubr.f32.gmra.mrb[0].mxu0 %v1623
      %v1828 = vpop.f32.mrb[0].mxu0
      %v1829 = vadd.f32 %v1559, %v1828
      %v1830 = vpop.f32.mrb[0].mxu0
      %1831 = vmatprep.mubr.f32.mxu0 0.0
      %1832 = vmatmul.mubr.f32.gmra.mrb[0].mxu0 %v1626
      %v1833 = vpop.f32.mrb[0].mxu0
      %v1834 = vadd.f32 %v1559, %v1833
      %v1835 = vpop.f32.mrb[0].mxu0
      %1836 = vmatprep.mubr.f32.mxu0 0.0
      %1837 = vmatmul.mubr.f32.gmra.mrb[0].mxu0 %v1629
      %v1838 = vpop.f32.mrb[0].mxu0
      %v1839 = vadd.f32 %v1559, %v1838
      %v1840 = vpop.f32.mrb[0].mxu0
      %1841 = vmatprep.mubr.f32.mxu0 0.0
      %1842 = vmatmul.mubr.f32.gmra.mrb[0].mxu0 %v1632
      %v1843 = vpop.f32.mrb[0].mxu0
      %v1844 = vadd.f32 %v1559, %v1843
      %v1845 = vpop.f32.mrb[0].mxu0
      %1846 = vmatprep.mubr.f32.mxu0 0.0
      %1847 = vmatmul.mubr.f32.gmra.mrb[0].mxu0 %v1635
      %v1848 = vpop.f32.mrb[0].mxu0
      %v1849 = vadd.f32 %v1559, %v1848
      %v1850 = vpop.f32.mrb[0].mxu0
      %1851 = vmatprep.mubr.f32.mxu0 0.0
      %1852 = vmatmul.mubr.f32.gmra.mrb[0].mxu0 %v1638
      %v1853 = vpop.f32.mrb[0].mxu0
      %v1854 = vadd.f32 %v1559, %v1853
      %v1855 = vpop.f32.mrb[0].mxu0
      %1856 = vmatprep.mubr.f32.mxu0 0.0
      %1857 = vmatmul.mubr.f32.gmra.mrb[0].mxu0 %v1641
      %v1858 = vpop.f32.mrb[0].mxu0
      %v1859 = vadd.f32 %v1559, %v1858
      %v1860 = vpop.f32.mrb[0].mxu0
      %1861 = vmatprep.mubr.f32.mxu0 0.0
      %1862 = vmatmul.mubr.f32.gmra.mrb[0].mxu0 %v1644
      %v1863 = vpop.f32.mrb[0].mxu0
      %v1864 = vadd.f32 %v1559, %v1863
      %v1865 = vpop.f32.mrb[0].mxu0
      %1866 = vmatprep.mubr.f32.mxu0 0.0
      %1867 = vmatmul.mubr.f32.gmra.mrb[0].mxu0 %v1647
      %v1868 = vpop.f32.mrb[0].mxu0
      %v1869 = vadd.f32 %v1559, %v1868
      %v1870 = vpop.f32.mrb[0].mxu0
      %1871 = vmatprep.mubr.f32.mxu0 0.0
      %1872 = vmatmul.mubr.f32.gmra.mrb[0].mxu0 %v1650
      %v1873 = vpop.f32.mrb[0].mxu0
      %v1874 = vadd.f32 %v1559, %v1873
      %v1875 = vpop.f32.mrb[0].mxu0
      %1876 = vmatprep.mubr.f32.mxu0 0.0
      %1877 = vmatmul.mubr.f32.gmra.mrb[0].mxu0 %v1653
      %v1878 = vpop.f32.mrb[0].mxu0
      %v1879 = vadd.f32 %v1559, %v1878
      %v1880 = vpop.f32.mrb[0].mxu0
      %1881 = vmatprep.mubr.f32.mxu0 0.0
      %1882 = vmatmul.mubr.f32.gmra.mrb[0].mxu0 %v1656
      %v1883 = vpop.f32.mrb[0].mxu0
      %v1884 = vadd.f32 %v1559, %v1883
      %v1885 = vpop.f32.mrb[0].mxu0
      %1886 = vdwg.mxu0
      %v1887 = vld [vmem:[%s8] sm:$0xff]
      %v1888 = vld [vmem:[%s8 + $0x8] sm:$0xff]
      %v1889 = vld [vmem:[%s9] sm:$0x1]
      %v1891 = vlaneseq
      %v1892 = vshrl.u32 %v1891, 7
      %v1893 = vsub.s32 0, %v1892
      %v1894 = vrot.slane %v1889, %v1893
      %vm1896 = vcmask 130048
      %v1898 = vsel %vm1896, %v1729, 0
      %v1901 = vsel %vm1896, %v1734, 0
      %v1904 = vsel %vm1896, %v1739, 0
      %v1907 = vsel %vm1896, %v1744, 0
      %v1910 = vsel %vm1896, %v1749, 0
      %v1913 = vsel %vm1896, %v1754, 0
      %v1916 = vsel %vm1896, %v1759, 0
      %v1919 = vsel %vm1896, %v1764, 0
      %v1922 = vsel %vm1896, %v1769, 0
      %v1925 = vsel %vm1896, %v1774, 0
      %v1928 = vsel %vm1896, %v1779, 0
      %v1931 = vsel %vm1896, %v1784, 0
      %v1934 = vsel %vm1896, %v1789, 0
      %v1937 = vsel %vm1896, %v1794, 0
      %v1940 = vsel %vm1896, %v1799, 0
      %v1943 = vsel %vm1896, %v1804, 0
      %v1946 = vsel %vm1896, %v1809, 0
      %v1949 = vsel %vm1896, %v1814, 0
      %v1952 = vsel %vm1896, %v1819, 0
      %v1955 = vsel %vm1896, %v1824, 0
      %v1958 = vsel %vm1896, %v1829, 0
      %v1961 = vsel %vm1896, %v1834, 0
      %v1964 = vsel %vm1896, %v1839, 0
      %v1967 = vsel %vm1896, %v1844, 0
      %v1970 = vsel %vm1896, %v1849, 0
      %v1973 = vsel %vm1896, %v1854, 0
      %v1976 = vsel %vm1896, %v1859, 0
      %v1979 = vsel %vm1896, %v1864, 0
      %v1982 = vsel %vm1896, %v1869, 0
      %v1985 = vsel %vm1896, %v1874, 0
      %v1988 = vsel %vm1896, %v1879, 0
      %v1991 = vsel %vm1896, %v1884, 0
      %1993 = vmatprep.subr.mxu0 0.0
      %1994 = vmatpush1.msra.mxu0 %v1887
      %1995 = vmatprep.subr.mxu0 0.0
      %1996 = vmatpush1.msra.mxu0 %v1888
      %1997 = vmatprep.subr.mxu0 0.0
      %1998 = vmatpush1.msra.mxu0 0.0
      %1999 = vmatprep.subr.mxu0 0.0
      %2000 = vmatpush1.msra.mxu0 0.0
      %2001 = vmatprep.subr.mxu0 0.0
      %2002 = vmatpush1.msra.mxu0 0.0
      %2003 = vmatprep.subr.mxu0 0.0
      %2004 = vmatpush1.msra.mxu0 0.0
      %2005 = vmatprep.subr.mxu0 0.0
      %2006 = vmatpush1.msra.mxu0 0.0
      %2007 = vmatprep.subr.mxu0 0.0
      %2008 = vmatpush1.msra.mxu0 0.0
      %2009 = vmatprep.subr.mxu0 0.0
      %2010 = vmatpush1.msra.mxu0 0.0
      %2011 = vmatprep.subr.mxu0 0.0
      %2012 = vmatpush1.msra.mxu0 0.0
      %2013 = vmatprep.subr.mxu0 0.0
      %2014 = vmatpush1.msra.mxu0 0.0
      %2015 = vmatprep.subr.mxu0 0.0
      %2016 = vmatpush1.msra.mxu0 0.0
      %2017 = vmatprep.subr.mxu0 0.0
      %2018 = vmatpush1.msra.mxu0 0.0
      %2019 = vmatprep.subr.mxu0 0.0
      %2020 = vmatpush1.msra.mxu0 0.0
      %2021 = vmatprep.subr.mxu0 0.0
      %2022 = vmatpush1.msra.mxu0 0.0
      %2023 = vmatprep.subr.mxu0 0.0
      %2024 = vmatpush1.msra.mxu0 0.0
      %2025 = vmatprep.subr.mxu0 0.0
      %2026 = vmatpush1.msra.mxu0 0.0
      %2027 = vmatprep.subr.mxu0 0.0
      %2028 = vmatpush1.msra.mxu0 0.0
      %2029 = vmatprep.subr.mxu0 0.0
      %2030 = vmatpush1.msra.mxu0 0.0
      %2031 = vmatprep.subr.mxu0 0.0
      %2032 = vmatpush1.msra.mxu0 0.0
      %2033 = vmatprep.subr.mxu0 0.0
      %2034 = vmatpush1.msra.mxu0 0.0
      %2035 = vmatprep.subr.mxu0 0.0
      %2036 = vmatpush1.msra.mxu0 0.0
      %2037 = vmatprep.subr.mxu0 0.0
      %2038 = vmatpush1.msra.mxu0 0.0
      %2039 = vmatprep.subr.mxu0 0.0
      %2040 = vmatpush1.msra.mxu0 0.0
      %2041 = vmatprep.subr.mxu0 0.0
      %2042 = vmatpush1.msra.mxu0 0.0
      %2043 = vmatprep.subr.mxu0 0.0
      %2044 = vmatpush1.msra.mxu0 0.0
      %2045 = vmatprep.subr.mxu0 0.0
      %2046 = vmatpush1.msra.mxu0 0.0
      %2047 = vmatprep.subr.mxu0 0.0
      %2048 = vmatpush1.msra.mxu0 0.0
      %2049 = vmatprep.subr.mxu0 0.0
      %2050 = vmatpush1.msra.mxu0 0.0
      %2051 = vmatprep.subr.mxu0 0.0
      %2052 = vmatpush1.msra.mxu0 0.0
      %2053 = vmatprep.subr.mxu0 0.0
      %2054 = vmatpush1.msra.mxu0 0.0
      %2055 = vmatprep.subr.mxu0 0.0
      %2056 = vmatpush1.msra.mxu0 0.0
      %2057 = vmatprep.mubr.f32.mxu0 0.0
      %2058 = vmatmul.mubr.f32.gmra.mrb[0].mxu0 %v1898
      %v2059 = vpop.f32.mrb[0].mxu0
      %v2060 = vadd.f32 %v1894, %v2059
      %v2061 = vpop.f32.mrb[0].mxu0
      %2062 = vmatprep.mubr.f32.mxu0 0.0
      %2063 = vmatmul.mubr.f32.gmra.mrb[0].mxu0 %v1901
      %v2064 = vpop.f32.mrb[0].mxu0
      %v2065 = vadd.f32 %v1894, %v2064
      %v2066 = vpop.f32.mrb[0].mxu0
      %2067 = vmatprep.mubr.f32.mxu0 0.0
      %2068 = vmatmul.mubr.f32.gmra.mrb[0].mxu0 %v1904
      %v2069 = vpop.f32.mrb[0].mxu0
      %v2070 = vadd.f32 %v1894, %v2069
      %v2071 = vpop.f32.mrb[0].mxu0
      %2072 = vmatprep.mubr.f32.mxu0 0.0
      %2073 = vmatmul.mubr.f32.gmra.mrb[0].mxu0 %v1907
      %v2074 = vpop.f32.mrb[0].mxu0
      %v2075 = vadd.f32 %v1894, %v2074
      %v2076 = vpop.f32.mrb[0].mxu0
      %2077 = vmatprep.mubr.f32.mxu0 0.0
      %2078 = vmatmul.mubr.f32.gmra.mrb[0].mxu0 %v1910
      %v2079 = vpop.f32.mrb[0].mxu0
      %v2080 = vadd.f32 %v1894, %v2079
      %v2081 = vpop.f32.mrb[0].mxu0
      %2082 = vmatprep.mubr.f32.mxu0 0.0
      %2083 = vmatmul.mubr.f32.gmra.mrb[0].mxu0 %v1913
      %v2084 = vpop.f32.mrb[0].mxu0
      %v2085 = vadd.f32 %v1894, %v2084
      %v2086 = vpop.f32.mrb[0].mxu0
      %2087 = vmatprep.mubr.f32.mxu0 0.0
      %2088 = vmatmul.mubr.f32.gmra.mrb[0].mxu0 %v1916
      %v2089 = vpop.f32.mrb[0].mxu0
      %v2090 = vadd.f32 %v1894, %v2089
      %v2091 = vpop.f32.mrb[0].mxu0
      %2092 = vmatprep.mubr.f32.mxu0 0.0
      %2093 = vmatmul.mubr.f32.gmra.mrb[0].mxu0 %v1919
      %v2094 = vpop.f32.mrb[0].mxu0
      %v2095 = vadd.f32 %v1894, %v2094
      %v2096 = vpop.f32.mrb[0].mxu0
      %2097 = vmatprep.mubr.f32.mxu0 0.0
      %2098 = vmatmul.mubr.f32.gmra.mrb[0].mxu0 %v1922
      %v2099 = vpop.f32.mrb[0].mxu0
      %v2100 = vadd.f32 %v1894, %v2099
      %v2101 = vpop.f32.mrb[0].mxu0
      %2102 = vmatprep.mubr.f32.mxu0 0.0
      %2103 = vmatmul.mubr.f32.gmra.mrb[0].mxu0 %v1925
      %v2104 = vpop.f32.mrb[0].mxu0
      %v2105 = vadd.f32 %v1894, %v2104
      %v2106 = vpop.f32.mrb[0].mxu0
      %2107 = vmatprep.mubr.f32.mxu0 0.0
      %2108 = vmatmul.mubr.f32.gmra.mrb[0].mxu0 %v1928
      %v2109 = vpop.f32.mrb[0].mxu0
      %v2110 = vadd.f32 %v1894, %v2109
      %v2111 = vpop.f32.mrb[0].mxu0
      %2112 = vmatprep.mubr.f32.mxu0 0.0
      %2113 = vmatmul.mubr.f32.gmra.mrb[0].mxu0 %v1931
      %v2114 = vpop.f32.mrb[0].mxu0
      %v2115 = vadd.f32 %v1894, %v2114
      %v2116 = vpop.f32.mrb[0].mxu0
      %2117 = vmatprep.mubr.f32.mxu0 0.0
      %2118 = vmatmul.mubr.f32.gmra.mrb[0].mxu0 %v1934
      %v2119 = vpop.f32.mrb[0].mxu0
      %v2120 = vadd.f32 %v1894, %v2119
      %v2121 = vpop.f32.mrb[0].mxu0
      %2122 = vmatprep.mubr.f32.mxu0 0.0
      %2123 = vmatmul.mubr.f32.gmra.mrb[0].mxu0 %v1937
      %v2124 = vpop.f32.mrb[0].mxu0
      %v2125 = vadd.f32 %v1894, %v2124
      %v2126 = vpop.f32.mrb[0].mxu0
      %2127 = vmatprep.mubr.f32.mxu0 0.0
      %2128 = vmatmul.mubr.f32.gmra.mrb[0].mxu0 %v1940
      %v2129 = vpop.f32.mrb[0].mxu0
      %v2130 = vadd.f32 %v1894, %v2129
      %v2131 = vpop.f32.mrb[0].mxu0
      %2132 = vmatprep.mubr.f32.mxu0 0.0
      %2133 = vmatmul.mubr.f32.gmra.mrb[0].mxu0 %v1943
      %v2134 = vpop.f32.mrb[0].mxu0
      %v2135 = vadd.f32 %v1894, %v2134
      %v2136 = vpop.f32.mrb[0].mxu0
      %2137 = vmatprep.mubr.f32.mxu0 0.0
      %2138 = vmatmul.mubr.f32.gmra.mrb[0].mxu0 %v1946
      %v2139 = vpop.f32.mrb[0].mxu0
      %v2140 = vadd.f32 %v1894, %v2139
      %v2141 = vpop.f32.mrb[0].mxu0
      %2142 = vmatprep.mubr.f32.mxu0 0.0
      %2143 = vmatmul.mubr.f32.gmra.mrb[0].mxu0 %v1949
      %v2144 = vpop.f32.mrb[0].mxu0
      %v2145 = vadd.f32 %v1894, %v2144
      %v2146 = vpop.f32.mrb[0].mxu0
      %2147 = vmatprep.mubr.f32.mxu0 0.0
      %2148 = vmatmul.mubr.f32.gmra.mrb[0].mxu0 %v1952
      %v2149 = vpop.f32.mrb[0].mxu0
      %v2150 = vadd.f32 %v1894, %v2149
      %v2151 = vpop.f32.mrb[0].mxu0
      %2152 = vmatprep.mubr.f32.mxu0 0.0
      %2153 = vmatmul.mubr.f32.gmra.mrb[0].mxu0 %v1955
      %v2154 = vpop.f32.mrb[0].mxu0
      %v2155 = vadd.f32 %v1894, %v2154
      %v2156 = vpop.f32.mrb[0].mxu0
      %2157 = vmatprep.mubr.f32.mxu0 0.0
      %2158 = vmatmul.mubr.f32.gmra.mrb[0].mxu0 %v1958
      %v2159 = vpop.f32.mrb[0].mxu0
      %v2160 = vadd.f32 %v1894, %v2159
      %v2161 = vpop.f32.mrb[0].mxu0
      %2162 = vmatprep.mubr.f32.mxu0 0.0
      %2163 = vmatmul.mubr.f32.gmra.mrb[0].mxu0 %v1961
      %v2164 = vpop.f32.mrb[0].mxu0
      %v2165 = vadd.f32 %v1894, %v2164
      %v2166 = vpop.f32.mrb[0].mxu0
      %2167 = vmatprep.mubr.f32.mxu0 0.0
      %2168 = vmatmul.mubr.f32.gmra.mrb[0].mxu0 %v1964
      %v2169 = vpop.f32.mrb[0].mxu0
      %v2170 = vadd.f32 %v1894, %v2169
      %v2171 = vpop.f32.mrb[0].mxu0
      %2172 = vmatprep.mubr.f32.mxu0 0.0
      %2173 = vmatmul.mubr.f32.gmra.mrb[0].mxu0 %v1967
      %v2174 = vpop.f32.mrb[0].mxu0
      %v2175 = vadd.f32 %v1894, %v2174
      %v2176 = vpop.f32.mrb[0].mxu0
      %2177 = vmatprep.mubr.f32.mxu0 0.0
      %2178 = vmatmul.mubr.f32.gmra.mrb[0].mxu0 %v1970
      %v2179 = vpop.f32.mrb[0].mxu0
      %v2180 = vadd.f32 %v1894, %v2179
      %v2181 = vpop.f32.mrb[0].mxu0
      %2182 = vmatprep.mubr.f32.mxu0 0.0
      %2183 = vmatmul.mubr.f32.gmra.mrb[0].mxu0 %v1973
      %v2184 = vpop.f32.mrb[0].mxu0
      %v2185 = vadd.f32 %v1894, %v2184
      %v2186 = vpop.f32.mrb[0].mxu0
      %2187 = vmatprep.mubr.f32.mxu0 0.0
      %2188 = vmatmul.mubr.f32.gmra.mrb[0].mxu0 %v1976
      %v2189 = vpop.f32.mrb[0].mxu0
      %v2190 = vadd.f32 %v1894, %v2189
      %v2191 = vpop.f32.mrb[0].mxu0
      %2192 = vmatprep.mubr.f32.mxu0 0.0
      %2193 = vmatmul.mubr.f32.gmra.mrb[0].mxu0 %v1979
      %v2194 = vpop.f32.mrb[0].mxu0
      %v2195 = vadd.f32 %v1894, %v2194
      %v2196 = vpop.f32.mrb[0].mxu0
      %2197 = vmatprep.mubr.f32.mxu0 0.0
      %2198 = vmatmul.mubr.f32.gmra.mrb[0].mxu0 %v1982
      %v2199 = vpop.f32.mrb[0].mxu0
      %v2200 = vadd.f32 %v1894, %v2199
      %v2201 = vpop.f32.mrb[0].mxu0
      %2202 = vmatprep.mubr.f32.mxu0 0.0
      %2203 = vmatmul.mubr.f32.gmra.mrb[0].mxu0 %v1985
      %v2204 = vpop.f32.mrb[0].mxu0
      %v2205 = vadd.f32 %v1894, %v2204
      %v2206 = vpop.f32.mrb[0].mxu0
      %2207 = vmatprep.mubr.f32.mxu0 0.0
      %2208 = vmatmul.mubr.f32.gmra.mrb[0].mxu0 %v1988
      %v2209 = vpop.f32.mrb[0].mxu0
      %v2210 = vadd.f32 %v1894, %v2209
      %v2211 = vpop.f32.mrb[0].mxu0
      %2212 = vmatprep.mubr.f32.mxu0 0.0
      %2213 = vmatmul.mubr.f32.gmra.mrb[0].mxu0 %v1991
      %v2214 = vpop.f32.mrb[0].mxu0
      %v2215 = vadd.f32 %v1894, %v2214
      %v2216 = vpop.f32.mrb[0].mxu0
      %2217 = vdwg.mxu0
      %v2218 = vtanh.pop %v2060
      %v2219 = vtanh.pop %v2065
      %v2220 = vtanh.pop %v2070
      %v2221 = vtanh.pop %v2075
      %v2222 = vtanh.pop %v2080
      %v2223 = vtanh.pop %v2085
      %v2224 = vtanh.pop %v2090
      %v2225 = vtanh.pop %v2095
      %v2226 = vtanh.pop %v2100
      %v2227 = vtanh.pop %v2105
      %v2228 = vtanh.pop %v2110
      %v2229 = vtanh.pop %v2115
      %v2230 = vtanh.pop %v2120
      %v2231 = vtanh.pop %v2125
      %v2232 = vtanh.pop %v2130
      %v2233 = vtanh.pop %v2135
      %v2234 = vtanh.pop %v2140
      %v2235 = vtanh.pop %v2145
      %v2236 = vtanh.pop %v2150
      %v2237 = vtanh.pop %v2155
      %v2238 = vtanh.pop %v2160
      %v2239 = vtanh.pop %v2165
      %v2240 = vtanh.pop %v2170
      %v2241 = vtanh.pop %v2175
      %v2242 = vtanh.pop %v2180
      %v2243 = vtanh.pop %v2185
      %v2244 = vtanh.pop %v2190
      %v2245 = vtanh.pop %v2195
      %v2246 = vtanh.pop %v2200
      %v2247 = vtanh.pop %v2205
      %v2248 = vtanh.pop %v2210
      %v2249 = vtanh.pop %v2215
      %v2250 = vld [vmem:[%s10] sm:$0x1]
      %v2252 = vlaneseq
      %v2253 = vshrl.u32 %v2252, 7
      %v2254 = vsub.s32 0, %v2253
      %v2255 = vrot.slane %v2250, %v2254
      %v2257 = vmul.f32 %v2218, %v2255
      %v2258 = vmul.f32 %v2219, %v2255
      %v2259 = vmul.f32 %v2220, %v2255
      %v2260 = vmul.f32 %v2221, %v2255
      %v2261 = vmul.f32 %v2222, %v2255
      %v2262 = vmul.f32 %v2223, %v2255
      %v2263 = vmul.f32 %v2224, %v2255
      %v2264 = vmul.f32 %v2225, %v2255
      %v2265 = vmul.f32 %v2226, %v2255
      %v2266 = vmul.f32 %v2227, %v2255
      %v2267 = vmul.f32 %v2228, %v2255
      %v2268 = vmul.f32 %v2229, %v2255
      %v2269 = vmul.f32 %v2230, %v2255
      %v2270 = vmul.f32 %v2231, %v2255
      %v2271 = vmul.f32 %v2232, %v2255
      %v2272 = vmul.f32 %v2233, %v2255
      %v2273 = vmul.f32 %v2234, %v2255
      %v2274 = vmul.f32 %v2235, %v2255
      %v2275 = vmul.f32 %v2236, %v2255
      %v2276 = vmul.f32 %v2237, %v2255
      %v2277 = vmul.f32 %v2238, %v2255
      %v2278 = vmul.f32 %v2239, %v2255
      %v2279 = vmul.f32 %v2240, %v2255
      %v2280 = vmul.f32 %v2241, %v2255
      %v2281 = vmul.f32 %v2242, %v2255
      %v2282 = vmul.f32 %v2243, %v2255
      %v2283 = vmul.f32 %v2244, %v2255
      %v2284 = vmul.f32 %v2245, %v2255
      %v2285 = vmul.f32 %v2246, %v2255
      %v2286 = vmul.f32 %v2247, %v2255
      %v2287 = vmul.f32 %v2248, %v2255
      %v2288 = vmul.f32 %v2249, %v2255
      %vm2289 = vcmask 64512
      %v2290 = vsel %vm2289, %v2257, 0.0
      %2291 = vadd.xlane.f32.xlu0 %v2290
      %v2292 = vpop.xlane.xlu0 %2291
      %v2293 = vsel %vm2289, %v2258, 0.0
      %2294 = vadd.xlane.f32.xlu0 %v2293
      %v2295 = vpop.xlane.xlu0 %2294
      %v2296 = vsel %vm2289, %v2259, 0.0
      %2297 = vadd.xlane.f32.xlu0 %v2296
      %v2298 = vpop.xlane.xlu0 %2297
      %v2299 = vsel %vm2289, %v2260, 0.0
      %2300 = vadd.xlane.f32.xlu0 %v2299
      %v2301 = vpop.xlane.xlu0 %2300
      %v2302 = vsel %vm2289, %v2261, 0.0
      %2303 = vadd.xlane.f32.xlu0 %v2302
      %v2304 = vpop.xlane.xlu0 %2303
      %v2305 = vsel %vm2289, %v2262, 0.0
      %2306 = vadd.xlane.f32.xlu0 %v2305
      %v2307 = vpop.xlane.xlu0 %2306
      %v2308 = vsel %vm2289, %v2263, 0.0
      %2309 = vadd.xlane.f32.xlu0 %v2308
      %v2310 = vpop.xlane.xlu0 %2309
      %v2311 = vsel %vm2289, %v2264, 0.0
      %2312 = vadd.xlane.f32.xlu0 %v2311
      %v2313 = vpop.xlane.xlu0 %2312
      %v2314 = vsel %vm2289, %v2265, 0.0
      %2315 = vadd.xlane.f32.xlu0 %v2314
      %v2316 = vpop.xlane.xlu0 %2315
      %v2317 = vsel %vm2289, %v2266, 0.0
      %2318 = vadd.xlane.f32.xlu0 %v2317
      %v2319 = vpop.xlane.xlu0 %2318
      %v2320 = vsel %vm2289, %v2267, 0.0
      %2321 = vadd.xlane.f32.xlu0 %v2320
      %v2322 = vpop.xlane.xlu0 %2321
      %v2323 = vsel %vm2289, %v2268, 0.0
      %2324 = vadd.xlane.f32.xlu0 %v2323
      %v2325 = vpop.xlane.xlu0 %2324
      %v2326 = vsel %vm2289, %v2269, 0.0
      %2327 = vadd.xlane.f32.xlu0 %v2326
      %v2328 = vpop.xlane.xlu0 %2327
      %v2329 = vsel %vm2289, %v2270, 0.0
      %2330 = vadd.xlane.f32.xlu0 %v2329
      %v2331 = vpop.xlane.xlu0 %2330
      %v2332 = vsel %vm2289, %v2271, 0.0
      %2333 = vadd.xlane.f32.xlu0 %v2332
      %v2334 = vpop.xlane.xlu0 %2333
      %v2335 = vsel %vm2289, %v2272, 0.0
      %2336 = vadd.xlane.f32.xlu0 %v2335
      %v2337 = vpop.xlane.xlu0 %2336
      %v2338 = vsel %vm2289, %v2273, 0.0
      %2339 = vadd.xlane.f32.xlu0 %v2338
      %v2340 = vpop.xlane.xlu0 %2339
      %v2341 = vsel %vm2289, %v2274, 0.0
      %2342 = vadd.xlane.f32.xlu0 %v2341
      %v2343 = vpop.xlane.xlu0 %2342
      %v2344 = vsel %vm2289, %v2275, 0.0
      %2345 = vadd.xlane.f32.xlu0 %v2344
      %v2346 = vpop.xlane.xlu0 %2345
      %v2347 = vsel %vm2289, %v2276, 0.0
      %2348 = vadd.xlane.f32.xlu0 %v2347
      %v2349 = vpop.xlane.xlu0 %2348
      %v2350 = vsel %vm2289, %v2277, 0.0
      %2351 = vadd.xlane.f32.xlu0 %v2350
      %v2352 = vpop.xlane.xlu0 %2351
      %v2353 = vsel %vm2289, %v2278, 0.0
      %2354 = vadd.xlane.f32.xlu0 %v2353
      %v2355 = vpop.xlane.xlu0 %2354
      %v2356 = vsel %vm2289, %v2279, 0.0
      %2357 = vadd.xlane.f32.xlu0 %v2356
      %v2358 = vpop.xlane.xlu0 %2357
      %v2359 = vsel %vm2289, %v2280, 0.0
      %2360 = vadd.xlane.f32.xlu0 %v2359
      %v2361 = vpop.xlane.xlu0 %2360
      %v2362 = vsel %vm2289, %v2281, 0.0
      %2363 = vadd.xlane.f32.xlu0 %v2362
      %v2364 = vpop.xlane.xlu0 %2363
      %v2365 = vsel %vm2289, %v2282, 0.0
      %2366 = vadd.xlane.f32.xlu0 %v2365
      %v2367 = vpop.xlane.xlu0 %2366
      %v2368 = vsel %vm2289, %v2283, 0.0
      %2369 = vadd.xlane.f32.xlu0 %v2368
      %v2370 = vpop.xlane.xlu0 %2369
      %v2371 = vsel %vm2289, %v2284, 0.0
      %2372 = vadd.xlane.f32.xlu0 %v2371
      %v2373 = vpop.xlane.xlu0 %2372
      %v2374 = vsel %vm2289, %v2285, 0.0
      %2375 = vadd.xlane.f32.xlu0 %v2374
      %v2376 = vpop.xlane.xlu0 %2375
      %v2377 = vsel %vm2289, %v2286, 0.0
      %2378 = vadd.xlane.f32.xlu0 %v2377
      %v2379 = vpop.xlane.xlu0 %2378
      %v2380 = vsel %vm2289, %v2287, 0.0
      %2381 = vadd.xlane.f32.xlu0 %v2380
      %v2382 = vpop.xlane.xlu0 %2381
      %v2383 = vsel %vm2289, %v2288, 0.0
      %2384 = vadd.xlane.f32.xlu0 %v2383
      %v2385 = vpop.xlane.xlu0 %2384
      %v2386 = vld [vmem:[#allocation2] sm:$0x1]
      %v2388 = vlaneseq
      %v2389 = vshrl.u32 %v2388, 7
      %v2390 = vsub.s32 0, %v2389
      %v2391 = vrot.slane %v2386, %v2390
      %2392 = vset.pattern.permute.xlu0 0
      %2393 = vperm.xlu0 %2392, %v2391
      %v2394 = vpop.permute.xlu0 %2393
      %v2396 = vadd.f32 %v2292, %v2394
      %v2397 = vadd.f32 %v2295, %v2394
      %v2398 = vadd.f32 %v2298, %v2394
      %v2399 = vadd.f32 %v2301, %v2394
      %v2400 = vadd.f32 %v2304, %v2394
      %v2401 = vadd.f32 %v2307, %v2394
      %v2402 = vadd.f32 %v2310, %v2394
      %v2403 = vadd.f32 %v2313, %v2394
      %v2404 = vadd.f32 %v2316, %v2394
      %v2405 = vadd.f32 %v2319, %v2394
      %v2406 = vadd.f32 %v2322, %v2394
      %v2407 = vadd.f32 %v2325, %v2394
      %v2408 = vadd.f32 %v2328, %v2394
      %v2409 = vadd.f32 %v2331, %v2394
      %v2410 = vadd.f32 %v2334, %v2394
      %v2411 = vadd.f32 %v2337, %v2394
      %v2412 = vadd.f32 %v2340, %v2394
      %v2413 = vadd.f32 %v2343, %v2394
      %v2414 = vadd.f32 %v2346, %v2394
      %v2415 = vadd.f32 %v2349, %v2394
      %v2416 = vadd.f32 %v2352, %v2394
      %v2417 = vadd.f32 %v2355, %v2394
      %v2418 = vadd.f32 %v2358, %v2394
      %v2419 = vadd.f32 %v2361, %v2394
      %v2420 = vadd.f32 %v2364, %v2394
      %v2421 = vadd.f32 %v2367, %v2394
      %v2422 = vadd.f32 %v2370, %v2394
      %v2423 = vadd.f32 %v2373, %v2394
      %v2424 = vadd.f32 %v2376, %v2394
      %v2425 = vadd.f32 %v2379, %v2394
      %v2426 = vadd.f32 %v2382, %v2394
      %v2427 = vadd.f32 %v2385, %v2394
      %v2428 = vld [vmem:[%s630] sm:$0xff]
      %v2429 = vld [vmem:[%s630 + $0x8] sm:$0xff]
      %v2430 = vld [vmem:[%s630 + $0x10] sm:$0xff]
      %v2431 = vld [vmem:[%s630 + $0x18] sm:$0xff]
      %vm2432 = vcmp.eq.f32.partialorder %v2428, 0.0
      %vm2433 = vcmp.eq.f32.partialorder %v2429, 0.0
      %vm2434 = vcmp.eq.f32.partialorder %v2430, 0.0
      %vm2435 = vcmp.eq.f32.partialorder %v2431, 0.0
      %v2468 = vlaneseq
      %v2469 = vand.u32 %v2468, 127
      %v2470 = vlaneseq
      %v2471 = vshrl.u32 %v2470, 7
      %v2472 = vsub.s32 %v2469, %v2471
      %v2473 = vrot.slane %v2396, %v2472
      %v2474 = vlaneseq
      %v2475 = vshrl.u32 %v2474, 7
      %v2476 = vsub.s32 %v2469, %v2475
      %v2477 = vrot.slane %v2397, %v2476
      %v2478 = vlaneseq
      %v2479 = vshrl.u32 %v2478, 7
      %v2480 = vsub.s32 %v2469, %v2479
      %v2481 = vrot.slane %v2398, %v2480
      %v2482 = vlaneseq
      %v2483 = vshrl.u32 %v2482, 7
      %v2484 = vsub.s32 %v2469, %v2483
      %v2485 = vrot.slane %v2399, %v2484
      %v2486 = vlaneseq
      %v2487 = vshrl.u32 %v2486, 7
      %v2488 = vsub.s32 %v2469, %v2487
      %v2489 = vrot.slane %v2400, %v2488
      %v2490 = vlaneseq
      %v2491 = vshrl.u32 %v2490, 7
      %v2492 = vsub.s32 %v2469, %v2491
      %v2493 = vrot.slane %v2401, %v2492
      %v2494 = vlaneseq
      %v2495 = vshrl.u32 %v2494, 7
      %v2496 = vsub.s32 %v2469, %v2495
      %v2497 = vrot.slane %v2402, %v2496
      %v2498 = vlaneseq
      %v2499 = vshrl.u32 %v2498, 7
      %v2500 = vsub.s32 %v2469, %v2499
      %v2501 = vrot.slane %v2403, %v2500
      %v2502 = vlaneseq
      %v2503 = vshrl.u32 %v2502, 7
      %v2504 = vsub.s32 %v2469, %v2503
      %v2505 = vrot.slane %v2404, %v2504
      %v2506 = vlaneseq
      %v2507 = vshrl.u32 %v2506, 7
      %v2508 = vsub.s32 %v2469, %v2507
      %v2509 = vrot.slane %v2405, %v2508
      %v2510 = vlaneseq
      %v2511 = vshrl.u32 %v2510, 7
      %v2512 = vsub.s32 %v2469, %v2511
      %v2513 = vrot.slane %v2406, %v2512
      %v2514 = vlaneseq
      %v2515 = vshrl.u32 %v2514, 7
      %v2516 = vsub.s32 %v2469, %v2515
      %v2517 = vrot.slane %v2407, %v2516
      %v2518 = vlaneseq
      %v2519 = vshrl.u32 %v2518, 7
      %v2520 = vsub.s32 %v2469, %v2519
      %v2521 = vrot.slane %v2408, %v2520
      %v2522 = vlaneseq
      %v2523 = vshrl.u32 %v2522, 7
      %v2524 = vsub.s32 %v2469, %v2523
      %v2525 = vrot.slane %v2409, %v2524
      %v2526 = vlaneseq
      %v2527 = vshrl.u32 %v2526, 7
      %v2528 = vsub.s32 %v2469, %v2527
      %v2529 = vrot.slane %v2410, %v2528
      %v2530 = vlaneseq
      %v2531 = vshrl.u32 %v2530, 7
      %v2532 = vsub.s32 %v2469, %v2531
      %v2533 = vrot.slane %v2411, %v2532
      %v2534 = vlaneseq
      %v2535 = vshrl.u32 %v2534, 7
      %v2536 = vsub.s32 %v2469, %v2535
      %v2537 = vrot.slane %v2412, %v2536
      %v2538 = vlaneseq
      %v2539 = vshrl.u32 %v2538, 7
      %v2540 = vsub.s32 %v2469, %v2539
      %v2541 = vrot.slane %v2413, %v2540
      %v2542 = vlaneseq
      %v2543 = vshrl.u32 %v2542, 7
      %v2544 = vsub.s32 %v2469, %v2543
      %v2545 = vrot.slane %v2414, %v2544
      %v2546 = vlaneseq
      %v2547 = vshrl.u32 %v2546, 7
      %v2548 = vsub.s32 %v2469, %v2547
      %v2549 = vrot.slane %v2415, %v2548
      %v2550 = vlaneseq
      %v2551 = vshrl.u32 %v2550, 7
      %v2552 = vsub.s32 %v2469, %v2551
      %v2553 = vrot.slane %v2416, %v2552
      %v2554 = vlaneseq
      %v2555 = vshrl.u32 %v2554, 7
      %v2556 = vsub.s32 %v2469, %v2555
      %v2557 = vrot.slane %v2417, %v2556
      %v2558 = vlaneseq
      %v2559 = vshrl.u32 %v2558, 7
      %v2560 = vsub.s32 %v2469, %v2559
      %v2561 = vrot.slane %v2418, %v2560
      %v2562 = vlaneseq
      %v2563 = vshrl.u32 %v2562, 7
      %v2564 = vsub.s32 %v2469, %v2563
      %v2565 = vrot.slane %v2419, %v2564
      %v2566 = vlaneseq
      %v2567 = vshrl.u32 %v2566, 7
      %v2568 = vsub.s32 %v2469, %v2567
      %v2569 = vrot.slane %v2420, %v2568
      %v2570 = vlaneseq
      %v2571 = vshrl.u32 %v2570, 7
      %v2572 = vsub.s32 %v2469, %v2571
      %v2573 = vrot.slane %v2421, %v2572
      %v2574 = vlaneseq
      %v2575 = vshrl.u32 %v2574, 7
      %v2576 = vsub.s32 %v2469, %v2575
      %v2577 = vrot.slane %v2422, %v2576
      %v2578 = vlaneseq
      %v2579 = vshrl.u32 %v2578, 7
      %v2580 = vsub.s32 %v2469, %v2579
      %v2581 = vrot.slane %v2423, %v2580
      %v2582 = vlaneseq
      %v2583 = vshrl.u32 %v2582, 7
      %v2584 = vsub.s32 %v2469, %v2583
      %v2585 = vrot.slane %v2424, %v2584
      %v2586 = vlaneseq
      %v2587 = vshrl.u32 %v2586, 7
      %v2588 = vsub.s32 %v2469, %v2587
      %v2589 = vrot.slane %v2425, %v2588
      %v2590 = vlaneseq
      %v2591 = vshrl.u32 %v2590, 7
      %v2592 = vsub.s32 %v2469, %v2591
      %v2593 = vrot.slane %v2426, %v2592
      %v2594 = vlaneseq
      %v2595 = vshrl.u32 %v2594, 7
      %v2596 = vsub.s32 %v2469, %v2595
      %v2597 = vrot.slane %v2427, %v2596
      %vm2598 = vcmask 1041409
      %v2599 = vsel %vm2598, %v2477, %v2473
      %vm2600 = vcmask 1042434
      %v2601 = vsel %vm2600, %v2481, %v2599
      %vm2602 = vcmask 1043459
      %v2603 = vsel %vm2602, %v2485, %v2601
      %vm2604 = vcmask 1044484
      %v2605 = vsel %vm2604, %v2489, %v2603
      %vm2606 = vcmask 1045509
      %v2607 = vsel %vm2606, %v2493, %v2605
      %vm2608 = vcmask 1046534
      %v2609 = vsel %vm2608, %v2497, %v2607
      %vm2610 = vcmask 1047559
      %v2611 = vsel %vm2610, %v2501, %v2609
      %v2612 = vsel %vm2598, %v2509, %v2505
      %v2613 = vsel %vm2600, %v2513, %v2612
      %v2614 = vsel %vm2602, %v2517, %v2613
      %v2615 = vsel %vm2604, %v2521, %v2614
      %v2616 = vsel %vm2606, %v2525, %v2615
      %v2617 = vsel %vm2608, %v2529, %v2616
      %v2618 = vsel %vm2610, %v2533, %v2617
      %v2619 = vsel %vm2598, %v2541, %v2537
      %v2620 = vsel %vm2600, %v2545, %v2619
      %v2621 = vsel %vm2602, %v2549, %v2620
      %v2622 = vsel %vm2604, %v2553, %v2621
      %v2623 = vsel %vm2606, %v2557, %v2622
      %v2624 = vsel %vm2608, %v2561, %v2623
      %v2625 = vsel %vm2610, %v2565, %v2624
      %v2626 = vsel %vm2598, %v2573, %v2569
      %v2627 = vsel %vm2600, %v2577, %v2626
      %v2628 = vsel %vm2602, %v2581, %v2627
      %v2629 = vsel %vm2604, %v2585, %v2628
      %v2630 = vsel %vm2606, %v2589, %v2629
      %v2631 = vsel %vm2608, %v2593, %v2630
      %v2632 = vsel %vm2610, %v2597, %v2631
      %v2637 = vsel %vm2432, -1e+30, %v2611
      %v2638 = vsel %vm2433, -1e+30, %v2618
      %v2639 = vsel %vm2434, -1e+30, %v2625
      %v2640 = vsel %vm2435, -1e+30, %v2632
      %v2641 = vsel %vm2289, %v2637, -inf
      %2642 = vmax.xlane.f32.xlu0 %v2641
      %v2643 = vpop.xlane.xlu0 %2642
      %v2644 = vsel %vm2289, %v2638, -inf
      %2645 = vmax.xlane.f32.xlu0 %v2644
      %v2646 = vpop.xlane.xlu0 %2645
      %v2647 = vsel %vm2289, %v2639, -inf
      %2648 = vmax.xlane.f32.xlu0 %v2647
      %v2649 = vpop.xlane.xlu0 %2648
      %v2650 = vsel %vm2289, %v2640, -inf
      %2651 = vmax.xlane.f32.xlu0 %v2650
      %v2652 = vpop.xlane.xlu0 %2651
      %v2653 = vsub.f32 %v2637, %v2643
      %v2654 = vsub.f32 %v2638, %v2646
      %v2655 = vsub.f32 %v2639, %v2649
      %v2656 = vsub.f32 %v2640, %v2652
      %v2657 = vmul.f32 %v2653, 1.442695
      %v2658 = vpow.pop %v2657
      %v2659 = vmul.f32 %v2654, 1.442695
      %v2660 = vpow.pop %v2659
      %v2661 = vmul.f32 %v2655, 1.442695
      %v2662 = vpow.pop %v2661
      %v2663 = vmul.f32 %v2656, 1.442695
      %v2664 = vpow.pop %v2663
      %v2665 = vsel %vm2289, %v2658, 0.0
      %2666 = vadd.xlane.f32.xlu0 %v2665
      %v2667 = vpop.xlane.xlu0 %2666
      %v2668 = vsel %vm2289, %v2660, 0.0
      %2669 = vadd.xlane.f32.xlu0 %v2668
      %v2670 = vpop.xlane.xlu0 %2669
      %v2671 = vsel %vm2289, %v2662, 0.0
      %2672 = vadd.xlane.f32.xlu0 %v2671
      %v2673 = vpop.xlane.xlu0 %2672
      %v2674 = vsel %vm2289, %v2664, 0.0
      %2675 = vadd.xlane.f32.xlu0 %v2674
      %v2676 = vpop.xlane.xlu0 %2675
      %v2677 = vrcp.pop %v2667
      %v2678 = vrcp.pop %v2670
      %v2679 = vrcp.pop %v2673
      %v2680 = vrcp.pop %v2676
      %v2681 = vmul.f32 %v2658, %v2677
      %v2682 = vmul.f32 %v2660, %v2678
      %v2683 = vmul.f32 %v2662, %v2679
      %v2684 = vmul.f32 %v2664, %v2680
      %v2685 = vlaneseq
      %v2686 = vshrl.u32 %v2685, 7
      %v2687 = vsub.s32 0, %v2686
      %v2688 = vrot.slane %v2681, %v2687
      %2690 = vbcast.lane.b32.xlu0 %v2688, 256
      %v2691 = vpop.permute.xlu0 %2690
      %v2692 = vlaneseq
      %v2693 = vshrl.u32 %v2692, 7
      %v2694 = vsub.s32 1, %v2693
      %v2695 = vrot.slane %v2681, %v2694
      %2697 = vbcast.lane.b32.xlu0 %v2695, 256
      %v2698 = vpop.permute.xlu0 %2697
      %v2699 = vlaneseq
      %v2700 = vshrl.u32 %v2699, 7
      %v2701 = vsub.s32 2, %v2700
      %v2702 = vrot.slane %v2681, %v2701
      %2704 = vbcast.lane.b32.xlu0 %v2702, 256
      %v2705 = vpop.permute.xlu0 %2704
      %v2706 = vlaneseq
      %v2707 = vshrl.u32 %v2706, 7
      %v2708 = vsub.s32 3, %v2707
      %v2709 = vrot.slane %v2681, %v2708
      %2711 = vbcast.lane.b32.xlu0 %v2709, 256
      %v2712 = vpop.permute.xlu0 %2711
      %v2713 = vlaneseq
      %v2714 = vshrl.u32 %v2713, 7
      %v2715 = vsub.s32 4, %v2714
      %v2716 = vrot.slane %v2681, %v2715
      %2718 = vbcast.lane.b32.xlu0 %v2716, 256
      %v2719 = vpop.permute.xlu0 %2718
      %v2720 = vlaneseq
      %v2721 = vshrl.u32 %v2720, 7
      %v2722 = vsub.s32 5, %v2721
      %v2723 = vrot.slane %v2681, %v2722
      %2725 = vbcast.lane.b32.xlu0 %v2723, 256
      %v2726 = vpop.permute.xlu0 %2725
      %v2727 = vlaneseq
      %v2728 = vshrl.u32 %v2727, 7
      %v2729 = vsub.s32 6, %v2728
      %v2730 = vrot.slane %v2681, %v2729
      %2732 = vbcast.lane.b32.xlu0 %v2730, 256
      %v2733 = vpop.permute.xlu0 %2732
      %v2734 = vlaneseq
      %v2735 = vshrl.u32 %v2734, 7
      %v2736 = vsub.s32 7, %v2735
      %v2737 = vrot.slane %v2681, %v2736
      %2739 = vbcast.lane.b32.xlu0 %v2737, 256
      %v2740 = vpop.permute.xlu0 %2739
      %v2741 = vlaneseq
      %v2742 = vshrl.u32 %v2741, 7
      %v2743 = vsub.s32 0, %v2742
      %v2744 = vrot.slane %v2682, %v2743
      %2746 = vbcast.lane.b32.xlu0 %v2744, 256
      %v2747 = vpop.permute.xlu0 %2746
      %v2748 = vlaneseq
      %v2749 = vshrl.u32 %v2748, 7
      %v2750 = vsub.s32 1, %v2749
      %v2751 = vrot.slane %v2682, %v2750
      %2753 = vbcast.lane.b32.xlu0 %v2751, 256
      %v2754 = vpop.permute.xlu0 %2753
      %v2755 = vlaneseq
      %v2756 = vshrl.u32 %v2755, 7
      %v2757 = vsub.s32 2, %v2756
      %v2758 = vrot.slane %v2682, %v2757
      %2760 = vbcast.lane.b32.xlu0 %v2758, 256
      %v2761 = vpop.permute.xlu0 %2760
      %v2762 = vlaneseq
      %v2763 = vshrl.u32 %v2762, 7
      %v2764 = vsub.s32 3, %v2763
      %v2765 = vrot.slane %v2682, %v2764
      %2767 = vbcast.lane.b32.xlu0 %v2765, 256
      %v2768 = vpop.permute.xlu0 %2767
      %v2769 = vlaneseq
      %v2770 = vshrl.u32 %v2769, 7
      %v2771 = vsub.s32 4, %v2770
      %v2772 = vrot.slane %v2682, %v2771
      %2774 = vbcast.lane.b32.xlu0 %v2772, 256
      %v2775 = vpop.permute.xlu0 %2774
      %v2776 = vlaneseq
      %v2777 = vshrl.u32 %v2776, 7
      %v2778 = vsub.s32 5, %v2777
      %v2779 = vrot.slane %v2682, %v2778
      %2781 = vbcast.lane.b32.xlu0 %v2779, 256
      %v2782 = vpop.permute.xlu0 %2781
      %v2783 = vlaneseq
      %v2784 = vshrl.u32 %v2783, 7
      %v2785 = vsub.s32 6, %v2784
      %v2786 = vrot.slane %v2682, %v2785
      %2788 = vbcast.lane.b32.xlu0 %v2786, 256
      %v2789 = vpop.permute.xlu0 %2788
      %v2790 = vlaneseq
      %v2791 = vshrl.u32 %v2790, 7
      %v2792 = vsub.s32 7, %v2791
      %v2793 = vrot.slane %v2682, %v2792
      %2795 = vbcast.lane.b32.xlu0 %v2793, 256
      %v2796 = vpop.permute.xlu0 %2795
      %v2797 = vlaneseq
      %v2798 = vshrl.u32 %v2797, 7
      %v2799 = vsub.s32 0, %v2798
      %v2800 = vrot.slane %v2683, %v2799
      %2802 = vbcast.lane.b32.xlu0 %v2800, 256
      %v2803 = vpop.permute.xlu0 %2802
      %v2804 = vlaneseq
      %v2805 = vshrl.u32 %v2804, 7
      %v2806 = vsub.s32 1, %v2805
      %v2807 = vrot.slane %v2683, %v2806
      %2809 = vbcast.lane.b32.xlu0 %v2807, 256
      %v2810 = vpop.permute.xlu0 %2809
      %v2811 = vlaneseq
      %v2812 = vshrl.u32 %v2811, 7
      %v2813 = vsub.s32 2, %v2812
      %v2814 = vrot.slane %v2683, %v2813
      %2816 = vbcast.lane.b32.xlu0 %v2814, 256
      %v2817 = vpop.permute.xlu0 %2816
      %v2818 = vlaneseq
      %v2819 = vshrl.u32 %v2818, 7
      %v2820 = vsub.s32 3, %v2819
      %v2821 = vrot.slane %v2683, %v2820
      %2823 = vbcast.lane.b32.xlu0 %v2821, 256
      %v2824 = vpop.permute.xlu0 %2823
      %v2825 = vlaneseq
      %v2826 = vshrl.u32 %v2825, 7
      %v2827 = vsub.s32 4, %v2826
      %v2828 = vrot.slane %v2683, %v2827
      %2830 = vbcast.lane.b32.xlu0 %v2828, 256
      %v2831 = vpop.permute.xlu0 %2830
      %v2832 = vlaneseq
      %v2833 = vshrl.u32 %v2832, 7
      %v2834 = vsub.s32 5, %v2833
      %v2835 = vrot.slane %v2683, %v2834
      %2837 = vbcast.lane.b32.xlu0 %v2835, 256
      %v2838 = vpop.permute.xlu0 %2837
      %v2839 = vlaneseq
      %v2840 = vshrl.u32 %v2839, 7
      %v2841 = vsub.s32 6, %v2840
      %v2842 = vrot.slane %v2683, %v2841
      %2844 = vbcast.lane.b32.xlu0 %v2842, 256
      %v2845 = vpop.permute.xlu0 %2844
      %v2846 = vlaneseq
      %v2847 = vshrl.u32 %v2846, 7
      %v2848 = vsub.s32 7, %v2847
      %v2849 = vrot.slane %v2683, %v2848
      %2851 = vbcast.lane.b32.xlu0 %v2849, 256
      %v2852 = vpop.permute.xlu0 %2851
      %v2853 = vlaneseq
      %v2854 = vshrl.u32 %v2853, 7
      %v2855 = vsub.s32 0, %v2854
      %v2856 = vrot.slane %v2684, %v2855
      %2858 = vbcast.lane.b32.xlu0 %v2856, 256
      %v2859 = vpop.permute.xlu0 %2858
      %v2860 = vlaneseq
      %v2861 = vshrl.u32 %v2860, 7
      %v2862 = vsub.s32 1, %v2861
      %v2863 = vrot.slane %v2684, %v2862
      %2865 = vbcast.lane.b32.xlu0 %v2863, 256
      %v2866 = vpop.permute.xlu0 %2865
      %v2867 = vlaneseq
      %v2868 = vshrl.u32 %v2867, 7
      %v2869 = vsub.s32 2, %v2868
      %v2870 = vrot.slane %v2684, %v2869
      %2872 = vbcast.lane.b32.xlu0 %v2870, 256
      %v2873 = vpop.permute.xlu0 %2872
      %v2874 = vlaneseq
      %v2875 = vshrl.u32 %v2874, 7
      %v2876 = vsub.s32 3, %v2875
      %v2877 = vrot.slane %v2684, %v2876
      %2879 = vbcast.lane.b32.xlu0 %v2877, 256
      %v2880 = vpop.permute.xlu0 %2879
      %v2881 = vlaneseq
      %v2882 = vshrl.u32 %v2881, 7
      %v2883 = vsub.s32 4, %v2882
      %v2884 = vrot.slane %v2684, %v2883
      %2886 = vbcast.lane.b32.xlu0 %v2884, 256
      %v2887 = vpop.permute.xlu0 %2886
      %v2888 = vlaneseq
      %v2889 = vshrl.u32 %v2888, 7
      %v2890 = vsub.s32 5, %v2889
      %v2891 = vrot.slane %v2684, %v2890
      %2893 = vbcast.lane.b32.xlu0 %v2891, 256
      %v2894 = vpop.permute.xlu0 %2893
      %v2895 = vlaneseq
      %v2896 = vshrl.u32 %v2895, 7
      %v2897 = vsub.s32 6, %v2896
      %v2898 = vrot.slane %v2684, %v2897
      %2900 = vbcast.lane.b32.xlu0 %v2898, 256
      %v2901 = vpop.permute.xlu0 %2900
      %v2902 = vlaneseq
      %v2903 = vshrl.u32 %v2902, 7
      %v2904 = vsub.s32 7, %v2903
      %v2905 = vrot.slane %v2684, %v2904
      %2907 = vbcast.lane.b32.xlu0 %v2905, 256
      %v2908 = vpop.permute.xlu0 %2907
      %v2909 = vmul.f32 %v2691, %v1729
      %v2910 = vmul.f32 %v2698, %v1734
      %v2911 = vmul.f32 %v2705, %v1739
      %v2912 = vmul.f32 %v2712, %v1744
      %v2913 = vmul.f32 %v2719, %v1749
      %v2914 = vmul.f32 %v2726, %v1754
      %v2915 = vmul.f32 %v2733, %v1759
      %v2916 = vmul.f32 %v2740, %v1764
      %v2917 = vmul.f32 %v2747, %v1769
      %v2918 = vmul.f32 %v2754, %v1774
      %v2919 = vmul.f32 %v2761, %v1779
      %v2920 = vmul.f32 %v2768, %v1784
      %v2921 = vmul.f32 %v2775, %v1789
      %v2922 = vmul.f32 %v2782, %v1794
      %v2923 = vmul.f32 %v2789, %v1799
      %v2924 = vmul.f32 %v2796, %v1804
      %v2925 = vmul.f32 %v2803, %v1809
      %v2926 = vmul.f32 %v2810, %v1814
      %v2927 = vmul.f32 %v2817, %v1819
      %v2928 = vmul.f32 %v2824, %v1824
      %v2929 = vmul.f32 %v2831, %v1829
      %v2930 = vmul.f32 %v2838, %v1834
      %v2931 = vmul.f32 %v2845, %v1839
      %v2932 = vmul.f32 %v2852, %v1844
      %v2933 = vmul.f32 %v2859, %v1849
      %v2934 = vmul.f32 %v2866, %v1854
      %v2935 = vmul.f32 %v2873, %v1859
      %v2936 = vmul.f32 %v2880, %v1864
      %v2937 = vmul.f32 %v2887, %v1869
      %v2938 = vmul.f32 %v2894, %v1874
      %v2939 = vmul.f32 %v2901, %v1879
      %v2940 = vmul.f32 %v2908, %v1884
      %v2941 = vsel %vm1896, %v2909, 0.0
      %v2942 = vrot.slane %v2941, 4
      %v2943 = vadd.f32 %v2941, %v2942
      %v2944 = vrot.slane %v2943, 2
      %v2945 = vadd.f32 %v2943, %v2944
      %v2946 = vrot.slane %v2945, 1
      %v2947 = vadd.f32 %v2945, %v2946
      %v2948 = vsel %vm1896, %v2910, 0.0
      %v2949 = vrot.slane %v2948, 4
      %v2950 = vadd.f32 %v2948, %v2949
      %v2951 = vrot.slane %v2950, 2
      %v2952 = vadd.f32 %v2950, %v2951
      %v2953 = vrot.slane %v2952, 1
      %v2954 = vadd.f32 %v2952, %v2953
      %v2955 = vsel %vm1896, %v2911, 0.0
      %v2956 = vrot.slane %v2955, 4
      %v2957 = vadd.f32 %v2955, %v2956
      %v2958 = vrot.slane %v2957, 2
      %v2959 = vadd.f32 %v2957, %v2958
      %v2960 = vrot.slane %v2959, 1
      %v2961 = vadd.f32 %v2959, %v2960
      %v2962 = vsel %vm1896, %v2912, 0.0
      %v2963 = vrot.slane %v2962, 4
      %v2964 = vadd.f32 %v2962, %v2963
      %v2965 = vrot.slane %v2964, 2
      %v2966 = vadd.f32 %v2964, %v2965
      %v2967 = vrot.slane %v2966, 1
      %v2968 = vadd.f32 %v2966, %v2967
      %v2969 = vsel %vm1896, %v2913, 0.0
      %v2970 = vrot.slane %v2969, 4
      %v2971 = vadd.f32 %v2969, %v2970
      %v2972 = vrot.slane %v2971, 2
      %v2973 = vadd.f32 %v2971, %v2972
      %v2974 = vrot.slane %v2973, 1
      %v2975 = vadd.f32 %v2973, %v2974
      %v2976 = vsel %vm1896, %v2914, 0.0
      %v2977 = vrot.slane %v2976, 4
      %v2978 = vadd.f32 %v2976, %v2977
      %v2979 = vrot.slane %v2978, 2
      %v2980 = vadd.f32 %v2978, %v2979
      %v2981 = vrot.slane %v2980, 1
      %v2982 = vadd.f32 %v2980, %v2981
      %v2983 = vsel %vm1896, %v2915, 0.0
      %v2984 = vrot.slane %v2983, 4
      %v2985 = vadd.f32 %v2983, %v2984
      %v2986 = vrot.slane %v2985, 2
      %v2987 = vadd.f32 %v2985, %v2986
      %v2988 = vrot.slane %v2987, 1
      %v2989 = vadd.f32 %v2987, %v2988
      %v2990 = vsel %vm1896, %v2916, 0.0
      %v2991 = vrot.slane %v2990, 4
      %v2992 = vadd.f32 %v2990, %v2991
      %v2993 = vrot.slane %v2992, 2
      %v2994 = vadd.f32 %v2992, %v2993
      %v2995 = vrot.slane %v2994, 1
      %v2996 = vadd.f32 %v2994, %v2995
      %v2997 = vsel %vm1896, %v2917, 0.0
      %v2998 = vrot.slane %v2997, 4
      %v2999 = vadd.f32 %v2997, %v2998
      %v3000 = vrot.slane %v2999, 2
      %v3001 = vadd.f32 %v2999, %v3000
      %v3002 = vrot.slane %v3001, 1
      %v3003 = vadd.f32 %v3001, %v3002
      %v3004 = vsel %vm1896, %v2918, 0.0
      %v3005 = vrot.slane %v3004, 4
      %v3006 = vadd.f32 %v3004, %v3005
      %v3007 = vrot.slane %v3006, 2
      %v3008 = vadd.f32 %v3006, %v3007
      %v3009 = vrot.slane %v3008, 1
      %v3010 = vadd.f32 %v3008, %v3009
      %v3011 = vsel %vm1896, %v2919, 0.0
      %v3012 = vrot.slane %v3011, 4
      %v3013 = vadd.f32 %v3011, %v3012
      %v3014 = vrot.slane %v3013, 2
      %v3015 = vadd.f32 %v3013, %v3014
      %v3016 = vrot.slane %v3015, 1
      %v3017 = vadd.f32 %v3015, %v3016
      %v3018 = vsel %vm1896, %v2920, 0.0
      %v3019 = vrot.slane %v3018, 4
      %v3020 = vadd.f32 %v3018, %v3019
      %v3021 = vrot.slane %v3020, 2
      %v3022 = vadd.f32 %v3020, %v3021
      %v3023 = vrot.slane %v3022, 1
      %v3024 = vadd.f32 %v3022, %v3023
      %v3025 = vsel %vm1896, %v2921, 0.0
      %v3026 = vrot.slane %v3025, 4
      %v3027 = vadd.f32 %v3025, %v3026
      %v3028 = vrot.slane %v3027, 2
      %v3029 = vadd.f32 %v3027, %v3028
      %v3030 = vrot.slane %v3029, 1
      %v3031 = vadd.f32 %v3029, %v3030
      %v3032 = vsel %vm1896, %v2922, 0.0
      %v3033 = vrot.slane %v3032, 4
      %v3034 = vadd.f32 %v3032, %v3033
      %v3035 = vrot.slane %v3034, 2
      %v3036 = vadd.f32 %v3034, %v3035
      %v3037 = vrot.slane %v3036, 1
      %v3038 = vadd.f32 %v3036, %v3037
      %v3039 = vsel %vm1896, %v2923, 0.0
      %v3040 = vrot.slane %v3039, 4
      %v3041 = vadd.f32 %v3039, %v3040
      %v3042 = vrot.slane %v3041, 2
      %v3043 = vadd.f32 %v3041, %v3042
      %v3044 = vrot.slane %v3043, 1
      %v3045 = vadd.f32 %v3043, %v3044
      %v3046 = vsel %vm1896, %v2924, 0.0
      %v3047 = vrot.slane %v3046, 4
      %v3048 = vadd.f32 %v3046, %v3047
      %v3049 = vrot.slane %v3048, 2
      %v3050 = vadd.f32 %v3048, %v3049
      %v3051 = vrot.slane %v3050, 1
      %v3052 = vadd.f32 %v3050, %v3051
      %v3053 = vsel %vm1896, %v2925, 0.0
      %v3054 = vrot.slane %v3053, 4
      %v3055 = vadd.f32 %v3053, %v3054
      %v3056 = vrot.slane %v3055, 2
      %v3057 = vadd.f32 %v3055, %v3056
      %v3058 = vrot.slane %v3057, 1
      %v3059 = vadd.f32 %v3057, %v3058
      %v3060 = vsel %vm1896, %v2926, 0.0
      %v3061 = vrot.slane %v3060, 4
      %v3062 = vadd.f32 %v3060, %v3061
      %v3063 = vrot.slane %v3062, 2
      %v3064 = vadd.f32 %v3062, %v3063
      %v3065 = vrot.slane %v3064, 1
      %v3066 = vadd.f32 %v3064, %v3065
      %v3067 = vsel %vm1896, %v2927, 0.0
      %v3068 = vrot.slane %v3067, 4
      %v3069 = vadd.f32 %v3067, %v3068
      %v3070 = vrot.slane %v3069, 2
      %v3071 = vadd.f32 %v3069, %v3070
      %v3072 = vrot.slane %v3071, 1
      %v3073 = vadd.f32 %v3071, %v3072
      %v3074 = vsel %vm1896, %v2928, 0.0
      %v3075 = vrot.slane %v3074, 4
      %v3076 = vadd.f32 %v3074, %v3075
      %v3077 = vrot.slane %v3076, 2
      %v3078 = vadd.f32 %v3076, %v3077
      %v3079 = vrot.slane %v3078, 1
      %v3080 = vadd.f32 %v3078, %v3079
      %v3081 = vsel %vm1896, %v2929, 0.0
      %v3082 = vrot.slane %v3081, 4
      %v3083 = vadd.f32 %v3081, %v3082
      %v3084 = vrot.slane %v3083, 2
      %v3085 = vadd.f32 %v3083, %v3084
      %v3086 = vrot.slane %v3085, 1
      %v3087 = vadd.f32 %v3085, %v3086
      %v3088 = vsel %vm1896, %v2930, 0.0
      %v3089 = vrot.slane %v3088, 4
      %v3090 = vadd.f32 %v3088, %v3089
      %v3091 = vrot.slane %v3090, 2
      %v3092 = vadd.f32 %v3090, %v3091
      %v3093 = vrot.slane %v3092, 1
      %v3094 = vadd.f32 %v3092, %v3093
      %v3095 = vsel %vm1896, %v2931, 0.0
      %v3096 = vrot.slane %v3095, 4
      %v3097 = vadd.f32 %v3095, %v3096
      %v3098 = vrot.slane %v3097, 2
      %v3099 = vadd.f32 %v3097, %v3098
      %v3100 = vrot.slane %v3099, 1
      %v3101 = vadd.f32 %v3099, %v3100
      %v3102 = vsel %vm1896, %v2932, 0.0
      %v3103 = vrot.slane %v3102, 4
      %v3104 = vadd.f32 %v3102, %v3103
      %v3105 = vrot.slane %v3104, 2
      %v3106 = vadd.f32 %v3104, %v3105
      %v3107 = vrot.slane %v3106, 1
      %v3108 = vadd.f32 %v3106, %v3107
      %v3109 = vsel %vm1896, %v2933, 0.0
      %v3110 = vrot.slane %v3109, 4
      %v3111 = vadd.f32 %v3109, %v3110
      %v3112 = vrot.slane %v3111, 2
      %v3113 = vadd.f32 %v3111, %v3112
      %v3114 = vrot.slane %v3113, 1
      %v3115 = vadd.f32 %v3113, %v3114
      %v3116 = vsel %vm1896, %v2934, 0.0
      %v3117 = vrot.slane %v3116, 4
      %v3118 = vadd.f32 %v3116, %v3117
      %v3119 = vrot.slane %v3118, 2
      %v3120 = vadd.f32 %v3118, %v3119
      %v3121 = vrot.slane %v3120, 1
      %v3122 = vadd.f32 %v3120, %v3121
      %v3123 = vsel %vm1896, %v2935, 0.0
      %v3124 = vrot.slane %v3123, 4
      %v3125 = vadd.f32 %v3123, %v3124
      %v3126 = vrot.slane %v3125, 2
      %v3127 = vadd.f32 %v3125, %v3126
      %v3128 = vrot.slane %v3127, 1
      %v3129 = vadd.f32 %v3127, %v3128
      %v3130 = vsel %vm1896, %v2936, 0.0
      %v3131 = vrot.slane %v3130, 4
      %v3132 = vadd.f32 %v3130, %v3131
      %v3133 = vrot.slane %v3132, 2
      %v3134 = vadd.f32 %v3132, %v3133
      %v3135 = vrot.slane %v3134, 1
      %v3136 = vadd.f32 %v3134, %v3135
      %v3137 = vsel %vm1896, %v2937, 0.0
      %v3138 = vrot.slane %v3137, 4
      %v3139 = vadd.f32 %v3137, %v3138
      %v3140 = vrot.slane %v3139, 2
      %v3141 = vadd.f32 %v3139, %v3140
      %v3142 = vrot.slane %v3141, 1
      %v3143 = vadd.f32 %v3141, %v3142
      %v3144 = vsel %vm1896, %v2938, 0.0
      %v3145 = vrot.slane %v3144, 4
      %v3146 = vadd.f32 %v3144, %v3145
      %v3147 = vrot.slane %v3146, 2
      %v3148 = vadd.f32 %v3146, %v3147
      %v3149 = vrot.slane %v3148, 1
      %v3150 = vadd.f32 %v3148, %v3149
      %v3151 = vsel %vm1896, %v2939, 0.0
      %v3152 = vrot.slane %v3151, 4
      %v3153 = vadd.f32 %v3151, %v3152
      %v3154 = vrot.slane %v3153, 2
      %v3155 = vadd.f32 %v3153, %v3154
      %v3156 = vrot.slane %v3155, 1
      %v3157 = vadd.f32 %v3155, %v3156
      %v3158 = vsel %vm1896, %v2940, 0.0
      %v3159 = vrot.slane %v3158, 4
      %v3160 = vadd.f32 %v3158, %v3159
      %v3161 = vrot.slane %v3160, 2
      %v3162 = vadd.f32 %v3160, %v3161
      %v3163 = vrot.slane %v3162, 1
      %v3164 = vadd.f32 %v3162, %v3163
      %v3197 = vsel %vm2598, %v2954, %v2947
      %v3198 = vsel %vm2600, %v2961, %v3197
      %v3199 = vsel %vm2602, %v2968, %v3198
      %v3200 = vsel %vm2604, %v2975, %v3199
      %v3201 = vsel %vm2606, %v2982, %v3200
      %v3202 = vsel %vm2608, %v2989, %v3201
      %v3203 = vsel %vm2610, %v2996, %v3202
      %v3204 = vsel %vm2598, %v3010, %v3003
      %v3205 = vsel %vm2600, %v3017, %v3204
      %v3206 = vsel %vm2602, %v3024, %v3205
      %v3207 = vsel %vm2604, %v3031, %v3206
      %v3208 = vsel %vm2606, %v3038, %v3207
      %v3209 = vsel %vm2608, %v3045, %v3208
      %v3210 = vsel %vm2610, %v3052, %v3209
      %v3211 = vsel %vm2598, %v3066, %v3059
      %v3212 = vsel %vm2600, %v3073, %v3211
      %v3213 = vsel %vm2602, %v3080, %v3212
      %v3214 = vsel %vm2604, %v3087, %v3213
      %v3215 = vsel %vm2606, %v3094, %v3214
      %v3216 = vsel %vm2608, %v3101, %v3215
      %v3217 = vsel %vm2610, %v3108, %v3216
      %v3218 = vsel %vm2598, %v3122, %v3115
      %v3219 = vsel %vm2600, %v3129, %v3218
      %v3220 = vsel %vm2602, %v3136, %v3219
      %v3221 = vsel %vm2604, %v3143, %v3220
      %v3222 = vsel %vm2606, %v3150, %v3221
      %v3223 = vsel %vm2608, %v3157, %v3222
      %v3224 = vsel %vm2610, %v3164, %v3223
      %3229 = vst.msk [vmem:[%s636] sm:$0xff] %vm1896, %v3203
      %3230 = vst.msk [vmem:[%s636 + $0x8] sm:$0xff] %vm1896, %v3210
      %3231 = vst.msk [vmem:[%s636 + $0x10] sm:$0xff] %vm1896, %v3217
      %3232 = vst.msk [vmem:[%s636 + $0x18] sm:$0xff] %vm1896, %v3224
      %v3233 = vld [vmem:[%s12] sm:$0xff]
      %v3234 = vld [vmem:[%s12 + $0x8] sm:$0xff]
      %v3235 = vld [vmem:[%s13] sm:$0x1]
      %v3237 = vlaneseq
      %v3238 = vshrl.u32 %v3237, 7
      %v3239 = vsub.s32 0, %v3238
      %v3240 = vrot.slane %v3235, %v3239
      %v3242 = vsel %vm1896, %v3203, 0
      %v3244 = vsel %vm1896, %v3210, 0
      %v3246 = vsel %vm1896, %v3217, 0
      %v3248 = vsel %vm1896, %v3224, 0
      %3250 = vmatprep.subr.mxu0 0.0
      %3251 = vmatpush1.msra.mxu0 %v3233
      %3252 = vmatprep.subr.mxu0 0.0
      %3253 = vmatpush1.msra.mxu0 %v3234
      %3254 = vmatprep.subr.mxu0 0.0
      %3255 = vmatpush1.msra.mxu0 0.0
      %3256 = vmatprep.subr.mxu0 0.0
      %3257 = vmatpush1.msra.mxu0 0.0
      %3258 = vmatprep.subr.mxu0 0.0
      %3259 = vmatpush1.msra.mxu0 0.0
      %3260 = vmatprep.subr.mxu0 0.0
      %3261 = vmatpush1.msra.mxu0 0.0
      %3262 = vmatprep.subr.mxu0 0.0
      %3263 = vmatpush1.msra.mxu0 0.0
      %3264 = vmatprep.subr.mxu0 0.0
      %3265 = vmatpush1.msra.mxu0 0.0
      %3266 = vmatprep.subr.mxu0 0.0
      %3267 = vmatpush1.msra.mxu0 0.0
      %3268 = vmatprep.subr.mxu0 0.0
      %3269 = vmatpush1.msra.mxu0 0.0
      %3270 = vmatprep.subr.mxu0 0.0
      %3271 = vmatpush1.msra.mxu0 0.0
      %3272 = vmatprep.subr.mxu0 0.0
      %3273 = vmatpush1.msra.mxu0 0.0
      %3274 = vmatprep.subr.mxu0 0.0
      %3275 = vmatpush1.msra.mxu0 0.0
      %3276 = vmatprep.subr.mxu0 0.0
      %3277 = vmatpush1.msra.mxu0 0.0
      %3278 = vmatprep.subr.mxu0 0.0
      %3279 = vmatpush1.msra.mxu0 0.0
      %3280 = vmatprep.subr.mxu0 0.0
      %3281 = vmatpush1.msra.mxu0 0.0
      %3282 = vmatprep.subr.mxu0 0.0
      %3283 = vmatpush1.msra.mxu0 0.0
      %3284 = vmatprep.subr.mxu0 0.0
      %3285 = vmatpush1.msra.mxu0 0.0
      %3286 = vmatprep.subr.mxu0 0.0
      %3287 = vmatpush1.msra.mxu0 0.0
      %3288 = vmatprep.subr.mxu0 0.0
      %3289 = vmatpush1.msra.mxu0 0.0
      %3290 = vmatprep.subr.mxu0 0.0
      %3291 = vmatpush1.msra.mxu0 0.0
      %3292 = vmatprep.subr.mxu0 0.0
      %3293 = vmatpush1.msra.mxu0 0.0
      %3294 = vmatprep.subr.mxu0 0.0
      %3295 = vmatpush1.msra.mxu0 0.0
      %3296 = vmatprep.subr.mxu0 0.0
      %3297 = vmatpush1.msra.mxu0 0.0
      %3298 = vmatprep.subr.mxu0 0.0
      %3299 = vmatpush1.msra.mxu0 0.0
      %3300 = vmatprep.subr.mxu0 0.0
      %3301 = vmatpush1.msra.mxu0 0.0
      %3302 = vmatprep.subr.mxu0 0.0
      %3303 = vmatpush1.msra.mxu0 0.0
      %3304 = vmatprep.subr.mxu0 0.0
      %3305 = vmatpush1.msra.mxu0 0.0
      %3306 = vmatprep.subr.mxu0 0.0
      %3307 = vmatpush1.msra.mxu0 0.0
      %3308 = vmatprep.subr.mxu0 0.0
      %3309 = vmatpush1.msra.mxu0 0.0
      %3310 = vmatprep.subr.mxu0 0.0
      %3311 = vmatpush1.msra.mxu0 0.0
      %3312 = vmatprep.subr.mxu0 0.0
      %3313 = vmatpush1.msra.mxu0 0.0
      %3314 = vmatprep.mubr.f32.mxu0 0.0
      %3315 = vmatmul.mubr.f32.gmra.mrb[0].mxu0 %v3242
      %v3316 = vpop.f32.mrb[0].mxu0
      %v3317 = vadd.f32 %v3240, %v3316
      %v3318 = vpop.f32.mrb[0].mxu0
      %3319 = vmatprep.mubr.f32.mxu0 0.0
      %3320 = vmatmul.mubr.f32.gmra.mrb[0].mxu0 %v3244
      %v3321 = vpop.f32.mrb[0].mxu0
      %v3322 = vadd.f32 %v3240, %v3321
      %v3323 = vpop.f32.mrb[0].mxu0
      %3324 = vmatprep.mubr.f32.mxu0 0.0
      %3325 = vmatmul.mubr.f32.gmra.mrb[0].mxu0 %v3246
      %v3326 = vpop.f32.mrb[0].mxu0
      %v3327 = vadd.f32 %v3240, %v3326
      %v3328 = vpop.f32.mrb[0].mxu0
      %3329 = vmatprep.mubr.f32.mxu0 0.0
      %3330 = vmatmul.mubr.f32.gmra.mrb[0].mxu0 %v3248
      %v3331 = vpop.f32.mrb[0].mxu0
      %v3332 = vadd.f32 %v3240, %v3331
      %v3333 = vpop.f32.mrb[0].mxu0
      %3334 = vdwg.mxu0
      %vm3335 = vcmp.ge.f32.partialorder %v3317, 0.0
      %vm3336 = vcmp.ge.f32.partialorder %v3322, 0.0
      %vm3337 = vcmp.ge.f32.partialorder %v3327, 0.0
      %vm3338 = vcmp.ge.f32.partialorder %v3332, 0.0
      %v3339 = vmul.f32 %v3317, 0.2
      %v3340 = vmul.f32 %v3322, 0.2
      %v3341 = vmul.f32 %v3327, 0.2
      %v3342 = vmul.f32 %v3332, 0.2
      %v3343 = vsel %vm3335, %v3317, %v3339
      %v3344 = vsel %vm3336, %v3322, %v3340
      %v3345 = vsel %vm3337, %v3327, %v3341
      %v3346 = vsel %vm3338, %v3332, %v3342
      %v3347 = vld [vmem:[%s14] sm:$0xff]
      %v3348 = vld [vmem:[%s14 + $0x8] sm:$0xff]
      %v3349 = vld [vmem:[%s14 + $0x10] sm:$0xff]
      %v3350 = vld [vmem:[%s14 + $0x18] sm:$0x3f]
      %v3351 = vld [vmem:[%s15] sm:$0x1]
      %v3353 = vlaneseq
      %v3354 = vshrl.u32 %v3353, 7
      %v3355 = vsub.s32 0, %v3354
      %v3356 = vrot.slane %v3351, %v3355
      %vm3358 = vcmask 244736
      %v3360 = vsel %vm3358, %v3343, 0
      %v3363 = vsel %vm3358, %v3344, 0
      %v3366 = vsel %vm3358, %v3345, 0
      %v3369 = vsel %vm3358, %v3346, 0
      %vm3371 = vcmask 1045504
      %v3373 = vsel %vm3371, %v3350, 0
      %3375 = vmatprep.subr.mxu0 0.0
      %3376 = vmatpush1.msra.mxu0 %v3347
      %3377 = vmatprep.subr.mxu0 0.0
      %3378 = vmatpush1.msra.mxu0 %v3348
      %3379 = vmatprep.subr.mxu0 0.0
      %3380 = vmatpush1.msra.mxu0 %v3349
      %3381 = vmatprep.subr.mxu0 0.0
      %3382 = vmatpush1.msra.mxu0 %v3373
      %3383 = vmatprep.subr.mxu0 0.0
      %3384 = vmatpush1.msra.mxu0 0.0
      %3385 = vmatprep.subr.mxu0 0.0
      %3386 = vmatpush1.msra.mxu0 0.0
      %3387 = vmatprep.subr.mxu0 0.0
      %3388 = vmatpush1.msra.mxu0 0.0
      %3389 = vmatprep.subr.mxu0 0.0
      %3390 = vmatpush1.msra.mxu0 0.0
      %3391 = vmatprep.subr.mxu0 0.0
      %3392 = vmatpush1.msra.mxu0 0.0
      %3393 = vmatprep.subr.mxu0 0.0
      %3394 = vmatpush1.msra.mxu0 0.0
      %3395 = vmatprep.subr.mxu0 0.0
      %3396 = vmatpush1.msra.mxu0 0.0
      %3397 = vmatprep.subr.mxu0 0.0
      %3398 = vmatpush1.msra.mxu0 0.0
      %3399 = vmatprep.subr.mxu0 0.0
      %3400 = vmatpush1.msra.mxu0 0.0
      %3401 = vmatprep.subr.mxu0 0.0
      %3402 = vmatpush1.msra.mxu0 0.0
      %3403 = vmatprep.subr.mxu0 0.0
      %3404 = vmatpush1.msra.mxu0 0.0
      %3405 = vmatprep.subr.mxu0 0.0
      %3406 = vmatpush1.msra.mxu0 0.0
      %3407 = vmatprep.subr.mxu0 0.0
      %3408 = vmatpush1.msra.mxu0 0.0
      %3409 = vmatprep.subr.mxu0 0.0
      %3410 = vmatpush1.msra.mxu0 0.0
      %3411 = vmatprep.subr.mxu0 0.0
      %3412 = vmatpush1.msra.mxu0 0.0
      %3413 = vmatprep.subr.mxu0 0.0
      %3414 = vmatpush1.msra.mxu0 0.0
      %3415 = vmatprep.subr.mxu0 0.0
      %3416 = vmatpush1.msra.mxu0 0.0
      %3417 = vmatprep.subr.mxu0 0.0
      %3418 = vmatpush1.msra.mxu0 0.0
      %3419 = vmatprep.subr.mxu0 0.0
      %3420 = vmatpush1.msra.mxu0 0.0
      %3421 = vmatprep.subr.mxu0 0.0
      %3422 = vmatpush1.msra.mxu0 0.0
      %3423 = vmatprep.subr.mxu0 0.0
      %3424 = vmatpush1.msra.mxu0 0.0
      %3425 = vmatprep.subr.mxu0 0.0
      %3426 = vmatpush1.msra.mxu0 0.0
      %3427 = vmatprep.subr.mxu0 0.0
      %3428 = vmatpush1.msra.mxu0 0.0
      %3429 = vmatprep.subr.mxu0 0.0
      %3430 = vmatpush1.msra.mxu0 0.0
      %3431 = vmatprep.subr.mxu0 0.0
      %3432 = vmatpush1.msra.mxu0 0.0
      %3433 = vmatprep.subr.mxu0 0.0
      %3434 = vmatpush1.msra.mxu0 0.0
      %3435 = vmatprep.subr.mxu0 0.0
      %3436 = vmatpush1.msra.mxu0 0.0
      %3437 = vmatprep.subr.mxu0 0.0
      %3438 = vmatpush1.msra.mxu0 0.0
      %3439 = vmatprep.mubr.f32.mxu0 0.0
      %3440 = vmatmul.mubr.f32.gmra.mrb[0].mxu0 %v3360
      %v3441 = vpop.f32.mrb[0].mxu0
      %v3442 = vadd.f32 %v3356, %v3441
      %v3443 = vpop.f32.mrb[0].mxu0
      %3444 = vmatprep.mubr.f32.mxu0 0.0
      %3445 = vmatmul.mubr.f32.gmra.mrb[0].mxu0 %v3363
      %v3446 = vpop.f32.mrb[0].mxu0
      %v3447 = vadd.f32 %v3356, %v3446
      %v3448 = vpop.f32.mrb[0].mxu0
      %3449 = vmatprep.mubr.f32.mxu0 0.0
      %3450 = vmatmul.mubr.f32.gmra.mrb[0].mxu0 %v3366
      %v3451 = vpop.f32.mrb[0].mxu0
      %v3452 = vadd.f32 %v3356, %v3451
      %v3453 = vpop.f32.mrb[0].mxu0
      %3454 = vmatprep.mubr.f32.mxu0 0.0
      %3455 = vmatmul.mubr.f32.gmra.mrb[0].mxu0 %v3369
      %v3456 = vpop.f32.mrb[0].mxu0
      %v3457 = vadd.f32 %v3356, %v3456
      %v3458 = vpop.f32.mrb[0].mxu0
      %3459 = vdwg.mxu0
      %vm3460 = vcmp.ge.f32.partialorder %v3442, 0.0
      %vm3461 = vcmp.ge.f32.partialorder %v3447, 0.0
      %vm3462 = vcmp.ge.f32.partialorder %v3452, 0.0
      %vm3463 = vcmp.ge.f32.partialorder %v3457, 0.0
      %v3464 = vmul.f32 %v3442, 0.2
      %v3465 = vmul.f32 %v3447, 0.2
      %v3466 = vmul.f32 %v3452, 0.2
      %v3467 = vmul.f32 %v3457, 0.2
      %v3468 = vsel %vm3460, %v3442, %v3464
      %v3469 = vsel %vm3461, %v3447, %v3465
      %v3470 = vsel %vm3462, %v3452, %v3466
      %v3471 = vsel %vm3463, %v3457, %v3467
      %v3472 = vld [vmem:[%s16] sm:$0xff]
      %v3473 = vld [vmem:[%s16 + $0x8] sm:$0x3]
      %v3474 = vld [vmem:[%s17] sm:$0x1]
      %v3476 = vlaneseq
      %v3477 = vshrl.u32 %v3476, 7
      %v3478 = vsub.s32 0, %v3477
      %v3479 = vrot.slane %v3474, %v3478
      %vm3481 = vcmask 80896
      %v3483 = vsel %vm3481, %v3468, 0
      %v3486 = vsel %vm3481, %v3469, 0
      %v3489 = vsel %vm3481, %v3470, 0
      %v3492 = vsel %vm3481, %v3471, 0
      %v3495 = vsel %vm1658, %v3473, 0
      %3497 = vmatprep.subr.mxu0 0.0
      %3498 = vmatpush1.msra.mxu0 %v3472
      %3499 = vmatprep.subr.mxu0 0.0
      %3500 = vmatpush1.msra.mxu0 %v3495
      %3501 = vmatprep.subr.mxu0 0.0
      %3502 = vmatpush1.msra.mxu0 0.0
      %3503 = vmatprep.subr.mxu0 0.0
      %3504 = vmatpush1.msra.mxu0 0.0
      %3505 = vmatprep.subr.mxu0 0.0
      %3506 = vmatpush1.msra.mxu0 0.0
      %3507 = vmatprep.subr.mxu0 0.0
      %3508 = vmatpush1.msra.mxu0 0.0
      %3509 = vmatprep.subr.mxu0 0.0
      %3510 = vmatpush1.msra.mxu0 0.0
      %3511 = vmatprep.subr.mxu0 0.0
      %3512 = vmatpush1.msra.mxu0 0.0
      %3513 = vmatprep.subr.mxu0 0.0
      %3514 = vmatpush1.msra.mxu0 0.0
      %3515 = vmatprep.subr.mxu0 0.0
      %3516 = vmatpush1.msra.mxu0 0.0
      %3517 = vmatprep.subr.mxu0 0.0
      %3518 = vmatpush1.msra.mxu0 0.0
      %3519 = vmatprep.subr.mxu0 0.0
      %3520 = vmatpush1.msra.mxu0 0.0
      %3521 = vmatprep.subr.mxu0 0.0
      %3522 = vmatpush1.msra.mxu0 0.0
      %3523 = vmatprep.subr.mxu0 0.0
      %3524 = vmatpush1.msra.mxu0 0.0
      %3525 = vmatprep.subr.mxu0 0.0
      %3526 = vmatpush1.msra.mxu0 0.0
      %3527 = vmatprep.subr.mxu0 0.0
      %3528 = vmatpush1.msra.mxu0 0.0
      %3529 = vmatprep.subr.mxu0 0.0
      %3530 = vmatpush1.msra.mxu0 0.0
      %3531 = vmatprep.subr.mxu0 0.0
      %3532 = vmatpush1.msra.mxu0 0.0
      %3533 = vmatprep.subr.mxu0 0.0
      %3534 = vmatpush1.msra.mxu0 0.0
      %3535 = vmatprep.subr.mxu0 0.0
      %3536 = vmatpush1.msra.mxu0 0.0
      %3537 = vmatprep.subr.mxu0 0.0
      %3538 = vmatpush1.msra.mxu0 0.0
      %3539 = vmatprep.subr.mxu0 0.0
      %3540 = vmatpush1.msra.mxu0 0.0
      %3541 = vmatprep.subr.mxu0 0.0
      %3542 = vmatpush1.msra.mxu0 0.0
      %3543 = vmatprep.subr.mxu0 0.0
      %3544 = vmatpush1.msra.mxu0 0.0
      %3545 = vmatprep.subr.mxu0 0.0
      %3546 = vmatpush1.msra.mxu0 0.0
      %3547 = vmatprep.subr.mxu0 0.0
      %3548 = vmatpush1.msra.mxu0 0.0
      %3549 = vmatprep.subr.mxu0 0.0
      %3550 = vmatpush1.msra.mxu0 0.0
      %3551 = vmatprep.subr.mxu0 0.0
      %3552 = vmatpush1.msra.mxu0 0.0
      %3553 = vmatprep.subr.mxu0 0.0
      %3554 = vmatpush1.msra.mxu0 0.0
      %3555 = vmatprep.subr.mxu0 0.0
      %3556 = vmatpush1.msra.mxu0 0.0
      %3557 = vmatprep.subr.mxu0 0.0
      %3558 = vmatpush1.msra.mxu0 0.0
      %3559 = vmatprep.subr.mxu0 0.0
      %3560 = vmatpush1.msra.mxu0 0.0
      %3561 = vmatprep.mubr.f32.mxu0 0.0
      %3562 = vmatmul.mubr.f32.gmra.mrb[0].mxu0 %v3483
      %v3563 = vpop.f32.mrb[0].mxu0
      %v3564 = vadd.f32 %v3479, %v3563
      %v3565 = vpop.f32.mrb[0].mxu0
      %3566 = vmatprep.mubr.f32.mxu0 0.0
      %3567 = vmatmul.mubr.f32.gmra.mrb[0].mxu0 %v3486
      %v3568 = vpop.f32.mrb[0].mxu0
      %v3569 = vadd.f32 %v3479, %v3568
      %v3570 = vpop.f32.mrb[0].mxu0
      %3571 = vmatprep.mubr.f32.mxu0 0.0
      %3572 = vmatmul.mubr.f32.gmra.mrb[0].mxu0 %v3489
      %v3573 = vpop.f32.mrb[0].mxu0
      %v3574 = vadd.f32 %v3479, %v3573
      %v3575 = vpop.f32.mrb[0].mxu0
      %3576 = vmatprep.mubr.f32.mxu0 0.0
      %3577 = vmatmul.mubr.f32.gmra.mrb[0].mxu0 %v3492
      %v3578 = vpop.f32.mrb[0].mxu0
      %v3579 = vadd.f32 %v3479, %v3578
      %v3580 = vpop.f32.mrb[0].mxu0
      %3581 = vdwg.mxu0
      %vm3582 = vcmask 15360
      %3583 = vst.msk [vmem:[%s642] sm:$0xff] %vm3582, %v3564
      %3584 = vst.msk [vmem:[%s642 + $0x8] sm:$0xff] %vm3582, %v3569
      %3585 = vst.msk [vmem:[%s642 + $0x10] sm:$0xff] %vm3582, %v3574
      %3586 = vst.msk [vmem:[%s642 + $0x18] sm:$0xff] %vm3582, %v3579
      %s3587 = smul.u32 4, %s33
      %p3588 = scmp.lt.s32.totalorder %s3587, 7
      %s3589 = scalar_select %p3588, %s3587, 7
      %s3590 = smul.addr %s3589, 8
      %s3591 = scalar_lea.vmem %s18, %s3590
      %s3592 = smul.u32 4, %s33
      %p3593 = scmp.lt.s32.totalorder %s3592, 7
      %s3594 = scalar_select %p3593, %s3592, 7
      %s3595 = smul.addr %s3594, 8
      %s3596 = scalar_lea.vmem %s19, %s3595
      // Predicated region
      $region93: #{tpu_custom_call.1} parent=91 // pred_check
        %p3597 = pneg %p439
      $region94: #{tpu_custom_call.1} parent=91 // pred_check_branch
        %3599 = sbr.rel (%p3597) target = $region96
      $region95: #{tpu_custom_call.1} parent=91 // pred_region
        %s3600 = smul.u32 4, %s33
      $region96: #{tpu_custom_call.1} parent=91 // pred_fallthru
        _
      // Predicated region
      $region97: #{tpu_custom_call.1} parent=91 // pred_check
        %p3601 = pneg %p465
      $region98: #{tpu_custom_call.1} parent=91 // pred_check_branch
        %3603 = sbr.rel (%p3601) target = $region100
      $region99: #{tpu_custom_call.1} parent=91 // pred_region
        %s3604 = smul.u32 4, %s33
      $region100: #{tpu_custom_call.1} parent=91 // pred_fallthru
        _
    $region92: #{tpu_custom_call.1} parent=5 // pred_fallthru
      _
    %p3605 = scmp.le.s32.totalorder 2, %s28
    // Predicated region
    $region101: #{tpu_custom_call.1} parent=5 // pred_check
      %p3606 = pneg %p3605
    $region102: #{tpu_custom_call.1} parent=5 // pred_check_branch
      %3608 = sbr.rel (%p3606) target = $region104
    $region103: #{tpu_custom_call.1} parent=5 // pred_region
      %s3609 = ssub.s32 %s28, 2
      // Predicated region
      $region105: #{tpu_custom_call.1} parent=103 // pred_check
        %p3610 = pneg %p445
      $region106: #{tpu_custom_call.1} parent=103 // pred_check_branch
        %3612 = sbr.rel (%p3610) target = $region108
      $region107: #{tpu_custom_call.1} parent=103 // pred_region
        %s3613 = smul.u32 4, %s34
        %p3614 = scmp.lt.s32.totalorder %s3613, 7
        %s3615 = scalar_select %p3614, %s3613, 7
        %s3616 = smul.addr %s3615, 8
        %s3617 = scalar_lea.vmem %s18, %s3616
      $region108: #{tpu_custom_call.1} parent=103 // pred_fallthru
        _
      // Predicated region
      $region109: #{tpu_custom_call.1} parent=103 // pred_check
        %p3618 = pneg %p471
      $region110: #{tpu_custom_call.1} parent=103 // pred_check_branch
        %3620 = sbr.rel (%p3618) target = $region112
      $region111: #{tpu_custom_call.1} parent=103 // pred_region
        %s3621 = smul.u32 4, %s34
        %p3622 = scmp.lt.s32.totalorder %s3621, 7
        %s3623 = scalar_select %p3622, %s3621, 7
        %s3624 = smul.addr %s3623, 8
        %s3625 = scalar_lea.vmem %s19, %s3624
      $region112: #{tpu_custom_call.1} parent=103 // pred_fallthru
        _
    $region104: #{tpu_custom_call.1} parent=5 // pred_fallthru
      _
  $region6: #{tpu_custom_call.1} parent=0 // loop_footer
    %s32 = sadd.s32 1, %s28
  $region7: #{tpu_custom_call.1} parent=0 // loop_footer_branch
    %27 = sbr.rel target = $region3
  $region8: #{tpu_custom_call.1} parent=0 // loop_exit
    _

</llo_original>
